<compile_context>
chip_gen: v7x
topology: tpu7x:2x2x1
jax: 0.10.0
libtpu: 0.0.40
codegen_flags: <defaults>
</compile_context>

<pallas_src>
import functools
import math

import jax
import jax.numpy as jnp
from jax.experimental import pallas as pl
from jax.experimental.pallas import tpu as pltpu


# ---------------------------------------------------------------------------
# Generation-aware configuration (v5e/v6e: 128 MiB VMEM, v7x: 64 MiB per TC)
# ---------------------------------------------------------------------------
def _vmem_capacity_bytes():
    try:
        return int(pltpu.get_tpu_info().vmem_capacity_bytes)
    except Exception:
        return 64 * 1024 * 1024  # conservative fallback (v7x per-TensorCore)


_VMEM_CAP = _vmem_capacity_bytes()
if _VMEM_CAP >= 96 * 1024 * 1024:        # v5e / v6e
    _VMEM_LIMIT = 64 * 1024 * 1024
    _MAX_ROW_TILE = 1024
else:                                     # v7x
    _VMEM_LIMIT = 40 * 1024 * 1024
    _MAX_ROW_TILE = 512
_WORKSET_BUDGET = (_VMEM_LIMIT * 3) // 4  # leave headroom for compiler scratch


def _round_up(x, m):
    return ((x + m - 1) // m) * m


# ---------------------------------------------------------------------------
# Pallas kernel: fused (matmul -> +bias -> optional ELU)
# ---------------------------------------------------------------------------
def _matmul_bias_act_kernel(x_ref, w_ref, b_ref, o_ref, *, apply_act):
    # x_ref: (tm, K)    bf16  im2col patches / embedding rows
    # w_ref: (K, Cout)  bf16  spectral-normalized (w / sigma) weight
    # b_ref: (1, Cout)  f32   bias
    # o_ref: (tm, Cout)
    acc = jnp.dot(x_ref[...], w_ref[...], preferred_element_type=jnp.float32)
    y = acc + b_ref[0:1, :]
    if apply_act:  # ELU(alpha=1) epilogue; exp goes to the EUP slot
        y = jnp.where(y > 0.0, y, jnp.exp(y) - 1.0)
    o_ref[...] = y.astype(o_ref.dtype)


def _budget_row_tile(k, cout, in_isz, out_isz):
    """Largest power-of-two row tile whose double-buffered working set fits VMEM budget."""
    tm = _MAX_ROW_TILE
    while tm > 8:
        work = (2 * tm * k * in_isz          # double-buffered patch block
                + 2 * tm * cout * out_isz    # double-buffered output block
                + 2 * k * cout * in_isz      # weight (constant across grid)
                + 2 * cout * 4 * 2)          # bias
        if work <= _WORKSET_BUDGET:
            break
        tm //= 2
    return tm


def _fused_matmul(x2d, w2d, bias, *, apply_act,
                  out_dtype=jnp.float32, compute_dtype=jnp.bfloat16):
    """(M, K) @ (K, Cout) + bias [-> ELU] as one Pallas call (bf16 MXU, f32 accum)."""
    M, K = x2d.shape
    K2, Cout = w2d.shape
    assert K == K2

    x2d = x2d.astype(compute_dtype)
    w2d = w2d.astype(compute_dtype)

    # Pad a short contraction dim to a full 128-lane group (layer 1: K=100 -> 128).
    if K < 128:
        x2d = jnp.pad(x2d, ((0, 0), (0, 128 - K)))
        w2d = jnp.pad(w2d, ((0, 128 - K), (0, 0)))
        K = 128

    in_isz = jnp.dtype(compute_dtype).itemsize
    out_isz = jnp.dtype(out_dtype).itemsize

    # Fixed row tile; pad M up to a multiple of it instead of searching for a divisor.
    tm = _budget_row_tile(K, Cout, in_isz, out_isz)
    if M <= tm:
        tm = _round_up(M, 8)
        m_pad = tm
    else:
        # keep row-padding waste under ~12.5% of M
        while tm > 8 and (_round_up(M, tm) - M) * 8 > M:
            tm //= 2
        m_pad = _round_up(M, tm)
    if m_pad != M:
        x2d = jnp.pad(x2d, ((0, m_pad - M), (0, 0)))  # zero rows -> ELU(bias), sliced off

    grid = (m_pad // tm,)
    bias2d = bias.astype(jnp.float32).reshape(1, Cout)

    cost = pl.CostEstimate(
        flops=2 * m_pad * K * Cout,
        transcendentals=(m_pad * Cout) if apply_act else 0,
        bytes_accessed=(m_pad * K + K * Cout) * in_isz + Cout * 4
        + m_pad * Cout * out_isz)

    kernel = functools.partial(_matmul_bias_act_kernel, apply_act=apply_act)
    out = pl.pallas_call(
        kernel,
        out_shape=jax.ShapeDtypeStruct((m_pad, Cout), out_dtype),
        grid=grid,
        in_specs=[
            pl.BlockSpec((tm, K), lambda i: (i, 0)),     # row-blocked patches
            pl.BlockSpec((K, Cout), lambda i: (0, 0)),   # weight, resident across grid
            pl.BlockSpec((1, Cout), lambda i: (0, 0)),   # bias tile
        ],
        out_specs=pl.BlockSpec((tm, Cout), lambda i: (i, 0)),
        compiler_params=pltpu.CompilerParams(
            dimension_semantics=("parallel",),
            vmem_limit_bytes=_VMEM_LIMIT),
        cost_estimate=cost,
    )(x2d, w2d, bias2d)
    return out[:M]


# ---------------------------------------------------------------------------
# Plain-JAX glue: spectral norm (parameter space), im2col, layer wrappers
# ---------------------------------------------------------------------------
def _l2normalize(v, eps=1e-12):
    return v / (jnp.linalg.norm(v) + eps)


def _spectral_sigma(w2d, u):
    """One power iteration, exactly SpectralNorm._update_u_v (power_iteration=1)."""
    v = _l2normalize(jnp.matmul(w2d.T, u))
    u_new = _l2normalize(jnp.matmul(w2d, v))
    return jnp.dot(u_new, jnp.matmul(w2d, v))


def _im2col(x_nhwc, kh, kw, stride, padding):
    n, h, w, c = x_nhwc.shape
    xp = jnp.pad(x_nhwc, ((0, 0), (padding, padding), (padding, padding), (0, 0)))
    ho = (h + 2 * padding - kh) // stride + 1
    wo = (w + 2 * padding - kw) // stride + 1
    cols = []
    for dh in range(kh):
        for dw in range(kw):
            cols.append(xp[:, dh:dh + (ho - 1) * stride + 1:stride,
                           dw:dw + (wo - 1) * stride + 1:stride, :])
    patches = jnp.concatenate(cols, axis=-1)  # (n, ho, wo, kh*kw*c), tap-major, cin fastest
    return patches.reshape(n * ho * wo, kh * kw * c), ho, wo


def _conv2d_sn_elu(x_nhwc, w, b, u, *, stride, padding, compute_dtype, out_dtype):
    cout, cin, kh, kw = w.shape
    n = x_nhwc.shape[0]
    sigma = _spectral_sigma(w.reshape(cout, -1), u)
    # im2col on the compute-dtype input so the KH*KW-duplicated patch array in HBM is bf16.
    patches, ho, wo = _im2col(x_nhwc.astype(compute_dtype), kh, kw, stride, padding)
    # (KH, KW, Cin, Cout) flattening matches the im2col tap ordering above.
    w2d = jnp.transpose(w, (2, 3, 1, 0)).reshape(kh * kw * cin, cout)
    w2d = w2d * (1.0 / sigma)  # fold spectral norm into the tiny weight (w / sigma)
    y2d = _fused_matmul(patches, w2d, b, apply_act=True,
                        out_dtype=out_dtype, compute_dtype=compute_dtype)
    return y2d.reshape(n, ho, wo, cout)


def discriminator_forward(x_nchw, conv_params, fc_params, compute_dtype=jnp.bfloat16):
    h = jnp.transpose(x_nchw, (0, 2, 3, 1))  # NHWC through the conv stack
    # Intermediate activations stay bf16: halves HBM writeback and the next layer's
    # duplicated patch reads; the MXU consumes bf16 either way.
    for (w, b, u) in conv_params:
        h = _conv2d_sn_elu(h, w, b, u, stride=2, padding=2,
                           compute_dtype=compute_dtype, out_dtype=compute_dtype)
    # PyTorch flattens NCHW-ordered features into the embedding.
    emb = jnp.transpose(h, (0, 3, 1, 2)).reshape(h.shape[0], -1)

    w_fc, b_fc, u_fc = fc_params
    sigma = _spectral_sigma(w_fc, u_fc)
    fc = w_fc.shape[1]
    # Pad the single logit column to a lane-dense 128-wide tile; slice the real logit after.
    pad_cols = 128
    w_pad = jnp.zeros((fc, pad_cols), jnp.float32).at[:, 0].set(w_fc[0] * (1.0 / sigma))
    b_pad = jnp.zeros((pad_cols,), jnp.float32).at[0].set(b_fc[0])
    y = _fused_matmul(emb, w_pad, b_pad, apply_act=False,
                      out_dtype=jnp.float32, compute_dtype=compute_dtype)
    logit = y[:, :1]
    return logit, emb.astype(jnp.float32)


# ---------------------------------------------------------------------------
# Pure-JAX reference (lax.conv), same bf16-operand / f32-accumulate math
# ---------------------------------------------------------------------------
def _reference_forward(x_nchw, conv_params, fc_params):
    h = x_nchw
    for (w, b, u) in conv_params:
        cout = w.shape[0]
        sigma = _spectral_sigma(w.reshape(cout, -1), u)
        w_n = (w * (1.0 / sigma)).astype(jnp.bfloat16)
        y = jax.lax.conv_general_dilated(
            h.astype(jnp.bfloat16), w_n,
            window_strides=(2, 2), padding=[(2, 2), (2, 2)],
            dimension_numbers=("NCHW", "OIHW", "NCHW"),
            preferred_element_type=jnp.float32)
        y = y + b[None, :, None, None]
        h = jnp.where(y > 0.0, y, jnp.exp(y) - 1.0)  # ELU(alpha=1)
    emb = h.reshape(h.shape[0], -1)
    w_fc, b_fc, u_fc = fc_params
    sigma = _spectral_sigma(w_fc, u_fc)
    logit = jnp.dot(emb.astype(jnp.bfloat16),
                    (w_fc.T * (1.0 / sigma)).astype(jnp.bfloat16),
                    preferred_element_type=jnp.float32) + b_fc[None, :]
    return logit, emb


# ---------------------------------------------------------------------------
if __name__ == "__main__":
    N, IN_CH, CNUM, H, W = 2, 4, 32, 16, 16
    KSIZE = 5

    key = jax.random.PRNGKey(0)

    def conv_param(k, cin, cout):
        kw_, kb_, ku_ = jax.random.split(k, 3)
        bound = 1.0 / math.sqrt(cin * KSIZE * KSIZE)
        w = jax.random.uniform(kw_, (cout, cin, KSIZE, KSIZE), jnp.float32, -bound, bound)
        b = jax.random.uniform(kb_, (cout,), jnp.float32, -bound, bound)
        u = _l2normalize(jax.random.normal(ku_, (cout,), jnp.float32))
        return w, b, u

    chans = [IN_CH, CNUM, CNUM * 2, CNUM * 4, CNUM * 4]   # 4 -> 32 -> 64 -> 128 -> 128
    key, *layer_keys = jax.random.split(key, len(chans))
    conv_params = [conv_param(k, cin, cout)
                   for k, cin, cout in zip(layer_keys, chans[:-1], chans[1:])]

    # spatial after four stride-2 convs: 16 -> 8 -> 4 -> 2 -> 1
    fc_channels = 1 * 1 * CNUM * 4  # = 128
    kfw, kfb, kfu = jax.random.split(key, 3)
    bound = 1.0 / math.sqrt(fc_channels)
    w_fc = jax.random.uniform(kfw, (1, fc_channels), jnp.float32, -bound, bound)
    b_fc = jax.random.uniform(kfb, (1,), jnp.float32, -bound, bound)
    u_fc = _l2normalize(jax.random.normal(kfu, (1,), jnp.float32))
    fc_params = (w_fc, b_fc, u_fc)

    x = jax.random.normal(jax.random.PRNGKey(1), (N, IN_CH, H, W), dtype=jnp.float32)

    fwd = jax.jit(discriminator_forward)
    logit, emb = fwd(x, conv_params, fc_params)
    logit, emb = jax.block_until_ready((logit, emb))

    ref_logit, ref_emb = jax.jit(_reference_forward)(x, conv_params, fc_params)
    ref_logit, ref_emb = jax.block_until_ready((ref_logit, ref_emb))

    assert logit.shape == (N, 1), logit.shape
    assert emb.shape == (N, fc_channels), emb.shape
    err_l = float(jnp.max(jnp.abs(logit - ref_logit)))
    err_e = float(jnp.max(jnp.abs(emb - ref_emb)))
    assert jnp.allclose(logit, ref_logit, atol=1e-2, rtol=1e-2), err_l
    assert jnp.allclose(emb, ref_emb, atol=1e-2, rtol=1e-2), err_e

    print("KERNEL_OK")
</pallas_src>

<mosaic_0001>
module attributes {stable_mosaic.version = 11 : i64} {
  func.func @_matmul_bias_act_kernel(%arg0: i32, %arg1: memref<128x128xbf16, #tpu.memory_space<vmem>>, %arg2: memref<128x32xbf16, #tpu.memory_space<vmem>>, %arg3: memref<1x32xf32, #tpu.memory_space<vmem>>, %arg4: memref<128x32xbf16, #tpu.memory_space<vmem>>) attributes {dimension_semantics = [#tpu.dimension_semantics<parallel>], iteration_bounds = array<i64: 1>, scalar_prefetch = 0 : i64, scratch_operands = 0 : i64, tpu.core_type = #tpu.core_type<tc>, window_params = [{transform_indices = @transform_0, window_bounds = array<i64: 128, 128>}, {pipeline_mode = #tpu.pipeline_mode<synchronous>, transform_indices = @transform_1, window_bounds = array<i64: 128, 32>}, {pipeline_mode = #tpu.pipeline_mode<synchronous>, transform_indices = @transform_2, window_bounds = array<i64: 1, 32>}, {transform_indices = @transform_3, window_bounds = array<i64: 128, 32>}]} {
    %c0 = arith.constant 0 : index
    %c0_0 = arith.constant 0 : index
    %0 = vector.load %arg1[%c0, %c0_0] : memref<128x128xbf16, #tpu.memory_space<vmem>>, vector<128x128xbf16>
    %c0_1 = arith.constant 0 : index
    %c0_2 = arith.constant 0 : index
    %1 = vector.load %arg2[%c0_1, %c0_2] : memref<128x32xbf16, #tpu.memory_space<vmem>>, vector<128x32xbf16>
    %cst = arith.constant dense<0.000000e+00> : vector<128x32xf32>
    %2 = tpu.matmul %0, %1, %cst {dimension_numbers = #tpu.dot_dimension_numbers<[1], [0], [0], [1], [0, 0, 1, 1], [], []>} : vector<128x128xbf16>, vector<128x32xbf16>, vector<128x32xf32> -> vector<128x32xf32>
    %c0_3 = arith.constant 0 : index
    %c0_4 = arith.constant 0 : index
    %3 = vector.load %arg3[%c0_3, %c0_4] : memref<1x32xf32, #tpu.memory_space<vmem>>, vector<1x32xf32>
    %4 = vector.broadcast %3 : vector<1x32xf32> to vector<128x32xf32>
    %5 = arith.addf %2, %4 : vector<128x32xf32>
    %cst_5 = arith.constant 0.000000e+00 : f32
    %6 = vector.broadcast %cst_5 : f32 to vector<128x32xf32>
    %7 = arith.cmpf ogt, %5, %6 : vector<128x32xf32>
    %8 = math.exp %5 : vector<128x32xf32>
    %cst_6 = arith.constant 1.000000e+00 : f32
    %9 = vector.broadcast %cst_6 : f32 to vector<128x32xf32>
    %10 = arith.subf %8, %9 : vector<128x32xf32>
    %11 = arith.select %7, %5, %10 : vector<128x32xi1>, vector<128x32xf32>
    %12 = arith.truncf %11 : vector<128x32xf32> to vector<128x32xbf16>
    %c0_7 = arith.constant 0 : index
    %c0_8 = arith.constant 0 : index
    %13 = vector.load %arg4[%c0_7, %c0_8] : memref<128x32xbf16, #tpu.memory_space<vmem>>, vector<128x32xbf16>
    tpu.vector_store %arg4[%c0_7, %c0_8], %12 {strides = array<i32>} : memref<128x32xbf16, #tpu.memory_space<vmem>>, vector<128x32xbf16>,
    return
  }
  func.func @transform_0(%arg0: i32) -> (i32, i32) {
    %c0_i32 = arith.constant 0 : i32
    %c0_i32_0 = arith.constant 0 : i32
    return %arg0, %c0_i32 : i32, i32
  }
  func.func @transform_1(%arg0: i32) -> (i32, i32) {
    %c0_i32 = arith.constant 0 : i32
    %c0_i32_0 = arith.constant 0 : i32
    %c0_i32_1 = arith.constant 0 : i32
    return %c0_i32, %c0_i32_0 : i32, i32
  }
  func.func @transform_2(%arg0: i32) -> (i32, i32) {
    %c0_i32 = arith.constant 0 : i32
    %c0_i32_0 = arith.constant 0 : i32
    %c0_i32_1 = arith.constant 0 : i32
    return %c0_i32, %c0_i32_0 : i32, i32
  }
  func.func @transform_3(%arg0: i32) -> (i32, i32) {
    %c0_i32 = arith.constant 0 : i32
    %c0_i32_0 = arith.constant 0 : i32
    return %arg0, %c0_i32 : i32, i32
  }
}

module attributes {stable_mosaic.version = 11 : i64} {
  func.func @_matmul_bias_act_kernel(%arg0: i32, %arg1: memref<32x800xbf16, #tpu.memory_space<vmem>>, %arg2: memref<800x64xbf16, #tpu.memory_space<vmem>>, %arg3: memref<1x64xf32, #tpu.memory_space<vmem>>, %arg4: memref<32x64xbf16, #tpu.memory_space<vmem>>) attributes {dimension_semantics = [#tpu.dimension_semantics<parallel>], iteration_bounds = array<i64: 1>, scalar_prefetch = 0 : i64, scratch_operands = 0 : i64, tpu.core_type = #tpu.core_type<tc>, window_params = [{transform_indices = @transform_0, window_bounds = array<i64: 32, 800>}, {pipeline_mode = #tpu.pipeline_mode<synchronous>, transform_indices = @transform_1, window_bounds = array<i64: 800, 64>}, {pipeline_mode = #tpu.pipeline_mode<synchronous>, transform_indices = @transform_2, window_bounds = array<i64: 1, 64>}, {transform_indices = @transform_3, window_bounds = array<i64: 32, 64>}]} {
    %c0 = arith.constant 0 : index
    %c0_0 = arith.constant 0 : index
    %0 = vector.load %arg1[%c0, %c0_0] : memref<32x800xbf16, #tpu.memory_space<vmem>>, vector<32x800xbf16>
    %c0_1 = arith.constant 0 : index
    %c0_2 = arith.constant 0 : index
    %1 = vector.load %arg2[%c0_1, %c0_2] : memref<800x64xbf16, #tpu.memory_space<vmem>>, vector<800x64xbf16>
    %cst = arith.constant dense<0.000000e+00> : vector<32x64xf32>
    %2 = tpu.matmul %0, %1, %cst {dimension_numbers = #tpu.dot_dimension_numbers<[1], [0], [0], [1], [0, 0, 1, 1], [], []>} : vector<32x800xbf16>, vector<800x64xbf16>, vector<32x64xf32> -> vector<32x64xf32>
    %c0_3 = arith.constant 0 : index
    %c0_4 = arith.constant 0 : index
    %3 = vector.load %arg3[%c0_3, %c0_4] : memref<1x64xf32, #tpu.memory_space<vmem>>, vector<1x64xf32>
    %4 = vector.broadcast %3 : vector<1x64xf32> to vector<32x64xf32>
    %5 = arith.addf %2, %4 : vector<32x64xf32>
    %cst_5 = arith.constant 0.000000e+00 : f32
    %6 = vector.broadcast %cst_5 : f32 to vector<32x64xf32>
    %7 = arith.cmpf ogt, %5, %6 : vector<32x64xf32>
    %8 = math.exp %5 : vector<32x64xf32>
    %cst_6 = arith.constant 1.000000e+00 : f32
    %9 = vector.broadcast %cst_6 : f32 to vector<32x64xf32>
    %10 = arith.subf %8, %9 : vector<32x64xf32>
    %11 = arith.select %7, %5, %10 : vector<32x64xi1>, vector<32x64xf32>
    %12 = arith.truncf %11 : vector<32x64xf32> to vector<32x64xbf16>
    %c0_7 = arith.constant 0 : index
    %c0_8 = arith.constant 0 : index
    %13 = vector.load %arg4[%c0_7, %c0_8] : memref<32x64xbf16, #tpu.memory_space<vmem>>, vector<32x64xbf16>
    tpu.vector_store %arg4[%c0_7, %c0_8], %12 {strides = array<i32>} : memref<32x64xbf16, #tpu.memory_space<vmem>>, vector<32x64xbf16>,
    return
  }
  func.func @transform_0(%arg0: i32) -> (i32, i32) {
    %c0_i32 = arith.constant 0 : i32
    %c0_i32_0 = arith.constant 0 : i32
    return %arg0, %c0_i32 : i32, i32
  }
  func.func @transform_1(%arg0: i32) -> (i32, i32) {
    %c0_i32 = arith.constant 0 : i32
    %c0_i32_0 = arith.constant 0 : i32
    %c0_i32_1 = arith.constant 0 : i32
    return %c0_i32, %c0_i32_0 : i32, i32
  }
  func.func @transform_2(%arg0: i32) -> (i32, i32) {
    %c0_i32 = arith.constant 0 : i32
    %c0_i32_0 = arith.constant 0 : i32
    %c0_i32_1 = arith.constant 0 : i32
    return %c0_i32, %c0_i32_0 : i32, i32
  }
  func.func @transform_3(%arg0: i32) -> (i32, i32) {
    %c0_i32 = arith.constant 0 : i32
    %c0_i32_0 = arith.constant 0 : i32
    return %arg0, %c0_i32 : i32, i32
  }
}

module attributes {stable_mosaic.version = 11 : i64} {
  func.func @_matmul_bias_act_kernel(%arg0: i32, %arg1: memref<8x1600xbf16, #tpu.memory_space<vmem>>, %arg2: memref<1600x128xbf16, #tpu.memory_space<vmem>>, %arg3: memref<1x128xf32, #tpu.memory_space<vmem>>, %arg4: memref<8x128xbf16, #tpu.memory_space<vmem>>) attributes {dimension_semantics = [#tpu.dimension_semantics<parallel>], iteration_bounds = array<i64: 1>, scalar_prefetch = 0 : i64, scratch_operands = 0 : i64, tpu.core_type = #tpu.core_type<tc>, window_params = [{transform_indices = @transform_0, window_bounds = array<i64: 8, 1600>}, {pipeline_mode = #tpu.pipeline_mode<synchronous>, transform_indices = @transform_1, window_bounds = array<i64: 1600, 128>}, {pipeline_mode = #tpu.pipeline_mode<synchronous>, transform_indices = @transform_2, window_bounds = array<i64: 1, 128>}, {transform_indices = @transform_3, window_bounds = array<i64: 8, 128>}]} {
    %c0 = arith.constant 0 : index
    %c0_0 = arith.constant 0 : index
    %0 = vector.load %arg1[%c0, %c0_0] : memref<8x1600xbf16, #tpu.memory_space<vmem>>, vector<8x1600xbf16>
    %c0_1 = arith.constant 0 : index
    %c0_2 = arith.constant 0 : index
    %1 = vector.load %arg2[%c0_1, %c0_2] : memref<1600x128xbf16, #tpu.memory_space<vmem>>, vector<1600x128xbf16>
    %cst = arith.constant dense<0.000000e+00> : vector<8x128xf32>
    %2 = tpu.matmul %0, %1, %cst {dimension_numbers = #tpu.dot_dimension_numbers<[1], [0], [0], [1], [0, 0, 1, 1], [], []>} : vector<8x1600xbf16>, vector<1600x128xbf16>, vector<8x128xf32> -> vector<8x128xf32>
    %c0_3 = arith.constant 0 : index
    %c0_4 = arith.constant 0 : index
    %3 = vector.load %arg3[%c0_3, %c0_4] : memref<1x128xf32, #tpu.memory_space<vmem>>, vector<1x128xf32>
    %4 = vector.broadcast %3 : vector<1x128xf32> to vector<8x128xf32>
    %5 = arith.addf %2, %4 : vector<8x128xf32>
    %cst_5 = arith.constant 0.000000e+00 : f32
    %6 = vector.broadcast %cst_5 : f32 to vector<8x128xf32>
    %7 = arith.cmpf ogt, %5, %6 : vector<8x128xf32>
    %8 = math.exp %5 : vector<8x128xf32>
    %cst_6 = arith.constant 1.000000e+00 : f32
    %9 = vector.broadcast %cst_6 : f32 to vector<8x128xf32>
    %10 = arith.subf %8, %9 : vector<8x128xf32>
    %11 = arith.select %7, %5, %10 : vector<8x128xi1>, vector<8x128xf32>
    %12 = arith.truncf %11 : vector<8x128xf32> to vector<8x128xbf16>
    %c0_7 = arith.constant 0 : index
    %c0_8 = arith.constant 0 : index
    %13 = vector.load %arg4[%c0_7, %c0_8] : memref<8x128xbf16, #tpu.memory_space<vmem>>, vector<8x128xbf16>
    tpu.vector_store %arg4[%c0_7, %c0_8], %12 {strides = array<i32>} : memref<8x128xbf16, #tpu.memory_space<vmem>>, vector<8x128xbf16>,
    return
  }
  func.func @transform_0(%arg0: i32) -> (i32, i32) {
    %c0_i32 = arith.constant 0 : i32
    %c0_i32_0 = arith.constant 0 : i32
    return %arg0, %c0_i32 : i32, i32
  }
  func.func @transform_1(%arg0: i32) -> (i32, i32) {
    %c0_i32 = arith.constant 0 : i32
    %c0_i32_0 = arith.constant 0 : i32
    %c0_i32_1 = arith.constant 0 : i32
    return %c0_i32, %c0_i32_0 : i32, i32
  }
  func.func @transform_2(%arg0: i32) -> (i32, i32) {
    %c0_i32 = arith.constant 0 : i32
    %c0_i32_0 = arith.constant 0 : i32
    %c0_i32_1 = arith.constant 0 : i32
    return %c0_i32, %c0_i32_0 : i32, i32
  }
  func.func @transform_3(%arg0: i32) -> (i32, i32) {
    %c0_i32 = arith.constant 0 : i32
    %c0_i32_0 = arith.constant 0 : i32
    return %arg0, %c0_i32 : i32, i32
  }
}

module attributes {stable_mosaic.version = 11 : i64} {
  func.func @_matmul_bias_act_kernel(%arg0: i32, %arg1: memref<8x3200xbf16, #tpu.memory_space<vmem>>, %arg2: memref<3200x128xbf16, #tpu.memory_space<vmem>>, %arg3: memref<1x128xf32, #tpu.memory_space<vmem>>, %arg4: memref<8x128xbf16, #tpu.memory_space<vmem>>) attributes {dimension_semantics = [#tpu.dimension_semantics<parallel>], iteration_bounds = array<i64: 1>, scalar_prefetch = 0 : i64, scratch_operands = 0 : i64, tpu.core_type = #tpu.core_type<tc>, window_params = [{transform_indices = @transform_0, window_bounds = array<i64: 8, 3200>}, {pipeline_mode = #tpu.pipeline_mode<synchronous>, transform_indices = @transform_1, window_bounds = array<i64: 3200, 128>}, {pipeline_mode = #tpu.pipeline_mode<synchronous>, transform_indices = @transform_2, window_bounds = array<i64: 1, 128>}, {transform_indices = @transform_3, window_bounds = array<i64: 8, 128>}]} {
    %c0 = arith.constant 0 : index
    %c0_0 = arith.constant 0 : index
    %0 = vector.load %arg1[%c0, %c0_0] : memref<8x3200xbf16, #tpu.memory_space<vmem>>, vector<8x3200xbf16>
    %c0_1 = arith.constant 0 : index
    %c0_2 = arith.constant 0 : index
    %1 = vector.load %arg2[%c0_1, %c0_2] : memref<3200x128xbf16, #tpu.memory_space<vmem>>, vector<3200x128xbf16>
    %cst = arith.constant dense<0.000000e+00> : vector<8x128xf32>
    %2 = tpu.matmul %0, %1, %cst {dimension_numbers = #tpu.dot_dimension_numbers<[1], [0], [0], [1], [0, 0, 1, 1], [], []>} : vector<8x3200xbf16>, vector<3200x128xbf16>, vector<8x128xf32> -> vector<8x128xf32>
    %c0_3 = arith.constant 0 : index
    %c0_4 = arith.constant 0 : index
    %3 = vector.load %arg3[%c0_3, %c0_4] : memref<1x128xf32, #tpu.memory_space<vmem>>, vector<1x128xf32>
    %4 = vector.broadcast %3 : vector<1x128xf32> to vector<8x128xf32>
    %5 = arith.addf %2, %4 : vector<8x128xf32>
    %cst_5 = arith.constant 0.000000e+00 : f32
    %6 = vector.broadcast %cst_5 : f32 to vector<8x128xf32>
    %7 = arith.cmpf ogt, %5, %6 : vector<8x128xf32>
    %8 = math.exp %5 : vector<8x128xf32>
    %cst_6 = arith.constant 1.000000e+00 : f32
    %9 = vector.broadcast %cst_6 : f32 to vector<8x128xf32>
    %10 = arith.subf %8, %9 : vector<8x128xf32>
    %11 = arith.select %7, %5, %10 : vector<8x128xi1>, vector<8x128xf32>
    %12 = arith.truncf %11 : vector<8x128xf32> to vector<8x128xbf16>
    %c0_7 = arith.constant 0 : index
    %c0_8 = arith.constant 0 : index
    %13 = vector.load %arg4[%c0_7, %c0_8] : memref<8x128xbf16, #tpu.memory_space<vmem>>, vector<8x128xbf16>
    tpu.vector_store %arg4[%c0_7, %c0_8], %12 {strides = array<i32>} : memref<8x128xbf16, #tpu.memory_space<vmem>>, vector<8x128xbf16>,
    return
  }
  func.func @transform_0(%arg0: i32) -> (i32, i32) {
    %c0_i32 = arith.constant 0 : i32
    %c0_i32_0 = arith.constant 0 : i32
    return %arg0, %c0_i32 : i32, i32
  }
  func.func @transform_1(%arg0: i32) -> (i32, i32) {
    %c0_i32 = arith.constant 0 : i32
    %c0_i32_0 = arith.constant 0 : i32
    %c0_i32_1 = arith.constant 0 : i32
    return %c0_i32, %c0_i32_0 : i32, i32
  }
  func.func @transform_2(%arg0: i32) -> (i32, i32) {
    %c0_i32 = arith.constant 0 : i32
    %c0_i32_0 = arith.constant 0 : i32
    %c0_i32_1 = arith.constant 0 : i32
    return %c0_i32, %c0_i32_0 : i32, i32
  }
  func.func @transform_3(%arg0: i32) -> (i32, i32) {
    %c0_i32 = arith.constant 0 : i32
    %c0_i32_0 = arith.constant 0 : i32
    return %arg0, %c0_i32 : i32, i32
  }
}

module attributes {stable_mosaic.version = 11 : i64} {
  func.func @_matmul_bias_act_kernel(%arg0: i32, %arg1: memref<8x128xbf16, #tpu.memory_space<vmem>>, %arg2: memref<128x128xbf16, #tpu.memory_space<vmem>>, %arg3: memref<1x128xf32, #tpu.memory_space<vmem>>, %arg4: memref<8x128xf32, #tpu.memory_space<vmem>>) attributes {dimension_semantics = [#tpu.dimension_semantics<parallel>], iteration_bounds = array<i64: 1>, scalar_prefetch = 0 : i64, scratch_operands = 0 : i64, tpu.core_type = #tpu.core_type<tc>, window_params = [{transform_indices = @transform_0, window_bounds = array<i64: 8, 128>}, {pipeline_mode = #tpu.pipeline_mode<synchronous>, transform_indices = @transform_1, window_bounds = array<i64: 128, 128>}, {pipeline_mode = #tpu.pipeline_mode<synchronous>, transform_indices = @transform_2, window_bounds = array<i64: 1, 128>}, {transform_indices = @transform_3, window_bounds = array<i64: 8, 128>}]} {
    %c0 = arith.constant 0 : index
    %c0_0 = arith.constant 0 : index
    %0 = vector.load %arg1[%c0, %c0_0] : memref<8x128xbf16, #tpu.memory_space<vmem>>, vector<8x128xbf16>
    %c0_1 = arith.constant 0 : index
    %c0_2 = arith.constant 0 : index
    %1 = vector.load %arg2[%c0_1, %c0_2] : memref<128x128xbf16, #tpu.memory_space<vmem>>, vector<128x128xbf16>
    %cst = arith.constant dense<0.000000e+00> : vector<8x128xf32>
    %2 = tpu.matmul %0, %1, %cst {dimension_numbers = #tpu.dot_dimension_numbers<[1], [0], [0], [1], [0, 0, 1, 1], [], []>} : vector<8x128xbf16>, vector<128x128xbf16>, vector<8x128xf32> -> vector<8x128xf32>
    %c0_3 = arith.constant 0 : index
    %c0_4 = arith.constant 0 : index
    %3 = vector.load %arg3[%c0_3, %c0_4] : memref<1x128xf32, #tpu.memory_space<vmem>>, vector<1x128xf32>
    %4 = vector.broadcast %3 : vector<1x128xf32> to vector<8x128xf32>
    %5 = arith.addf %2, %4 : vector<8x128xf32>
    %c0_5 = arith.constant 0 : index
    %c0_6 = arith.constant 0 : index
    %6 = vector.load %arg4[%c0_5, %c0_6] : memref<8x128xf32, #tpu.memory_space<vmem>>, vector<8x128xf32>
    tpu.vector_store %arg4[%c0_5, %c0_6], %5 {strides = array<i32>} : memref<8x128xf32, #tpu.memory_space<vmem>>, vector<8x128xf32>,
    return
  }
  func.func @transform_0(%arg0: i32) -> (i32, i32) {
    %c0_i32 = arith.constant 0 : i32
    %c0_i32_0 = arith.constant 0 : i32
    return %arg0, %c0_i32 : i32, i32
  }
  func.func @transform_1(%arg0: i32) -> (i32, i32) {
    %c0_i32 = arith.constant 0 : i32
    %c0_i32_0 = arith.constant 0 : i32
    %c0_i32_1 = arith.constant 0 : i32
    return %c0_i32, %c0_i32_0 : i32, i32
  }
  func.func @transform_2(%arg0: i32) -> (i32, i32) {
    %c0_i32 = arith.constant 0 : i32
    %c0_i32_0 = arith.constant 0 : i32
    %c0_i32_1 = arith.constant 0 : i32
    return %c0_i32, %c0_i32_0 : i32, i32
  }
  func.func @transform_3(%arg0: i32) -> (i32, i32) {
    %c0_i32 = arith.constant 0 : i32
    %c0_i32_0 = arith.constant 0 : i32
    return %arg0, %c0_i32 : i32, i32
  }
}

</mosaic_0001>

<llo_original>
// kernel: discriminator_forward.5
$region0: #{discriminator_forward.5}
  #allocation0 [shape = 'u32[]', space=smem, size = 0x4, offset = 0x4, fixed_abs, tag = 'smem constant byte address 0x4 - core index']
  #allocation1 [shape = 'u32[144,128]{1,0:T(1,128)}', space=vmem, size = 0x12000, scoped, tag = 'internal scratch']
  %s0 = inlined_call_operand.vmem [shape: bf16[128,128], index: 0, kind: input, shape index: {}]
  %s1 = inlined_call_operand.vmem [shape: bf16[128,32], index: 1, kind: input, shape index: {}]
  %s2 = inlined_call_operand.vmem [shape: f32[1,32], index: 2, kind: input, shape index: {}]
  %s3 = inlined_call_operand.vmem [shape: bf16[128,32], index: 3, kind: output, shape index: {}]
  %s4 = sld [smem:[#allocation0]]
  $region22: #{discriminator_forward.5} parent=0
    _
  %s6 = ssub.s32 1, %s4
  %s7 = scalar_select 0, %s6, %s4
  // Predicated region
  $region2: #{discriminator_forward.5} parent=0 // pred_check
    _
  $region3: #{discriminator_forward.5} parent=0 // pred_check_branch
    %9 = sbr.rel (0) target = $region5
  $region4: #{discriminator_forward.5} parent=0 // pred_region
    _
  $region5: #{discriminator_forward.5} parent=0 // pred_fallthru
    _
  // Predicated region
  $region6: #{discriminator_forward.5} parent=0 // pred_check
    _
  $region7: #{discriminator_forward.5} parent=0 // pred_check_branch
    %11 = sbr.rel (0) target = $region9
  $region8: #{discriminator_forward.5} parent=0 // pred_region
    _
  $region9: #{discriminator_forward.5} parent=0 // pred_fallthru
    _
  // Predicated region
  $region10: #{discriminator_forward.5} parent=0 // pred_check
    _
  $region11: #{discriminator_forward.5} parent=0 // pred_check_branch
    %13 = sbr.rel (0) target = $region13
  $region12: #{discriminator_forward.5} parent=0 // pred_region
    _
  $region13: #{discriminator_forward.5} parent=0 // pred_fallthru
    _
  %v15 = vld [vmem:[%s0] sm:$0xf]
  %v16 = vld [vmem:[%s0 + $0x4] sm:$0xf]
  %v17 = vld [vmem:[%s0 + $0x8] sm:$0xf]
  %v18 = vld [vmem:[%s0 + $0xc] sm:$0xf]
  %v19 = vld [vmem:[%s0 + $0x10] sm:$0xf]
  %v20 = vld [vmem:[%s0 + $0x14] sm:$0xf]
  %v21 = vld [vmem:[%s0 + $0x18] sm:$0xf]
  %v22 = vld [vmem:[%s0 + $0x1c] sm:$0xf]
  %v23 = vld [vmem:[%s0 + $0x20] sm:$0xf]
  %v24 = vld [vmem:[%s0 + $0x24] sm:$0xf]
  %v25 = vld [vmem:[%s0 + $0x28] sm:$0xf]
  %v26 = vld [vmem:[%s0 + $0x2c] sm:$0xf]
  %v27 = vld [vmem:[%s0 + $0x30] sm:$0xf]
  %v28 = vld [vmem:[%s0 + $0x34] sm:$0xf]
  %v29 = vld [vmem:[%s0 + $0x38] sm:$0xf]
  %v30 = vld [vmem:[%s0 + $0x3c] sm:$0xf]
  %v31 = vld [vmem:[%s1] sm:$0xf]
  %v32 = vld [vmem:[%s1 + $0x4] sm:$0xf]
  %v33 = vld [vmem:[%s1 + $0x8] sm:$0xf]
  %v34 = vld [vmem:[%s1 + $0xc] sm:$0xf]
  %v35 = vld [vmem:[%s1 + $0x10] sm:$0xf]
  %v36 = vld [vmem:[%s1 + $0x14] sm:$0xf]
  %v37 = vld [vmem:[%s1 + $0x18] sm:$0xf]
  %v38 = vld [vmem:[%s1 + $0x1c] sm:$0xf]
  %v39 = vld [vmem:[%s1 + $0x20] sm:$0xf]
  %v40 = vld [vmem:[%s1 + $0x24] sm:$0xf]
  %v41 = vld [vmem:[%s1 + $0x28] sm:$0xf]
  %v42 = vld [vmem:[%s1 + $0x2c] sm:$0xf]
  %v43 = vld [vmem:[%s1 + $0x30] sm:$0xf]
  %v44 = vld [vmem:[%s1 + $0x34] sm:$0xf]
  %v45 = vld [vmem:[%s1 + $0x38] sm:$0xf]
  %v46 = vld [vmem:[%s1 + $0x3c] sm:$0xf]
  %v47 = vld [vmem:[%s2] sm:$0x1]
  %v49 = vlaneseq
  %v50 = vshrl.u32 %v49, 7
  %v51 = vsub.s32 0, %v50
  %v52 = vrot.slane %v47, %v51
  %v70 = vunpack.c.l.b16 %v15
  %v71 = vunpack.c.l.b16 %v16
  %v72 = vunpack.c.l.b16 %v17
  %v73 = vunpack.c.l.b16 %v18
  %v74 = vunpack.c.l.b16 %v19
  %v75 = vunpack.c.l.b16 %v20
  %v76 = vunpack.c.l.b16 %v21
  %v77 = vunpack.c.l.b16 %v22
  %v78 = vunpack.c.l.b16 %v23
  %v79 = vunpack.c.l.b16 %v24
  %v80 = vunpack.c.l.b16 %v25
  %v81 = vunpack.c.l.b16 %v26
  %v82 = vunpack.c.l.b16 %v27
  %v83 = vunpack.c.l.b16 %v28
  %v84 = vunpack.c.l.b16 %v29
  %v85 = vunpack.c.l.b16 %v30
  %v86 = vpack.c.b16 %v71, %v70
  %v87 = vpack.c.b16 %v73, %v72
  %v88 = vpack.c.b16 %v75, %v74
  %v89 = vpack.c.b16 %v77, %v76
  %v90 = vpack.c.b16 %v79, %v78
  %v91 = vpack.c.b16 %v81, %v80
  %v92 = vpack.c.b16 %v83, %v82
  %v93 = vpack.c.b16 %v85, %v84
  %v118 = vunpack.c.l.b16 %v31
  %v119 = vunpack.c.l.b16 %v32
  %v120 = vunpack.c.l.b16 %v33
  %v121 = vunpack.c.l.b16 %v34
  %v122 = vunpack.c.l.b16 %v35
  %v123 = vunpack.c.l.b16 %v36
  %v124 = vunpack.c.l.b16 %v37
  %v125 = vunpack.c.l.b16 %v38
  %v126 = vunpack.c.l.b16 %v39
  %v127 = vunpack.c.l.b16 %v40
  %v128 = vunpack.c.l.b16 %v41
  %v129 = vunpack.c.l.b16 %v42
  %v130 = vunpack.c.l.b16 %v43
  %v131 = vunpack.c.l.b16 %v44
  %v132 = vunpack.c.l.b16 %v45
  %v133 = vunpack.c.l.b16 %v46
  %v134 = vpack.c.b16 %v119, %v118
  %v135 = vpack.c.b16 %v121, %v120
  %v136 = vpack.c.b16 %v123, %v122
  %v137 = vpack.c.b16 %v125, %v124
  %v138 = vpack.c.b16 %v127, %v126
  %v139 = vpack.c.b16 %v129, %v128
  %v140 = vpack.c.b16 %v131, %v130
  %v141 = vpack.c.b16 %v133, %v132
  %150 = vmatprep.subr.bf16.mxu0 0
  %151 = vmatpush1.bf16.msra.mxu0 %v134
  %152 = vmatprep.subr.bf16.mxu0 0
  %153 = vmatpush1.bf16.msra.mxu0 %v135
  %154 = vmatprep.subr.bf16.mxu0 0
  %155 = vmatpush1.bf16.msra.mxu0 %v136
  %156 = vmatprep.subr.bf16.mxu0 0
  %157 = vmatpush1.bf16.msra.mxu0 %v137
  %158 = vmatprep.subr.bf16.mxu0 0
  %159 = vmatpush1.bf16.msra.mxu0 %v138
  %160 = vmatprep.subr.bf16.mxu0 0
  %161 = vmatpush1.bf16.msra.mxu0 %v139
  %162 = vmatprep.subr.bf16.mxu0 0
  %163 = vmatpush1.bf16.msra.mxu0 %v140
  %164 = vmatprep.subr.bf16.mxu0 0
  %165 = vmatpush1.bf16.msra.mxu0 %v141
  %166 = vmatprep.subr.bf16.mxu0 0
  %167 = vmatpush1.bf16.msra.mxu0 0
  %168 = vmatprep.subr.bf16.mxu0 0
  %169 = vmatpush1.bf16.msra.mxu0 0
  %170 = vmatprep.subr.bf16.mxu0 0
  %171 = vmatpush1.bf16.msra.mxu0 0
  %172 = vmatprep.subr.bf16.mxu0 0
  %173 = vmatpush1.bf16.msra.mxu0 0
  %174 = vmatprep.subr.bf16.mxu0 0
  %175 = vmatpush1.bf16.msra.mxu0 0
  %176 = vmatprep.subr.bf16.mxu0 0
  %177 = vmatpush1.bf16.msra.mxu0 0
  %178 = vmatprep.subr.bf16.mxu0 0
  %179 = vmatpush1.bf16.msra.mxu0 0
  %180 = vmatprep.subr.bf16.mxu0 0
  %181 = vmatpush1.bf16.msra.mxu0 0
  %182 = vmatprep.mubr.bf16.mxu0 0
  %183 = vmatmul.mubr.bf16.gmra.mrb[0].mxu0 %v86
  %v184 = vpop.f32.mrb[0].mxu0
  %v185 = vadd.f32 %v52, %v184
  %v186 = vpop.f32.mrb[0].mxu0
  %v187 = vpop.f32.mrb[0].mxu0
  %v188 = vadd.f32 %v52, %v187
  %v189 = vpop.f32.mrb[0].mxu0
  %190 = vmatprep.mubr.bf16.mxu0 0
  %191 = vmatmul.mubr.bf16.gmra.mrb[0].mxu0 %v87
  %v192 = vpop.f32.mrb[0].mxu0
  %v193 = vadd.f32 %v52, %v192
  %v194 = vpop.f32.mrb[0].mxu0
  %v195 = vpop.f32.mrb[0].mxu0
  %v196 = vadd.f32 %v52, %v195
  %v197 = vpop.f32.mrb[0].mxu0
  %198 = vmatprep.mubr.bf16.mxu0 0
  %199 = vmatmul.mubr.bf16.gmra.mrb[0].mxu0 %v88
  %v200 = vpop.f32.mrb[0].mxu0
  %v201 = vadd.f32 %v52, %v200
  %v202 = vpop.f32.mrb[0].mxu0
  %v203 = vpop.f32.mrb[0].mxu0
  %v204 = vadd.f32 %v52, %v203
  %v205 = vpop.f32.mrb[0].mxu0
  %206 = vmatprep.mubr.bf16.mxu0 0
  %207 = vmatmul.mubr.bf16.gmra.mrb[0].mxu0 %v89
  %v208 = vpop.f32.mrb[0].mxu0
  %v209 = vadd.f32 %v52, %v208
  %v210 = vpop.f32.mrb[0].mxu0
  %v211 = vpop.f32.mrb[0].mxu0
  %v212 = vadd.f32 %v52, %v211
  %v213 = vpop.f32.mrb[0].mxu0
  %214 = vmatprep.mubr.bf16.mxu0 0
  %215 = vmatmul.mubr.bf16.gmra.mrb[0].mxu0 %v90
  %v216 = vpop.f32.mrb[0].mxu0
  %v217 = vadd.f32 %v52, %v216
  %v218 = vpop.f32.mrb[0].mxu0
  %v219 = vpop.f32.mrb[0].mxu0
  %v220 = vadd.f32 %v52, %v219
  %v221 = vpop.f32.mrb[0].mxu0
  %222 = vmatprep.mubr.bf16.mxu0 0
  %223 = vmatmul.mubr.bf16.gmra.mrb[0].mxu0 %v91
  %v224 = vpop.f32.mrb[0].mxu0
  %v225 = vadd.f32 %v52, %v224
  %v226 = vpop.f32.mrb[0].mxu0
  %v227 = vpop.f32.mrb[0].mxu0
  %v228 = vadd.f32 %v52, %v227
  %v229 = vpop.f32.mrb[0].mxu0
  %230 = vmatprep.mubr.bf16.mxu0 0
  %231 = vmatmul.mubr.bf16.gmra.mrb[0].mxu0 %v92
  %v232 = vpop.f32.mrb[0].mxu0
  %v233 = vadd.f32 %v52, %v232
  %v234 = vpop.f32.mrb[0].mxu0
  %v235 = vpop.f32.mrb[0].mxu0
  %v236 = vadd.f32 %v52, %v235
  %v237 = vpop.f32.mrb[0].mxu0
  %238 = vmatprep.mubr.bf16.mxu0 0
  %239 = vmatmul.mubr.bf16.gmra.mrb[0].mxu0 %v93
  %v240 = vpop.f32.mrb[0].mxu0
  %v241 = vadd.f32 %v52, %v240
  %v242 = vpop.f32.mrb[0].mxu0
  %v243 = vpop.f32.mrb[0].mxu0
  %v244 = vadd.f32 %v52, %v243
  %v245 = vpop.f32.mrb[0].mxu0
  %246 = vdwg.mxu0
  %vm247 = vcmp.gt.f32.partialorder %v185, 0.0
  %vm248 = vcmp.gt.f32.partialorder %v188, 0.0
  %vm249 = vcmp.gt.f32.partialorder %v193, 0.0
  %vm250 = vcmp.gt.f32.partialorder %v196, 0.0
  %vm251 = vcmp.gt.f32.partialorder %v201, 0.0
  %vm252 = vcmp.gt.f32.partialorder %v204, 0.0
  %vm253 = vcmp.gt.f32.partialorder %v209, 0.0
  %vm254 = vcmp.gt.f32.partialorder %v212, 0.0
  %vm255 = vcmp.gt.f32.partialorder %v217, 0.0
  %vm256 = vcmp.gt.f32.partialorder %v220, 0.0
  %vm257 = vcmp.gt.f32.partialorder %v225, 0.0
  %vm258 = vcmp.gt.f32.partialorder %v228, 0.0
  %vm259 = vcmp.gt.f32.partialorder %v233, 0.0
  %vm260 = vcmp.gt.f32.partialorder %v236, 0.0
  %vm261 = vcmp.gt.f32.partialorder %v241, 0.0
  %vm262 = vcmp.gt.f32.partialorder %v244, 0.0
  %v263 = vmul.f32 %v185, 1.442695
  %v264 = vpow.pop %v263
  %v265 = vmul.f32 %v188, 1.442695
  %v266 = vpow.pop %v265
  %v267 = vmul.f32 %v193, 1.442695
  %v268 = vpow.pop %v267
  %v269 = vmul.f32 %v196, 1.442695
  %v270 = vpow.pop %v269
  %v271 = vmul.f32 %v201, 1.442695
  %v272 = vpow.pop %v271
  %v273 = vmul.f32 %v204, 1.442695
  %v274 = vpow.pop %v273
  %v275 = vmul.f32 %v209, 1.442695
  %v276 = vpow.pop %v275
  %v277 = vmul.f32 %v212, 1.442695
  %v278 = vpow.pop %v277
  %v279 = vmul.f32 %v217, 1.442695
  %v280 = vpow.pop %v279
  %v281 = vmul.f32 %v220, 1.442695
  %v282 = vpow.pop %v281
  %v283 = vmul.f32 %v225, 1.442695
  %v284 = vpow.pop %v283
  %v285 = vmul.f32 %v228, 1.442695
  %v286 = vpow.pop %v285
  %v287 = vmul.f32 %v233, 1.442695
  %v288 = vpow.pop %v287
  %v289 = vmul.f32 %v236, 1.442695
  %v290 = vpow.pop %v289
  %v291 = vmul.f32 %v241, 1.442695
  %v292 = vpow.pop %v291
  %v293 = vmul.f32 %v244, 1.442695
  %v294 = vpow.pop %v293
  %v295 = vsub.f32 %v264, 1.0
  %v296 = vsub.f32 %v266, 1.0
  %v297 = vsub.f32 %v268, 1.0
  %v298 = vsub.f32 %v270, 1.0
  %v299 = vsub.f32 %v272, 1.0
  %v300 = vsub.f32 %v274, 1.0
  %v301 = vsub.f32 %v276, 1.0
  %v302 = vsub.f32 %v278, 1.0
  %v303 = vsub.f32 %v280, 1.0
  %v304 = vsub.f32 %v282, 1.0
  %v305 = vsub.f32 %v284, 1.0
  %v306 = vsub.f32 %v286, 1.0
  %v307 = vsub.f32 %v288, 1.0
  %v308 = vsub.f32 %v290, 1.0
  %v309 = vsub.f32 %v292, 1.0
  %v310 = vsub.f32 %v294, 1.0
  %v311 = vsel %vm247, %v185, %v295
  %v312 = vsel %vm248, %v188, %v296
  %v313 = vsel %vm249, %v193, %v297
  %v314 = vsel %vm250, %v196, %v298
  %v315 = vsel %vm251, %v201, %v299
  %v316 = vsel %vm252, %v204, %v300
  %v317 = vsel %vm253, %v209, %v301
  %v318 = vsel %vm254, %v212, %v302
  %v319 = vsel %vm255, %v217, %v303
  %v320 = vsel %vm256, %v220, %v304
  %v321 = vsel %vm257, %v225, %v305
  %v322 = vsel %vm258, %v228, %v306
  %v323 = vsel %vm259, %v233, %v307
  %v324 = vsel %vm260, %v236, %v308
  %v325 = vsel %vm261, %v241, %v309
  %v326 = vsel %vm262, %v244, %v310
  %v327 = vpack.c.bf16 %v312, %v311
  %v328 = vpack.c.bf16 %v314, %v313
  %v329 = vpack.c.bf16 %v316, %v315
  %v330 = vpack.c.bf16 %v318, %v317
  %v331 = vpack.c.bf16 %v320, %v319
  %v332 = vpack.c.bf16 %v322, %v321
  %v333 = vpack.c.bf16 %v324, %v323
  %v334 = vpack.c.bf16 %v326, %v325
  %v343 = vunpack.c.l.b16 %v327
  %v344 = vunpack.c.h.b16 %v327
  %v345 = vunpack.c.l.b16 %v328
  %v346 = vunpack.c.h.b16 %v328
  %v347 = vunpack.c.l.b16 %v329
  %v348 = vunpack.c.h.b16 %v329
  %v349 = vunpack.c.l.b16 %v330
  %v350 = vunpack.c.h.b16 %v330
  %v351 = vunpack.c.l.b16 %v331
  %v352 = vunpack.c.h.b16 %v331
  %v353 = vunpack.c.l.b16 %v332
  %v354 = vunpack.c.h.b16 %v332
  %v355 = vunpack.c.l.b16 %v333
  %v356 = vunpack.c.h.b16 %v333
  %v357 = vunpack.c.l.b16 %v334
  %v358 = vunpack.c.h.b16 %v334
  %v359 = vpack.c.b16 %v343, %v343
  %v360 = vpack.c.b16 %v344, %v344
  %v361 = vpack.c.b16 %v345, %v345
  %v362 = vpack.c.b16 %v346, %v346
  %v363 = vpack.c.b16 %v347, %v347
  %v364 = vpack.c.b16 %v348, %v348
  %v365 = vpack.c.b16 %v349, %v349
  %v366 = vpack.c.b16 %v350, %v350
  %v367 = vpack.c.b16 %v351, %v351
  %v368 = vpack.c.b16 %v352, %v352
  %v369 = vpack.c.b16 %v353, %v353
  %v370 = vpack.c.b16 %v354, %v354
  %v371 = vpack.c.b16 %v355, %v355
  %v372 = vpack.c.b16 %v356, %v356
  %v373 = vpack.c.b16 %v357, %v357
  %v374 = vpack.c.b16 %v358, %v358
  %vm391 = vcmask 257024
  %392 = vst.msk [vmem:[%s3] sm:$0xf] %vm391, %v359
  %393 = vst.msk [vmem:[%s3 + $0x4] sm:$0xf] %vm391, %v360
  %394 = vst.msk [vmem:[%s3 + $0x8] sm:$0xf] %vm391, %v361
  %395 = vst.msk [vmem:[%s3 + $0xc] sm:$0xf] %vm391, %v362
  %396 = vst.msk [vmem:[%s3 + $0x10] sm:$0xf] %vm391, %v363
  %397 = vst.msk [vmem:[%s3 + $0x14] sm:$0xf] %vm391, %v364
  %398 = vst.msk [vmem:[%s3 + $0x18] sm:$0xf] %vm391, %v365
  %399 = vst.msk [vmem:[%s3 + $0x1c] sm:$0xf] %vm391, %v366
  %400 = vst.msk [vmem:[%s3 + $0x20] sm:$0xf] %vm391, %v367
  %401 = vst.msk [vmem:[%s3 + $0x24] sm:$0xf] %vm391, %v368
  %402 = vst.msk [vmem:[%s3 + $0x28] sm:$0xf] %vm391, %v369
  %403 = vst.msk [vmem:[%s3 + $0x2c] sm:$0xf] %vm391, %v370
  %404 = vst.msk [vmem:[%s3 + $0x30] sm:$0xf] %vm391, %v371
  %405 = vst.msk [vmem:[%s3 + $0x34] sm:$0xf] %vm391, %v372
  %406 = vst.msk [vmem:[%s3 + $0x38] sm:$0xf] %vm391, %v373
  %407 = vst.msk [vmem:[%s3 + $0x3c] sm:$0xf] %vm391, %v374
  // Predicated region
  $region14: #{discriminator_forward.5} parent=0 // pred_check
    _
  $region15: #{discriminator_forward.5} parent=0 // pred_check_branch
    %409 = sbr.rel (0) target = $region17
  $region16: #{discriminator_forward.5} parent=0 // pred_region
    _
  $region17: #{discriminator_forward.5} parent=0 // pred_fallthru
    _
  // Predicated region
  $region18: #{discriminator_forward.5} parent=0 // pred_check
    _
  $region19: #{discriminator_forward.5} parent=0 // pred_check_branch
    %411 = sbr.rel (0) target = $region21
  $region20: #{discriminator_forward.5} parent=0 // pred_region
    _
  $region21: #{discriminator_forward.5} parent=0 // pred_fallthru
    _

// kernel: discriminator_forward.6
$region0: #{discriminator_forward.6}
  #allocation0 [shape = 'u32[]', space=smem, size = 0x4, offset = 0x4, fixed_abs, tag = 'smem constant byte address 0x4 - core index']
  #allocation1 [shape = 'u32[144,128]{1,0:T(1,128)}', space=vmem, size = 0x12000, scoped, tag = 'internal scratch']
  %s0 = inlined_call_operand.vmem [shape: bf16[32,800], index: 0, kind: input, shape index: {}]
  %s1 = inlined_call_operand.vmem [shape: bf16[800,64], index: 1, kind: input, shape index: {}]
  %s2 = inlined_call_operand.vmem [shape: f32[1,64], index: 2, kind: input, shape index: {}]
  %s3 = inlined_call_operand.vmem [shape: bf16[32,64], index: 3, kind: output, shape index: {}]
  %s4 = sld [smem:[#allocation0]]
  $region22: #{discriminator_forward.6} parent=0
    _
  %s6 = ssub.s32 1, %s4
  %s7 = scalar_select 0, %s6, %s4
  // Predicated region
  $region2: #{discriminator_forward.6} parent=0 // pred_check
    _
  $region3: #{discriminator_forward.6} parent=0 // pred_check_branch
    %9 = sbr.rel (0) target = $region5
  $region4: #{discriminator_forward.6} parent=0 // pred_region
    _
  $region5: #{discriminator_forward.6} parent=0 // pred_fallthru
    _
  // Predicated region
  $region6: #{discriminator_forward.6} parent=0 // pred_check
    _
  $region7: #{discriminator_forward.6} parent=0 // pred_check_branch
    %11 = sbr.rel (0) target = $region9
  $region8: #{discriminator_forward.6} parent=0 // pred_region
    _
  $region9: #{discriminator_forward.6} parent=0 // pred_fallthru
    _
  // Predicated region
  $region10: #{discriminator_forward.6} parent=0 // pred_check
    _
  $region11: #{discriminator_forward.6} parent=0 // pred_check_branch
    %13 = sbr.rel (0) target = $region13
  $region12: #{discriminator_forward.6} parent=0 // pred_region
    _
  $region13: #{discriminator_forward.6} parent=0 // pred_fallthru
    _
  %v15 = vld [vmem:[%s0] sm:$0xff]
  %v16 = vld [vmem:[%s0 + $0x8] sm:$0xff]
  %v17 = vld [vmem:[%s0 + $0x10] sm:$0xff]
  %v18 = vld [vmem:[%s0 + $0x18] sm:$0xf]
  %v19 = vld [vmem:[%s0 + $0x1c] sm:$0xff]
  %v20 = vld [vmem:[%s0 + $0x24] sm:$0xff]
  %v21 = vld [vmem:[%s0 + $0x2c] sm:$0xff]
  %v22 = vld [vmem:[%s0 + $0x34] sm:$0xf]
  %v23 = vld [vmem:[%s0 + $0x38] sm:$0xff]
  %v24 = vld [vmem:[%s0 + $0x40] sm:$0xff]
  %v25 = vld [vmem:[%s0 + $0x48] sm:$0xff]
  %v26 = vld [vmem:[%s0 + $0x50] sm:$0xf]
  %v27 = vld [vmem:[%s0 + $0x54] sm:$0xff]
  %v28 = vld [vmem:[%s0 + $0x5c] sm:$0xff]
  %v29 = vld [vmem:[%s0 + $0x64] sm:$0xff]
  %v30 = vld [vmem:[%s0 + $0x6c] sm:$0xf]
  %v31 = vld [vmem:[%s1] sm:$0xf]
  %v32 = vld [vmem:[%s1 + $0x4] sm:$0xf]
  %v33 = vld [vmem:[%s1 + $0x8] sm:$0xf]
  %v34 = vld [vmem:[%s1 + $0xc] sm:$0xf]
  %v35 = vld [vmem:[%s1 + $0x10] sm:$0xf]
  %v36 = vld [vmem:[%s1 + $0x14] sm:$0xf]
  %v37 = vld [vmem:[%s1 + $0x18] sm:$0xf]
  %v38 = vld [vmem:[%s1 + $0x1c] sm:$0xf]
  %v39 = vld [vmem:[%s1 + $0x20] sm:$0xf]
  %v40 = vld [vmem:[%s1 + $0x24] sm:$0xf]
  %v41 = vld [vmem:[%s1 + $0x28] sm:$0xf]
  %v42 = vld [vmem:[%s1 + $0x2c] sm:$0xf]
  %v43 = vld [vmem:[%s1 + $0x30] sm:$0xf]
  %v44 = vld [vmem:[%s1 + $0x34] sm:$0xf]
  %v45 = vld [vmem:[%s1 + $0x38] sm:$0xf]
  %v46 = vld [vmem:[%s1 + $0x3c] sm:$0xf]
  %v47 = vld [vmem:[%s1 + $0x40] sm:$0xf]
  %v48 = vld [vmem:[%s1 + $0x44] sm:$0xf]
  %v49 = vld [vmem:[%s1 + $0x48] sm:$0xf]
  %v50 = vld [vmem:[%s1 + $0x4c] sm:$0xf]
  %v51 = vld [vmem:[%s1 + $0x50] sm:$0xf]
  %v52 = vld [vmem:[%s1 + $0x54] sm:$0xf]
  %v53 = vld [vmem:[%s1 + $0x58] sm:$0xf]
  %v54 = vld [vmem:[%s1 + $0x5c] sm:$0xf]
  %v55 = vld [vmem:[%s1 + $0x60] sm:$0xf]
  %v56 = vld [vmem:[%s1 + $0x64] sm:$0xf]
  %v57 = vld [vmem:[%s1 + $0x68] sm:$0xf]
  %v58 = vld [vmem:[%s1 + $0x6c] sm:$0xf]
  %v59 = vld [vmem:[%s1 + $0x70] sm:$0xf]
  %v60 = vld [vmem:[%s1 + $0x74] sm:$0xf]
  %v61 = vld [vmem:[%s1 + $0x78] sm:$0xf]
  %v62 = vld [vmem:[%s1 + $0x7c] sm:$0xf]
  %v63 = vld [vmem:[%s1 + $0x80] sm:$0xf]
  %v64 = vld [vmem:[%s1 + $0x84] sm:$0xf]
  %v65 = vld [vmem:[%s1 + $0x88] sm:$0xf]
  %v66 = vld [vmem:[%s1 + $0x8c] sm:$0xf]
  %v67 = vld [vmem:[%s1 + $0x90] sm:$0xf]
  %v68 = vld [vmem:[%s1 + $0x94] sm:$0xf]
  %v69 = vld [vmem:[%s1 + $0x98] sm:$0xf]
  %v70 = vld [vmem:[%s1 + $0x9c] sm:$0xf]
  %v71 = vld [vmem:[%s1 + $0xa0] sm:$0xf]
  %v72 = vld [vmem:[%s1 + $0xa4] sm:$0xf]
  %v73 = vld [vmem:[%s1 + $0xa8] sm:$0xf]
  %v74 = vld [vmem:[%s1 + $0xac] sm:$0xf]
  %v75 = vld [vmem:[%s1 + $0xb0] sm:$0xf]
  %v76 = vld [vmem:[%s1 + $0xb4] sm:$0xf]
  %v77 = vld [vmem:[%s1 + $0xb8] sm:$0xf]
  %v78 = vld [vmem:[%s1 + $0xbc] sm:$0xf]
  %v79 = vld [vmem:[%s1 + $0xc0] sm:$0xf]
  %v80 = vld [vmem:[%s1 + $0xc4] sm:$0xf]
  %v81 = vld [vmem:[%s1 + $0xc8] sm:$0xf]
  %v82 = vld [vmem:[%s1 + $0xcc] sm:$0xf]
  %v83 = vld [vmem:[%s1 + $0xd0] sm:$0xf]
  %v84 = vld [vmem:[%s1 + $0xd4] sm:$0xf]
  %v85 = vld [vmem:[%s1 + $0xd8] sm:$0xf]
  %v86 = vld [vmem:[%s1 + $0xdc] sm:$0xf]
  %v87 = vld [vmem:[%s1 + $0xe0] sm:$0xf]
  %v88 = vld [vmem:[%s1 + $0xe4] sm:$0xf]
  %v89 = vld [vmem:[%s1 + $0xe8] sm:$0xf]
  %v90 = vld [vmem:[%s1 + $0xec] sm:$0xf]
  %v91 = vld [vmem:[%s1 + $0xf0] sm:$0xf]
  %v92 = vld [vmem:[%s1 + $0xf4] sm:$0xf]
  %v93 = vld [vmem:[%s1 + $0xf8] sm:$0xf]
  %v94 = vld [vmem:[%s1 + $0xfc] sm:$0xf]
  %v95 = vld [vmem:[%s1 + $0x100] sm:$0xf]
  %v96 = vld [vmem:[%s1 + $0x104] sm:$0xf]
  %v97 = vld [vmem:[%s1 + $0x108] sm:$0xf]
  %v98 = vld [vmem:[%s1 + $0x10c] sm:$0xf]
  %v99 = vld [vmem:[%s1 + $0x110] sm:$0xf]
  %v100 = vld [vmem:[%s1 + $0x114] sm:$0xf]
  %v101 = vld [vmem:[%s1 + $0x118] sm:$0xf]
  %v102 = vld [vmem:[%s1 + $0x11c] sm:$0xf]
  %v103 = vld [vmem:[%s1 + $0x120] sm:$0xf]
  %v104 = vld [vmem:[%s1 + $0x124] sm:$0xf]
  %v105 = vld [vmem:[%s1 + $0x128] sm:$0xf]
  %v106 = vld [vmem:[%s1 + $0x12c] sm:$0xf]
  %v107 = vld [vmem:[%s1 + $0x130] sm:$0xf]
  %v108 = vld [vmem:[%s1 + $0x134] sm:$0xf]
  %v109 = vld [vmem:[%s1 + $0x138] sm:$0xf]
  %v110 = vld [vmem:[%s1 + $0x13c] sm:$0xf]
  %v111 = vld [vmem:[%s1 + $0x140] sm:$0xf]
  %v112 = vld [vmem:[%s1 + $0x144] sm:$0xf]
  %v113 = vld [vmem:[%s1 + $0x148] sm:$0xf]
  %v114 = vld [vmem:[%s1 + $0x14c] sm:$0xf]
  %v115 = vld [vmem:[%s1 + $0x150] sm:$0xf]
  %v116 = vld [vmem:[%s1 + $0x154] sm:$0xf]
  %v117 = vld [vmem:[%s1 + $0x158] sm:$0xf]
  %v118 = vld [vmem:[%s1 + $0x15c] sm:$0xf]
  %v119 = vld [vmem:[%s1 + $0x160] sm:$0xf]
  %v120 = vld [vmem:[%s1 + $0x164] sm:$0xf]
  %v121 = vld [vmem:[%s1 + $0x168] sm:$0xf]
  %v122 = vld [vmem:[%s1 + $0x16c] sm:$0xf]
  %v123 = vld [vmem:[%s1 + $0x170] sm:$0xf]
  %v124 = vld [vmem:[%s1 + $0x174] sm:$0xf]
  %v125 = vld [vmem:[%s1 + $0x178] sm:$0xf]
  %v126 = vld [vmem:[%s1 + $0x17c] sm:$0xf]
  %v127 = vld [vmem:[%s1 + $0x180] sm:$0xf]
  %v128 = vld [vmem:[%s1 + $0x184] sm:$0xf]
  %v129 = vld [vmem:[%s1 + $0x188] sm:$0xf]
  %v130 = vld [vmem:[%s1 + $0x18c] sm:$0xf]
  %v131 = vld [vmem:[%s2] sm:$0x1]
  %v133 = vlaneseq
  %v134 = vshrl.u32 %v133, 7
  %v135 = vsub.s32 0, %v134
  %v136 = vrot.slane %v131, %v135
  %v154 = vunpack.c.l.b16 %v15
  %v155 = vunpack.c.h.b16 %v15
  %v156 = vunpack.c.l.b16 %v16
  %v157 = vunpack.c.h.b16 %v16
  %v158 = vunpack.c.l.b16 %v17
  %v159 = vunpack.c.h.b16 %v17
  %v160 = vunpack.c.l.b16 %v18
  %v161 = vunpack.c.l.b16 %v19
  %v162 = vunpack.c.h.b16 %v19
  %v163 = vunpack.c.l.b16 %v20
  %v164 = vunpack.c.h.b16 %v20
  %v165 = vunpack.c.l.b16 %v21
  %v166 = vunpack.c.h.b16 %v21
  %v167 = vunpack.c.l.b16 %v22
  %v168 = vunpack.c.l.b16 %v23
  %v169 = vunpack.c.h.b16 %v23
  %v170 = vunpack.c.l.b16 %v24
  %v171 = vunpack.c.h.b16 %v24
  %v172 = vunpack.c.l.b16 %v25
  %v173 = vunpack.c.h.b16 %v25
  %v174 = vunpack.c.l.b16 %v26
  %v175 = vunpack.c.l.b16 %v27
  %v176 = vunpack.c.h.b16 %v27
  %v177 = vunpack.c.l.b16 %v28
  %v178 = vunpack.c.h.b16 %v28
  %v179 = vunpack.c.l.b16 %v29
  %v180 = vunpack.c.h.b16 %v29
  %v181 = vunpack.c.l.b16 %v30
  %v182 = vpack.c.b16 %v161, %v154
  %v183 = vpack.c.b16 %v162, %v155
  %v184 = vpack.c.b16 %v163, %v156
  %v185 = vpack.c.b16 %v164, %v157
  %v186 = vpack.c.b16 %v165, %v158
  %v187 = vpack.c.b16 %v166, %v159
  %v188 = vpack.c.b16 %v167, %v160
  %v189 = vpack.c.b16 %v175, %v168
  %v190 = vpack.c.b16 %v176, %v169
  %v191 = vpack.c.b16 %v177, %v170
  %v192 = vpack.c.b16 %v178, %v171
  %v193 = vpack.c.b16 %v179, %v172
  %v194 = vpack.c.b16 %v180, %v173
  %v195 = vpack.c.b16 %v181, %v174
  %v308 = vunpack.c.l.b16 %v31
  %v309 = vunpack.c.l.b16 %v32
  %v310 = vunpack.c.l.b16 %v33
  %v311 = vunpack.c.l.b16 %v34
  %v312 = vunpack.c.l.b16 %v35
  %v313 = vunpack.c.l.b16 %v36
  %v314 = vunpack.c.l.b16 %v37
  %v315 = vunpack.c.l.b16 %v38
  %v316 = vunpack.c.l.b16 %v39
  %v317 = vunpack.c.l.b16 %v40
  %v318 = vunpack.c.l.b16 %v41
  %v319 = vunpack.c.l.b16 %v42
  %v320 = vunpack.c.l.b16 %v43
  %v321 = vunpack.c.l.b16 %v44
  %v322 = vunpack.c.l.b16 %v45
  %v323 = vunpack.c.l.b16 %v46
  %v324 = vunpack.c.l.b16 %v47
  %v325 = vunpack.c.l.b16 %v48
  %v326 = vunpack.c.l.b16 %v49
  %v327 = vunpack.c.l.b16 %v50
  %v328 = vunpack.c.l.b16 %v51
  %v329 = vunpack.c.l.b16 %v52
  %v330 = vunpack.c.l.b16 %v53
  %v331 = vunpack.c.l.b16 %v54
  %v332 = vunpack.c.l.b16 %v55
  %v333 = vunpack.c.l.b16 %v56
  %v334 = vunpack.c.l.b16 %v57
  %v335 = vunpack.c.l.b16 %v58
  %v336 = vunpack.c.l.b16 %v59
  %v337 = vunpack.c.l.b16 %v60
  %v338 = vunpack.c.l.b16 %v61
  %v339 = vunpack.c.l.b16 %v62
  %v340 = vunpack.c.l.b16 %v63
  %v341 = vunpack.c.l.b16 %v64
  %v342 = vunpack.c.l.b16 %v65
  %v343 = vunpack.c.l.b16 %v66
  %v344 = vunpack.c.l.b16 %v67
  %v345 = vunpack.c.l.b16 %v68
  %v346 = vunpack.c.l.b16 %v69
  %v347 = vunpack.c.l.b16 %v70
  %v348 = vunpack.c.l.b16 %v71
  %v349 = vunpack.c.l.b16 %v72
  %v350 = vunpack.c.l.b16 %v73
  %v351 = vunpack.c.l.b16 %v74
  %v352 = vunpack.c.l.b16 %v75
  %v353 = vunpack.c.l.b16 %v76
  %v354 = vunpack.c.l.b16 %v77
  %v355 = vunpack.c.l.b16 %v78
  %v356 = vunpack.c.l.b16 %v79
  %v357 = vunpack.c.l.b16 %v80
  %v358 = vunpack.c.l.b16 %v81
  %v359 = vunpack.c.l.b16 %v82
  %v360 = vunpack.c.l.b16 %v83
  %v361 = vunpack.c.l.b16 %v84
  %v362 = vunpack.c.l.b16 %v85
  %v363 = vunpack.c.l.b16 %v86
  %v364 = vunpack.c.l.b16 %v87
  %v365 = vunpack.c.l.b16 %v88
  %v366 = vunpack.c.l.b16 %v89
  %v367 = vunpack.c.l.b16 %v90
  %v368 = vunpack.c.l.b16 %v91
  %v369 = vunpack.c.l.b16 %v92
  %v370 = vunpack.c.l.b16 %v93
  %v371 = vunpack.c.l.b16 %v94
  %v372 = vunpack.c.l.b16 %v95
  %v373 = vunpack.c.l.b16 %v96
  %v374 = vunpack.c.l.b16 %v97
  %v375 = vunpack.c.l.b16 %v98
  %v376 = vunpack.c.l.b16 %v99
  %v377 = vunpack.c.l.b16 %v100
  %v378 = vunpack.c.l.b16 %v101
  %v379 = vunpack.c.l.b16 %v102
  %v380 = vunpack.c.l.b16 %v103
  %v381 = vunpack.c.l.b16 %v104
  %v382 = vunpack.c.l.b16 %v105
  %v383 = vunpack.c.l.b16 %v106
  %v384 = vunpack.c.l.b16 %v107
  %v385 = vunpack.c.l.b16 %v108
  %v386 = vunpack.c.l.b16 %v109
  %v387 = vunpack.c.l.b16 %v110
  %v388 = vunpack.c.l.b16 %v111
  %v389 = vunpack.c.l.b16 %v112
  %v390 = vunpack.c.l.b16 %v113
  %v391 = vunpack.c.l.b16 %v114
  %v392 = vunpack.c.l.b16 %v115
  %v393 = vunpack.c.l.b16 %v116
  %v394 = vunpack.c.l.b16 %v117
  %v395 = vunpack.c.l.b16 %v118
  %v396 = vunpack.c.l.b16 %v119
  %v397 = vunpack.c.l.b16 %v120
  %v398 = vunpack.c.l.b16 %v121
  %v399 = vunpack.c.l.b16 %v122
  %v400 = vunpack.c.l.b16 %v123
  %v401 = vunpack.c.l.b16 %v124
  %v402 = vunpack.c.l.b16 %v125
  %v403 = vunpack.c.l.b16 %v126
  %v404 = vunpack.c.l.b16 %v127
  %v405 = vunpack.c.l.b16 %v128
  %v406 = vunpack.c.l.b16 %v129
  %v407 = vunpack.c.l.b16 %v130
  %v408 = vpack.c.b16 %v309, %v308
  %v409 = vpack.c.b16 %v311, %v310
  %v410 = vpack.c.b16 %v313, %v312
  %v411 = vpack.c.b16 %v315, %v314
  %v412 = vpack.c.b16 %v317, %v316
  %v413 = vpack.c.b16 %v319, %v318
  %v414 = vpack.c.b16 %v321, %v320
  %v415 = vpack.c.b16 %v323, %v322
  %v416 = vpack.c.b16 %v325, %v324
  %v417 = vpack.c.b16 %v327, %v326
  %v418 = vpack.c.b16 %v329, %v328
  %v419 = vpack.c.b16 %v331, %v330
  %v420 = vpack.c.b16 %v333, %v332
  %v421 = vpack.c.b16 %v335, %v334
  %v422 = vpack.c.b16 %v337, %v336
  %v423 = vpack.c.b16 %v339, %v338
  %v424 = vpack.c.b16 %v341, %v340
  %v425 = vpack.c.b16 %v343, %v342
  %v426 = vpack.c.b16 %v345, %v344
  %v427 = vpack.c.b16 %v347, %v346
  %v428 = vpack.c.b16 %v349, %v348
  %v429 = vpack.c.b16 %v351, %v350
  %v430 = vpack.c.b16 %v353, %v352
  %v431 = vpack.c.b16 %v355, %v354
  %v432 = vpack.c.b16 %v357, %v356
  %v433 = vpack.c.b16 %v359, %v358
  %v434 = vpack.c.b16 %v361, %v360
  %v435 = vpack.c.b16 %v363, %v362
  %v436 = vpack.c.b16 %v365, %v364
  %v437 = vpack.c.b16 %v367, %v366
  %v438 = vpack.c.b16 %v369, %v368
  %v439 = vpack.c.b16 %v371, %v370
  %v440 = vpack.c.b16 %v373, %v372
  %v441 = vpack.c.b16 %v375, %v374
  %v442 = vpack.c.b16 %v377, %v376
  %v443 = vpack.c.b16 %v379, %v378
  %v444 = vpack.c.b16 %v381, %v380
  %v445 = vpack.c.b16 %v383, %v382
  %v446 = vpack.c.b16 %v385, %v384
  %v447 = vpack.c.b16 %v387, %v386
  %v448 = vpack.c.b16 %v389, %v388
  %v449 = vpack.c.b16 %v391, %v390
  %v450 = vpack.c.b16 %v393, %v392
  %v451 = vpack.c.b16 %v395, %v394
  %v452 = vpack.c.b16 %v397, %v396
  %v453 = vpack.c.b16 %v399, %v398
  %v454 = vpack.c.b16 %v401, %v400
  %v455 = vpack.c.b16 %v403, %v402
  %v456 = vpack.c.b16 %v405, %v404
  %v457 = vpack.c.b16 %v407, %v406
  %vm508 = vcmask 261120
  %v510 = vsel %vm508, %v188, 0
  %v513 = vsel %vm508, %v195, 0
  %515 = vmatprep.subr.bf16.mxu0 0
  %516 = vmatpush1.bf16.msra.mxu0 %v408
  %517 = vmatprep.subr.bf16.mxu0 0
  %518 = vmatpush1.bf16.msra.mxu0 %v409
  %519 = vmatprep.subr.bf16.mxu0 0
  %520 = vmatpush1.bf16.msra.mxu0 %v410
  %521 = vmatprep.subr.bf16.mxu0 0
  %522 = vmatpush1.bf16.msra.mxu0 %v411
  %523 = vmatprep.subr.bf16.mxu0 0
  %524 = vmatpush1.bf16.msra.mxu0 %v412
  %525 = vmatprep.subr.bf16.mxu0 0
  %526 = vmatpush1.bf16.msra.mxu0 %v413
  %527 = vmatprep.subr.bf16.mxu0 0
  %528 = vmatpush1.bf16.msra.mxu0 %v414
  %529 = vmatprep.subr.bf16.mxu0 0
  %530 = vmatpush1.bf16.msra.mxu0 %v415
  %531 = vmatprep.subr.bf16.mxu0 0
  %532 = vmatpush1.bf16.msra.mxu0 %v416
  %533 = vmatprep.subr.bf16.mxu0 0
  %534 = vmatpush1.bf16.msra.mxu0 %v417
  %535 = vmatprep.subr.bf16.mxu0 0
  %536 = vmatpush1.bf16.msra.mxu0 %v418
  %537 = vmatprep.subr.bf16.mxu0 0
  %538 = vmatpush1.bf16.msra.mxu0 %v419
  %539 = vmatprep.subr.bf16.mxu0 0
  %540 = vmatpush1.bf16.msra.mxu0 %v420
  %541 = vmatprep.subr.bf16.mxu0 0
  %542 = vmatpush1.bf16.msra.mxu0 %v421
  %543 = vmatprep.subr.bf16.mxu0 0
  %544 = vmatpush1.bf16.msra.mxu0 %v422
  %545 = vmatprep.subr.bf16.mxu0 0
  %546 = vmatpush1.bf16.msra.mxu0 %v423
  %547 = vmatprep.mubr.bf16.mxu0 %v183
  %548 = vmatmul.mubr.bf16.gmra.mrb[0].mxu0 %v182
  %v549 = vpop.f32.mrb[0].mxu0
  %v550 = vadd.f32 %v136, %v549
  %v551 = vpop.f32.mrb[0].mxu0
  %v552 = vpop.f32.mrb[0].mxu0
  %v553 = vadd.f32 %v136, %v552
  %v554 = vpop.f32.mrb[0].mxu0
  %555 = vmatprep.mubr.bf16.mxu0 %v190
  %556 = vmatmul.mubr.bf16.gmra.mrb[0].mxu0 %v189
  %v557 = vpop.f32.mrb[0].mxu0
  %v558 = vadd.f32 %v136, %v557
  %v559 = vpop.f32.mrb[0].mxu0
  %v560 = vpop.f32.mrb[0].mxu0
  %v561 = vadd.f32 %v136, %v560
  %v562 = vpop.f32.mrb[0].mxu0
  %563 = vdwg.mxu0
  %564 = vmatprep.subr.bf16.mxu0 0
  %565 = vmatpush1.bf16.msra.mxu0 %v424
  %566 = vmatprep.subr.bf16.mxu0 0
  %567 = vmatpush1.bf16.msra.mxu0 %v425
  %568 = vmatprep.subr.bf16.mxu0 0
  %569 = vmatpush1.bf16.msra.mxu0 %v426
  %570 = vmatprep.subr.bf16.mxu0 0
  %571 = vmatpush1.bf16.msra.mxu0 %v427
  %572 = vmatprep.subr.bf16.mxu0 0
  %573 = vmatpush1.bf16.msra.mxu0 %v428
  %574 = vmatprep.subr.bf16.mxu0 0
  %575 = vmatpush1.bf16.msra.mxu0 %v429
  %576 = vmatprep.subr.bf16.mxu0 0
  %577 = vmatpush1.bf16.msra.mxu0 %v430
  %578 = vmatprep.subr.bf16.mxu0 0
  %579 = vmatpush1.bf16.msra.mxu0 %v431
  %580 = vmatprep.subr.bf16.mxu0 0
  %581 = vmatpush1.bf16.msra.mxu0 %v432
  %582 = vmatprep.subr.bf16.mxu0 0
  %583 = vmatpush1.bf16.msra.mxu0 %v433
  %584 = vmatprep.subr.bf16.mxu0 0
  %585 = vmatpush1.bf16.msra.mxu0 %v434
  %586 = vmatprep.subr.bf16.mxu0 0
  %587 = vmatpush1.bf16.msra.mxu0 %v435
  %588 = vmatprep.subr.bf16.mxu0 0
  %589 = vmatpush1.bf16.msra.mxu0 %v436
  %590 = vmatprep.subr.bf16.mxu0 0
  %591 = vmatpush1.bf16.msra.mxu0 %v437
  %592 = vmatprep.subr.bf16.mxu0 0
  %593 = vmatpush1.bf16.msra.mxu0 %v438
  %594 = vmatprep.subr.bf16.mxu0 0
  %595 = vmatpush1.bf16.msra.mxu0 %v439
  %596 = vmatprep.mubr.bf16.mxu0 %v185
  %597 = vmatmul.mubr.bf16.gmra.mrb[0].mxu0 %v184
  %v598 = vpop.f32.mrb[0].mxu0
  %v599 = vadd.f32 %v550, %v598
  %v600 = vpop.f32.mrb[0].mxu0
  %v601 = vpop.f32.mrb[0].mxu0
  %v602 = vadd.f32 %v553, %v601
  %v603 = vpop.f32.mrb[0].mxu0
  %604 = vmatprep.mubr.bf16.mxu0 %v192
  %605 = vmatmul.mubr.bf16.gmra.mrb[0].mxu0 %v191
  %v606 = vpop.f32.mrb[0].mxu0
  %v607 = vadd.f32 %v558, %v606
  %v608 = vpop.f32.mrb[0].mxu0
  %v609 = vpop.f32.mrb[0].mxu0
  %v610 = vadd.f32 %v561, %v609
  %v611 = vpop.f32.mrb[0].mxu0
  %612 = vdwg.mxu0
  %613 = vmatprep.subr.bf16.mxu0 0
  %614 = vmatpush1.bf16.msra.mxu0 %v440
  %615 = vmatprep.subr.bf16.mxu0 0
  %616 = vmatpush1.bf16.msra.mxu0 %v441
  %617 = vmatprep.subr.bf16.mxu0 0
  %618 = vmatpush1.bf16.msra.mxu0 %v442
  %619 = vmatprep.subr.bf16.mxu0 0
  %620 = vmatpush1.bf16.msra.mxu0 %v443
  %621 = vmatprep.subr.bf16.mxu0 0
  %622 = vmatpush1.bf16.msra.mxu0 %v444
  %623 = vmatprep.subr.bf16.mxu0 0
  %624 = vmatpush1.bf16.msra.mxu0 %v445
  %625 = vmatprep.subr.bf16.mxu0 0
  %626 = vmatpush1.bf16.msra.mxu0 %v446
  %627 = vmatprep.subr.bf16.mxu0 0
  %628 = vmatpush1.bf16.msra.mxu0 %v447
  %629 = vmatprep.subr.bf16.mxu0 0
  %630 = vmatpush1.bf16.msra.mxu0 %v448
  %631 = vmatprep.subr.bf16.mxu0 0
  %632 = vmatpush1.bf16.msra.mxu0 %v449
  %633 = vmatprep.subr.bf16.mxu0 0
  %634 = vmatpush1.bf16.msra.mxu0 %v450
  %635 = vmatprep.subr.bf16.mxu0 0
  %636 = vmatpush1.bf16.msra.mxu0 %v451
  %637 = vmatprep.subr.bf16.mxu0 0
  %638 = vmatpush1.bf16.msra.mxu0 %v452
  %639 = vmatprep.subr.bf16.mxu0 0
  %640 = vmatpush1.bf16.msra.mxu0 %v453
  %641 = vmatprep.subr.bf16.mxu0 0
  %642 = vmatpush1.bf16.msra.mxu0 %v454
  %643 = vmatprep.subr.bf16.mxu0 0
  %644 = vmatpush1.bf16.msra.mxu0 %v455
  %645 = vmatprep.mubr.bf16.mxu0 %v187
  %646 = vmatmul.mubr.bf16.gmra.mrb[0].mxu0 %v186
  %v647 = vpop.f32.mrb[0].mxu0
  %v648 = vadd.f32 %v599, %v647
  %v649 = vpop.f32.mrb[0].mxu0
  %v650 = vpop.f32.mrb[0].mxu0
  %v651 = vadd.f32 %v602, %v650
  %v652 = vpop.f32.mrb[0].mxu0
  %653 = vmatprep.mubr.bf16.mxu0 %v194
  %654 = vmatmul.mubr.bf16.gmra.mrb[0].mxu0 %v193
  %v655 = vpop.f32.mrb[0].mxu0
  %v656 = vadd.f32 %v607, %v655
  %v657 = vpop.f32.mrb[0].mxu0
  %v658 = vpop.f32.mrb[0].mxu0
  %v659 = vadd.f32 %v610, %v658
  %v660 = vpop.f32.mrb[0].mxu0
  %661 = vdwg.mxu0
  %662 = vmatprep.subr.bf16.mxu0 0
  %663 = vmatpush1.bf16.msra.mxu0 %v456
  %664 = vmatprep.subr.bf16.mxu0 0
  %665 = vmatpush1.bf16.msra.mxu0 %v457
  %666 = vmatprep.subr.bf16.mxu0 0
  %667 = vmatpush1.bf16.msra.mxu0 0
  %668 = vmatprep.subr.bf16.mxu0 0
  %669 = vmatpush1.bf16.msra.mxu0 0
  %670 = vmatprep.subr.bf16.mxu0 0
  %671 = vmatpush1.bf16.msra.mxu0 0
  %672 = vmatprep.subr.bf16.mxu0 0
  %673 = vmatpush1.bf16.msra.mxu0 0
  %674 = vmatprep.subr.bf16.mxu0 0
  %675 = vmatpush1.bf16.msra.mxu0 0
  %676 = vmatprep.subr.bf16.mxu0 0
  %677 = vmatpush1.bf16.msra.mxu0 0
  %678 = vmatprep.subr.bf16.mxu0 0
  %679 = vmatpush1.bf16.msra.mxu0 0
  %680 = vmatprep.subr.bf16.mxu0 0
  %681 = vmatpush1.bf16.msra.mxu0 0
  %682 = vmatprep.subr.bf16.mxu0 0
  %683 = vmatpush1.bf16.msra.mxu0 0
  %684 = vmatprep.subr.bf16.mxu0 0
  %685 = vmatpush1.bf16.msra.mxu0 0
  %686 = vmatprep.subr.bf16.mxu0 0
  %687 = vmatpush1.bf16.msra.mxu0 0
  %688 = vmatprep.subr.bf16.mxu0 0
  %689 = vmatpush1.bf16.msra.mxu0 0
  %690 = vmatprep.subr.bf16.mxu0 0
  %691 = vmatpush1.bf16.msra.mxu0 0
  %692 = vmatprep.subr.bf16.mxu0 0
  %693 = vmatpush1.bf16.msra.mxu0 0
  %694 = vmatprep.mubr.bf16.mxu0 0
  %695 = vmatmul.mubr.bf16.gmra.mrb[0].mxu0 %v510
  %v696 = vpop.f32.mrb[0].mxu0
  %v697 = vadd.f32 %v648, %v696
  %v698 = vpop.f32.mrb[0].mxu0
  %v699 = vpop.f32.mrb[0].mxu0
  %v700 = vadd.f32 %v651, %v699
  %v701 = vpop.f32.mrb[0].mxu0
  %702 = vmatprep.mubr.bf16.mxu0 0
  %703 = vmatmul.mubr.bf16.gmra.mrb[0].mxu0 %v513
  %v704 = vpop.f32.mrb[0].mxu0
  %v705 = vadd.f32 %v656, %v704
  %v706 = vpop.f32.mrb[0].mxu0
  %v707 = vpop.f32.mrb[0].mxu0
  %v708 = vadd.f32 %v659, %v707
  %v709 = vpop.f32.mrb[0].mxu0
  %710 = vdwg.mxu0
  %vm711 = vcmp.gt.f32.partialorder %v697, 0.0
  %vm712 = vcmp.gt.f32.partialorder %v700, 0.0
  %vm713 = vcmp.gt.f32.partialorder %v705, 0.0
  %vm714 = vcmp.gt.f32.partialorder %v708, 0.0
  %v715 = vmul.f32 %v697, 1.442695
  %v716 = vpow.pop %v715
  %v717 = vmul.f32 %v700, 1.442695
  %v718 = vpow.pop %v717
  %v719 = vmul.f32 %v705, 1.442695
  %v720 = vpow.pop %v719
  %v721 = vmul.f32 %v708, 1.442695
  %v722 = vpow.pop %v721
  %v723 = vsub.f32 %v716, 1.0
  %v724 = vsub.f32 %v718, 1.0
  %v725 = vsub.f32 %v720, 1.0
  %v726 = vsub.f32 %v722, 1.0
  %v727 = vsel %vm711, %v697, %v723
  %v728 = vsel %vm712, %v700, %v724
  %v729 = vsel %vm713, %v705, %v725
  %v730 = vsel %vm714, %v708, %v726
  %v731 = vpack.c.bf16 %v728, %v727
  %v732 = vpack.c.bf16 %v730, %v729
  %v735 = vunpack.c.l.b16 %v731
  %v736 = vunpack.c.h.b16 %v731
  %v737 = vunpack.c.l.b16 %v732
  %v738 = vunpack.c.h.b16 %v732
  %v739 = vpack.c.b16 %v735, %v735
  %v740 = vpack.c.b16 %v736, %v736
  %v741 = vpack.c.b16 %v737, %v737
  %v742 = vpack.c.b16 %v738, %v738
  %vm747 = vcmask 519168
  %748 = vst.msk [vmem:[%s3] sm:$0xf] %vm747, %v739
  %749 = vst.msk [vmem:[%s3 + $0x4] sm:$0xf] %vm747, %v740
  %750 = vst.msk [vmem:[%s3 + $0x8] sm:$0xf] %vm747, %v741
  %751 = vst.msk [vmem:[%s3 + $0xc] sm:$0xf] %vm747, %v742
  // Predicated region
  $region14: #{discriminator_forward.6} parent=0 // pred_check
    _
  $region15: #{discriminator_forward.6} parent=0 // pred_check_branch
    %753 = sbr.rel (0) target = $region17
  $region16: #{discriminator_forward.6} parent=0 // pred_region
    _
  $region17: #{discriminator_forward.6} parent=0 // pred_fallthru
    _
  // Predicated region
  $region18: #{discriminator_forward.6} parent=0 // pred_check
    _
  $region19: #{discriminator_forward.6} parent=0 // pred_check_branch
    %755 = sbr.rel (0) target = $region21
  $region20: #{discriminator_forward.6} parent=0 // pred_region
    _
  $region21: #{discriminator_forward.6} parent=0 // pred_fallthru
    _

// kernel: discriminator_forward.7
$region0: #{discriminator_forward.7}
  #allocation0 [shape = 'u32[]', space=smem, size = 0x4, offset = 0x4, fixed_abs, tag = 'smem constant byte address 0x4 - core index']
  #allocation1 [shape = 'u32[144,128]{1,0:T(1,128)}', space=vmem, size = 0x12000, scoped, tag = 'internal scratch']
  %s0 = inlined_call_operand.vmem [shape: bf16[8,1600], index: 0, kind: input, shape index: {}]
  %s1 = inlined_call_operand.vmem [shape: bf16[1600,128], index: 1, kind: input, shape index: {}]
  %s2 = inlined_call_operand.vmem [shape: f32[1,128], index: 2, kind: input, shape index: {}]
  %s3 = inlined_call_operand.vmem [shape: bf16[8,128], index: 3, kind: output, shape index: {}]
  %s4 = sld [smem:[#allocation0]]
  $region22: #{discriminator_forward.7} parent=0
    _
  %s6 = ssub.s32 1, %s4
  %s7 = scalar_select 0, %s6, %s4
  // Predicated region
  $region2: #{discriminator_forward.7} parent=0 // pred_check
    _
  $region3: #{discriminator_forward.7} parent=0 // pred_check_branch
    %9 = sbr.rel (0) target = $region5
  $region4: #{discriminator_forward.7} parent=0 // pred_region
    _
  $region5: #{discriminator_forward.7} parent=0 // pred_fallthru
    _
  // Predicated region
  $region6: #{discriminator_forward.7} parent=0 // pred_check
    _
  $region7: #{discriminator_forward.7} parent=0 // pred_check_branch
    %11 = sbr.rel (0) target = $region9
  $region8: #{discriminator_forward.7} parent=0 // pred_region
    _
  $region9: #{discriminator_forward.7} parent=0 // pred_fallthru
    _
  // Predicated region
  $region10: #{discriminator_forward.7} parent=0 // pred_check
    _
  $region11: #{discriminator_forward.7} parent=0 // pred_check_branch
    %13 = sbr.rel (0) target = $region13
  $region12: #{discriminator_forward.7} parent=0 // pred_region
    _
  $region13: #{discriminator_forward.7} parent=0 // pred_fallthru
    _
  %v15 = vld [vmem:[%s0] sm:$0xff]
  %v16 = vld [vmem:[%s0 + $0x8] sm:$0xff]
  %v17 = vld [vmem:[%s0 + $0x10] sm:$0xff]
  %v18 = vld [vmem:[%s0 + $0x18] sm:$0xff]
  %v19 = vld [vmem:[%s0 + $0x20] sm:$0xff]
  %v20 = vld [vmem:[%s0 + $0x28] sm:$0xff]
  %v21 = vld [vmem:[%s0 + $0x30] sm:$0xf]
  %v22 = vld [vmem:[%s1] sm:$0xf]
  %v23 = vld [vmem:[%s1 + $0x4] sm:$0xf]
  %v24 = vld [vmem:[%s1 + $0x8] sm:$0xf]
  %v25 = vld [vmem:[%s1 + $0xc] sm:$0xf]
  %v26 = vld [vmem:[%s1 + $0x10] sm:$0xf]
  %v27 = vld [vmem:[%s1 + $0x14] sm:$0xf]
  %v28 = vld [vmem:[%s1 + $0x18] sm:$0xf]
  %v29 = vld [vmem:[%s1 + $0x1c] sm:$0xf]
  %v30 = vld [vmem:[%s1 + $0x20] sm:$0xf]
  %v31 = vld [vmem:[%s1 + $0x24] sm:$0xf]
  %v32 = vld [vmem:[%s1 + $0x28] sm:$0xf]
  %v33 = vld [vmem:[%s1 + $0x2c] sm:$0xf]
  %v34 = vld [vmem:[%s1 + $0x30] sm:$0xf]
  %v35 = vld [vmem:[%s1 + $0x34] sm:$0xf]
  %v36 = vld [vmem:[%s1 + $0x38] sm:$0xf]
  %v37 = vld [vmem:[%s1 + $0x3c] sm:$0xf]
  %v38 = vld [vmem:[%s1 + $0x40] sm:$0xf]
  %v39 = vld [vmem:[%s1 + $0x44] sm:$0xf]
  %v40 = vld [vmem:[%s1 + $0x48] sm:$0xf]
  %v41 = vld [vmem:[%s1 + $0x4c] sm:$0xf]
  %v42 = vld [vmem:[%s1 + $0x50] sm:$0xf]
  %v43 = vld [vmem:[%s1 + $0x54] sm:$0xf]
  %v44 = vld [vmem:[%s1 + $0x58] sm:$0xf]
  %v45 = vld [vmem:[%s1 + $0x5c] sm:$0xf]
  %v46 = vld [vmem:[%s1 + $0x60] sm:$0xf]
  %v47 = vld [vmem:[%s1 + $0x64] sm:$0xf]
  %v48 = vld [vmem:[%s1 + $0x68] sm:$0xf]
  %v49 = vld [vmem:[%s1 + $0x6c] sm:$0xf]
  %v50 = vld [vmem:[%s1 + $0x70] sm:$0xf]
  %v51 = vld [vmem:[%s1 + $0x74] sm:$0xf]
  %v52 = vld [vmem:[%s1 + $0x78] sm:$0xf]
  %v53 = vld [vmem:[%s1 + $0x7c] sm:$0xf]
  %v54 = vld [vmem:[%s1 + $0x80] sm:$0xf]
  %v55 = vld [vmem:[%s1 + $0x84] sm:$0xf]
  %v56 = vld [vmem:[%s1 + $0x88] sm:$0xf]
  %v57 = vld [vmem:[%s1 + $0x8c] sm:$0xf]
  %v58 = vld [vmem:[%s1 + $0x90] sm:$0xf]
  %v59 = vld [vmem:[%s1 + $0x94] sm:$0xf]
  %v60 = vld [vmem:[%s1 + $0x98] sm:$0xf]
  %v61 = vld [vmem:[%s1 + $0x9c] sm:$0xf]
  %v62 = vld [vmem:[%s1 + $0xa0] sm:$0xf]
  %v63 = vld [vmem:[%s1 + $0xa4] sm:$0xf]
  %v64 = vld [vmem:[%s1 + $0xa8] sm:$0xf]
  %v65 = vld [vmem:[%s1 + $0xac] sm:$0xf]
  %v66 = vld [vmem:[%s1 + $0xb0] sm:$0xf]
  %v67 = vld [vmem:[%s1 + $0xb4] sm:$0xf]
  %v68 = vld [vmem:[%s1 + $0xb8] sm:$0xf]
  %v69 = vld [vmem:[%s1 + $0xbc] sm:$0xf]
  %v70 = vld [vmem:[%s1 + $0xc0] sm:$0xf]
  %v71 = vld [vmem:[%s1 + $0xc4] sm:$0xf]
  %v72 = vld [vmem:[%s1 + $0xc8] sm:$0xf]
  %v73 = vld [vmem:[%s1 + $0xcc] sm:$0xf]
  %v74 = vld [vmem:[%s1 + $0xd0] sm:$0xf]
  %v75 = vld [vmem:[%s1 + $0xd4] sm:$0xf]
  %v76 = vld [vmem:[%s1 + $0xd8] sm:$0xf]
  %v77 = vld [vmem:[%s1 + $0xdc] sm:$0xf]
  %v78 = vld [vmem:[%s1 + $0xe0] sm:$0xf]
  %v79 = vld [vmem:[%s1 + $0xe4] sm:$0xf]
  %v80 = vld [vmem:[%s1 + $0xe8] sm:$0xf]
  %v81 = vld [vmem:[%s1 + $0xec] sm:$0xf]
  %v82 = vld [vmem:[%s1 + $0xf0] sm:$0xf]
  %v83 = vld [vmem:[%s1 + $0xf4] sm:$0xf]
  %v84 = vld [vmem:[%s1 + $0xf8] sm:$0xf]
  %v85 = vld [vmem:[%s1 + $0xfc] sm:$0xf]
  %v86 = vld [vmem:[%s1 + $0x100] sm:$0xf]
  %v87 = vld [vmem:[%s1 + $0x104] sm:$0xf]
  %v88 = vld [vmem:[%s1 + $0x108] sm:$0xf]
  %v89 = vld [vmem:[%s1 + $0x10c] sm:$0xf]
  %v90 = vld [vmem:[%s1 + $0x110] sm:$0xf]
  %v91 = vld [vmem:[%s1 + $0x114] sm:$0xf]
  %v92 = vld [vmem:[%s1 + $0x118] sm:$0xf]
  %v93 = vld [vmem:[%s1 + $0x11c] sm:$0xf]
  %v94 = vld [vmem:[%s1 + $0x120] sm:$0xf]
  %v95 = vld [vmem:[%s1 + $0x124] sm:$0xf]
  %v96 = vld [vmem:[%s1 + $0x128] sm:$0xf]
  %v97 = vld [vmem:[%s1 + $0x12c] sm:$0xf]
  %v98 = vld [vmem:[%s1 + $0x130] sm:$0xf]
  %v99 = vld [vmem:[%s1 + $0x134] sm:$0xf]
  %v100 = vld [vmem:[%s1 + $0x138] sm:$0xf]
  %v101 = vld [vmem:[%s1 + $0x13c] sm:$0xf]
  %v102 = vld [vmem:[%s1 + $0x140] sm:$0xf]
  %v103 = vld [vmem:[%s1 + $0x144] sm:$0xf]
  %v104 = vld [vmem:[%s1 + $0x148] sm:$0xf]
  %v105 = vld [vmem:[%s1 + $0x14c] sm:$0xf]
  %v106 = vld [vmem:[%s1 + $0x150] sm:$0xf]
  %v107 = vld [vmem:[%s1 + $0x154] sm:$0xf]
  %v108 = vld [vmem:[%s1 + $0x158] sm:$0xf]
  %v109 = vld [vmem:[%s1 + $0x15c] sm:$0xf]
  %v110 = vld [vmem:[%s1 + $0x160] sm:$0xf]
  %v111 = vld [vmem:[%s1 + $0x164] sm:$0xf]
  %v112 = vld [vmem:[%s1 + $0x168] sm:$0xf]
  %v113 = vld [vmem:[%s1 + $0x16c] sm:$0xf]
  %v114 = vld [vmem:[%s1 + $0x170] sm:$0xf]
  %v115 = vld [vmem:[%s1 + $0x174] sm:$0xf]
  %v116 = vld [vmem:[%s1 + $0x178] sm:$0xf]
  %v117 = vld [vmem:[%s1 + $0x17c] sm:$0xf]
  %v118 = vld [vmem:[%s1 + $0x180] sm:$0xf]
  %v119 = vld [vmem:[%s1 + $0x184] sm:$0xf]
  %v120 = vld [vmem:[%s1 + $0x188] sm:$0xf]
  %v121 = vld [vmem:[%s1 + $0x18c] sm:$0xf]
  %v122 = vld [vmem:[%s1 + $0x190] sm:$0xf]
  %v123 = vld [vmem:[%s1 + $0x194] sm:$0xf]
  %v124 = vld [vmem:[%s1 + $0x198] sm:$0xf]
  %v125 = vld [vmem:[%s1 + $0x19c] sm:$0xf]
  %v126 = vld [vmem:[%s1 + $0x1a0] sm:$0xf]
  %v127 = vld [vmem:[%s1 + $0x1a4] sm:$0xf]
  %v128 = vld [vmem:[%s1 + $0x1a8] sm:$0xf]
  %v129 = vld [vmem:[%s1 + $0x1ac] sm:$0xf]
  %v130 = vld [vmem:[%s1 + $0x1b0] sm:$0xf]
  %v131 = vld [vmem:[%s1 + $0x1b4] sm:$0xf]
  %v132 = vld [vmem:[%s1 + $0x1b8] sm:$0xf]
  %v133 = vld [vmem:[%s1 + $0x1bc] sm:$0xf]
  %v134 = vld [vmem:[%s1 + $0x1c0] sm:$0xf]
  %v135 = vld [vmem:[%s1 + $0x1c4] sm:$0xf]
  %v136 = vld [vmem:[%s1 + $0x1c8] sm:$0xf]
  %v137 = vld [vmem:[%s1 + $0x1cc] sm:$0xf]
  %v138 = vld [vmem:[%s1 + $0x1d0] sm:$0xf]
  %v139 = vld [vmem:[%s1 + $0x1d4] sm:$0xf]
  %v140 = vld [vmem:[%s1 + $0x1d8] sm:$0xf]
  %v141 = vld [vmem:[%s1 + $0x1dc] sm:$0xf]
  %v142 = vld [vmem:[%s1 + $0x1e0] sm:$0xf]
  %v143 = vld [vmem:[%s1 + $0x1e4] sm:$0xf]
  %v144 = vld [vmem:[%s1 + $0x1e8] sm:$0xf]
  %v145 = vld [vmem:[%s1 + $0x1ec] sm:$0xf]
  %v146 = vld [vmem:[%s1 + $0x1f0] sm:$0xf]
  %v147 = vld [vmem:[%s1 + $0x1f4] sm:$0xf]
  %v148 = vld [vmem:[%s1 + $0x1f8] sm:$0xf]
  %v149 = vld [vmem:[%s1 + $0x1fc] sm:$0xf]
  %v150 = vld [vmem:[%s1 + $0x200] sm:$0xf]
  %v151 = vld [vmem:[%s1 + $0x204] sm:$0xf]
  %v152 = vld [vmem:[%s1 + $0x208] sm:$0xf]
  %v153 = vld [vmem:[%s1 + $0x20c] sm:$0xf]
  %v154 = vld [vmem:[%s1 + $0x210] sm:$0xf]
  %v155 = vld [vmem:[%s1 + $0x214] sm:$0xf]
  %v156 = vld [vmem:[%s1 + $0x218] sm:$0xf]
  %v157 = vld [vmem:[%s1 + $0x21c] sm:$0xf]
  %v158 = vld [vmem:[%s1 + $0x220] sm:$0xf]
  %v159 = vld [vmem:[%s1 + $0x224] sm:$0xf]
  %v160 = vld [vmem:[%s1 + $0x228] sm:$0xf]
  %v161 = vld [vmem:[%s1 + $0x22c] sm:$0xf]
  %v162 = vld [vmem:[%s1 + $0x230] sm:$0xf]
  %v163 = vld [vmem:[%s1 + $0x234] sm:$0xf]
  %v164 = vld [vmem:[%s1 + $0x238] sm:$0xf]
  %v165 = vld [vmem:[%s1 + $0x23c] sm:$0xf]
  %v166 = vld [vmem:[%s1 + $0x240] sm:$0xf]
  %v167 = vld [vmem:[%s1 + $0x244] sm:$0xf]
  %v168 = vld [vmem:[%s1 + $0x248] sm:$0xf]
  %v169 = vld [vmem:[%s1 + $0x24c] sm:$0xf]
  %v170 = vld [vmem:[%s1 + $0x250] sm:$0xf]
  %v171 = vld [vmem:[%s1 + $0x254] sm:$0xf]
  %v172 = vld [vmem:[%s1 + $0x258] sm:$0xf]
  %v173 = vld [vmem:[%s1 + $0x25c] sm:$0xf]
  %v174 = vld [vmem:[%s1 + $0x260] sm:$0xf]
  %v175 = vld [vmem:[%s1 + $0x264] sm:$0xf]
  %v176 = vld [vmem:[%s1 + $0x268] sm:$0xf]
  %v177 = vld [vmem:[%s1 + $0x26c] sm:$0xf]
  %v178 = vld [vmem:[%s1 + $0x270] sm:$0xf]
  %v179 = vld [vmem:[%s1 + $0x274] sm:$0xf]
  %v180 = vld [vmem:[%s1 + $0x278] sm:$0xf]
  %v181 = vld [vmem:[%s1 + $0x27c] sm:$0xf]
  %v182 = vld [vmem:[%s1 + $0x280] sm:$0xf]
  %v183 = vld [vmem:[%s1 + $0x284] sm:$0xf]
  %v184 = vld [vmem:[%s1 + $0x288] sm:$0xf]
  %v185 = vld [vmem:[%s1 + $0x28c] sm:$0xf]
  %v186 = vld [vmem:[%s1 + $0x290] sm:$0xf]
  %v187 = vld [vmem:[%s1 + $0x294] sm:$0xf]
  %v188 = vld [vmem:[%s1 + $0x298] sm:$0xf]
  %v189 = vld [vmem:[%s1 + $0x29c] sm:$0xf]
  %v190 = vld [vmem:[%s1 + $0x2a0] sm:$0xf]
  %v191 = vld [vmem:[%s1 + $0x2a4] sm:$0xf]
  %v192 = vld [vmem:[%s1 + $0x2a8] sm:$0xf]
  %v193 = vld [vmem:[%s1 + $0x2ac] sm:$0xf]
  %v194 = vld [vmem:[%s1 + $0x2b0] sm:$0xf]
  %v195 = vld [vmem:[%s1 + $0x2b4] sm:$0xf]
  %v196 = vld [vmem:[%s1 + $0x2b8] sm:$0xf]
  %v197 = vld [vmem:[%s1 + $0x2bc] sm:$0xf]
  %v198 = vld [vmem:[%s1 + $0x2c0] sm:$0xf]
  %v199 = vld [vmem:[%s1 + $0x2c4] sm:$0xf]
  %v200 = vld [vmem:[%s1 + $0x2c8] sm:$0xf]
  %v201 = vld [vmem:[%s1 + $0x2cc] sm:$0xf]
  %v202 = vld [vmem:[%s1 + $0x2d0] sm:$0xf]
  %v203 = vld [vmem:[%s1 + $0x2d4] sm:$0xf]
  %v204 = vld [vmem:[%s1 + $0x2d8] sm:$0xf]
  %v205 = vld [vmem:[%s1 + $0x2dc] sm:$0xf]
  %v206 = vld [vmem:[%s1 + $0x2e0] sm:$0xf]
  %v207 = vld [vmem:[%s1 + $0x2e4] sm:$0xf]
  %v208 = vld [vmem:[%s1 + $0x2e8] sm:$0xf]
  %v209 = vld [vmem:[%s1 + $0x2ec] sm:$0xf]
  %v210 = vld [vmem:[%s1 + $0x2f0] sm:$0xf]
  %v211 = vld [vmem:[%s1 + $0x2f4] sm:$0xf]
  %v212 = vld [vmem:[%s1 + $0x2f8] sm:$0xf]
  %v213 = vld [vmem:[%s1 + $0x2fc] sm:$0xf]
  %v214 = vld [vmem:[%s1 + $0x300] sm:$0xf]
  %v215 = vld [vmem:[%s1 + $0x304] sm:$0xf]
  %v216 = vld [vmem:[%s1 + $0x308] sm:$0xf]
  %v217 = vld [vmem:[%s1 + $0x30c] sm:$0xf]
  %v218 = vld [vmem:[%s1 + $0x310] sm:$0xf]
  %v219 = vld [vmem:[%s1 + $0x314] sm:$0xf]
  %v220 = vld [vmem:[%s1 + $0x318] sm:$0xf]
  %v221 = vld [vmem:[%s1 + $0x31c] sm:$0xf]
  %v222 = vld [vmem:[%s2] sm:$0x1]
  %v224 = vlaneseq
  %v225 = vshrl.u32 %v224, 7
  %v226 = vsub.s32 0, %v225
  %v227 = vrot.slane %v222, %v226
  %v236 = vunpack.c.l.b16 %v15
  %v237 = vunpack.c.h.b16 %v15
  %v238 = vunpack.c.l.b16 %v16
  %v239 = vunpack.c.h.b16 %v16
  %v240 = vunpack.c.l.b16 %v17
  %v241 = vunpack.c.h.b16 %v17
  %v242 = vunpack.c.l.b16 %v18
  %v243 = vunpack.c.h.b16 %v18
  %v244 = vunpack.c.l.b16 %v19
  %v245 = vunpack.c.h.b16 %v19
  %v246 = vunpack.c.l.b16 %v20
  %v247 = vunpack.c.h.b16 %v20
  %v248 = vunpack.c.l.b16 %v21
  %v249 = vpack.c.b16 %v236, %v236
  %v250 = vpack.c.b16 %v237, %v237
  %v251 = vpack.c.b16 %v238, %v238
  %v252 = vpack.c.b16 %v239, %v239
  %v253 = vpack.c.b16 %v240, %v240
  %v254 = vpack.c.b16 %v241, %v241
  %v255 = vpack.c.b16 %v242, %v242
  %v256 = vpack.c.b16 %v243, %v243
  %v257 = vpack.c.b16 %v244, %v244
  %v258 = vpack.c.b16 %v245, %v245
  %v259 = vpack.c.b16 %v246, %v246
  %v260 = vpack.c.b16 %v247, %v247
  %v261 = vpack.c.b16 %v248, %v248
  %v474 = vunpack.c.l.b16 %v22
  %v475 = vunpack.c.l.b16 %v23
  %v476 = vunpack.c.l.b16 %v24
  %v477 = vunpack.c.l.b16 %v25
  %v478 = vunpack.c.l.b16 %v26
  %v479 = vunpack.c.l.b16 %v27
  %v480 = vunpack.c.l.b16 %v28
  %v481 = vunpack.c.l.b16 %v29
  %v482 = vunpack.c.l.b16 %v30
  %v483 = vunpack.c.l.b16 %v31
  %v484 = vunpack.c.l.b16 %v32
  %v485 = vunpack.c.l.b16 %v33
  %v486 = vunpack.c.l.b16 %v34
  %v487 = vunpack.c.l.b16 %v35
  %v488 = vunpack.c.l.b16 %v36
  %v489 = vunpack.c.l.b16 %v37
  %v490 = vunpack.c.l.b16 %v38
  %v491 = vunpack.c.l.b16 %v39
  %v492 = vunpack.c.l.b16 %v40
  %v493 = vunpack.c.l.b16 %v41
  %v494 = vunpack.c.l.b16 %v42
  %v495 = vunpack.c.l.b16 %v43
  %v496 = vunpack.c.l.b16 %v44
  %v497 = vunpack.c.l.b16 %v45
  %v498 = vunpack.c.l.b16 %v46
  %v499 = vunpack.c.l.b16 %v47
  %v500 = vunpack.c.l.b16 %v48
  %v501 = vunpack.c.l.b16 %v49
  %v502 = vunpack.c.l.b16 %v50
  %v503 = vunpack.c.l.b16 %v51
  %v504 = vunpack.c.l.b16 %v52
  %v505 = vunpack.c.l.b16 %v53
  %v506 = vunpack.c.l.b16 %v54
  %v507 = vunpack.c.l.b16 %v55
  %v508 = vunpack.c.l.b16 %v56
  %v509 = vunpack.c.l.b16 %v57
  %v510 = vunpack.c.l.b16 %v58
  %v511 = vunpack.c.l.b16 %v59
  %v512 = vunpack.c.l.b16 %v60
  %v513 = vunpack.c.l.b16 %v61
  %v514 = vunpack.c.l.b16 %v62
  %v515 = vunpack.c.l.b16 %v63
  %v516 = vunpack.c.l.b16 %v64
  %v517 = vunpack.c.l.b16 %v65
  %v518 = vunpack.c.l.b16 %v66
  %v519 = vunpack.c.l.b16 %v67
  %v520 = vunpack.c.l.b16 %v68
  %v521 = vunpack.c.l.b16 %v69
  %v522 = vunpack.c.l.b16 %v70
  %v523 = vunpack.c.l.b16 %v71
  %v524 = vunpack.c.l.b16 %v72
  %v525 = vunpack.c.l.b16 %v73
  %v526 = vunpack.c.l.b16 %v74
  %v527 = vunpack.c.l.b16 %v75
  %v528 = vunpack.c.l.b16 %v76
  %v529 = vunpack.c.l.b16 %v77
  %v530 = vunpack.c.l.b16 %v78
  %v531 = vunpack.c.l.b16 %v79
  %v532 = vunpack.c.l.b16 %v80
  %v533 = vunpack.c.l.b16 %v81
  %v534 = vunpack.c.l.b16 %v82
  %v535 = vunpack.c.l.b16 %v83
  %v536 = vunpack.c.l.b16 %v84
  %v537 = vunpack.c.l.b16 %v85
  %v538 = vunpack.c.l.b16 %v86
  %v539 = vunpack.c.l.b16 %v87
  %v540 = vunpack.c.l.b16 %v88
  %v541 = vunpack.c.l.b16 %v89
  %v542 = vunpack.c.l.b16 %v90
  %v543 = vunpack.c.l.b16 %v91
  %v544 = vunpack.c.l.b16 %v92
  %v545 = vunpack.c.l.b16 %v93
  %v546 = vunpack.c.l.b16 %v94
  %v547 = vunpack.c.l.b16 %v95
  %v548 = vunpack.c.l.b16 %v96
  %v549 = vunpack.c.l.b16 %v97
  %v550 = vunpack.c.l.b16 %v98
  %v551 = vunpack.c.l.b16 %v99
  %v552 = vunpack.c.l.b16 %v100
  %v553 = vunpack.c.l.b16 %v101
  %v554 = vunpack.c.l.b16 %v102
  %v555 = vunpack.c.l.b16 %v103
  %v556 = vunpack.c.l.b16 %v104
  %v557 = vunpack.c.l.b16 %v105
  %v558 = vunpack.c.l.b16 %v106
  %v559 = vunpack.c.l.b16 %v107
  %v560 = vunpack.c.l.b16 %v108
  %v561 = vunpack.c.l.b16 %v109
  %v562 = vunpack.c.l.b16 %v110
  %v563 = vunpack.c.l.b16 %v111
  %v564 = vunpack.c.l.b16 %v112
  %v565 = vunpack.c.l.b16 %v113
  %v566 = vunpack.c.l.b16 %v114
  %v567 = vunpack.c.l.b16 %v115
  %v568 = vunpack.c.l.b16 %v116
  %v569 = vunpack.c.l.b16 %v117
  %v570 = vunpack.c.l.b16 %v118
  %v571 = vunpack.c.l.b16 %v119
  %v572 = vunpack.c.l.b16 %v120
  %v573 = vunpack.c.l.b16 %v121
  %v574 = vunpack.c.l.b16 %v122
  %v575 = vunpack.c.l.b16 %v123
  %v576 = vunpack.c.l.b16 %v124
  %v577 = vunpack.c.l.b16 %v125
  %v578 = vunpack.c.l.b16 %v126
  %v579 = vunpack.c.l.b16 %v127
  %v580 = vunpack.c.l.b16 %v128
  %v581 = vunpack.c.l.b16 %v129
  %v582 = vunpack.c.l.b16 %v130
  %v583 = vunpack.c.l.b16 %v131
  %v584 = vunpack.c.l.b16 %v132
  %v585 = vunpack.c.l.b16 %v133
  %v586 = vunpack.c.l.b16 %v134
  %v587 = vunpack.c.l.b16 %v135
  %v588 = vunpack.c.l.b16 %v136
  %v589 = vunpack.c.l.b16 %v137
  %v590 = vunpack.c.l.b16 %v138
  %v591 = vunpack.c.l.b16 %v139
  %v592 = vunpack.c.l.b16 %v140
  %v593 = vunpack.c.l.b16 %v141
  %v594 = vunpack.c.l.b16 %v142
  %v595 = vunpack.c.l.b16 %v143
  %v596 = vunpack.c.l.b16 %v144
  %v597 = vunpack.c.l.b16 %v145
  %v598 = vunpack.c.l.b16 %v146
  %v599 = vunpack.c.l.b16 %v147
  %v600 = vunpack.c.l.b16 %v148
  %v601 = vunpack.c.l.b16 %v149
  %v602 = vunpack.c.l.b16 %v150
  %v603 = vunpack.c.l.b16 %v151
  %v604 = vunpack.c.l.b16 %v152
  %v605 = vunpack.c.l.b16 %v153
  %v606 = vunpack.c.l.b16 %v154
  %v607 = vunpack.c.l.b16 %v155
  %v608 = vunpack.c.l.b16 %v156
  %v609 = vunpack.c.l.b16 %v157
  %v610 = vunpack.c.l.b16 %v158
  %v611 = vunpack.c.l.b16 %v159
  %v612 = vunpack.c.l.b16 %v160
  %v613 = vunpack.c.l.b16 %v161
  %v614 = vunpack.c.l.b16 %v162
  %v615 = vunpack.c.l.b16 %v163
  %v616 = vunpack.c.l.b16 %v164
  %v617 = vunpack.c.l.b16 %v165
  %v618 = vunpack.c.l.b16 %v166
  %v619 = vunpack.c.l.b16 %v167
  %v620 = vunpack.c.l.b16 %v168
  %v621 = vunpack.c.l.b16 %v169
  %v622 = vunpack.c.l.b16 %v170
  %v623 = vunpack.c.l.b16 %v171
  %v624 = vunpack.c.l.b16 %v172
  %v625 = vunpack.c.l.b16 %v173
  %v626 = vunpack.c.l.b16 %v174
  %v627 = vunpack.c.l.b16 %v175
  %v628 = vunpack.c.l.b16 %v176
  %v629 = vunpack.c.l.b16 %v177
  %v630 = vunpack.c.l.b16 %v178
  %v631 = vunpack.c.l.b16 %v179
  %v632 = vunpack.c.l.b16 %v180
  %v633 = vunpack.c.l.b16 %v181
  %v634 = vunpack.c.l.b16 %v182
  %v635 = vunpack.c.l.b16 %v183
  %v636 = vunpack.c.l.b16 %v184
  %v637 = vunpack.c.l.b16 %v185
  %v638 = vunpack.c.l.b16 %v186
  %v639 = vunpack.c.l.b16 %v187
  %v640 = vunpack.c.l.b16 %v188
  %v641 = vunpack.c.l.b16 %v189
  %v642 = vunpack.c.l.b16 %v190
  %v643 = vunpack.c.l.b16 %v191
  %v644 = vunpack.c.l.b16 %v192
  %v645 = vunpack.c.l.b16 %v193
  %v646 = vunpack.c.l.b16 %v194
  %v647 = vunpack.c.l.b16 %v195
  %v648 = vunpack.c.l.b16 %v196
  %v649 = vunpack.c.l.b16 %v197
  %v650 = vunpack.c.l.b16 %v198
  %v651 = vunpack.c.l.b16 %v199
  %v652 = vunpack.c.l.b16 %v200
  %v653 = vunpack.c.l.b16 %v201
  %v654 = vunpack.c.l.b16 %v202
  %v655 = vunpack.c.l.b16 %v203
  %v656 = vunpack.c.l.b16 %v204
  %v657 = vunpack.c.l.b16 %v205
  %v658 = vunpack.c.l.b16 %v206
  %v659 = vunpack.c.l.b16 %v207
  %v660 = vunpack.c.l.b16 %v208
  %v661 = vunpack.c.l.b16 %v209
  %v662 = vunpack.c.l.b16 %v210
  %v663 = vunpack.c.l.b16 %v211
  %v664 = vunpack.c.l.b16 %v212
  %v665 = vunpack.c.l.b16 %v213
  %v666 = vunpack.c.l.b16 %v214
  %v667 = vunpack.c.l.b16 %v215
  %v668 = vunpack.c.l.b16 %v216
  %v669 = vunpack.c.l.b16 %v217
  %v670 = vunpack.c.l.b16 %v218
  %v671 = vunpack.c.l.b16 %v219
  %v672 = vunpack.c.l.b16 %v220
  %v673 = vunpack.c.l.b16 %v221
  %v674 = vpack.c.b16 %v475, %v474
  %v675 = vpack.c.b16 %v477, %v476
  %v676 = vpack.c.b16 %v479, %v478
  %v677 = vpack.c.b16 %v481, %v480
  %v678 = vpack.c.b16 %v483, %v482
  %v679 = vpack.c.b16 %v485, %v484
  %v680 = vpack.c.b16 %v487, %v486
  %v681 = vpack.c.b16 %v489, %v488
  %v682 = vpack.c.b16 %v491, %v490
  %v683 = vpack.c.b16 %v493, %v492
  %v684 = vpack.c.b16 %v495, %v494
  %v685 = vpack.c.b16 %v497, %v496
  %v686 = vpack.c.b16 %v499, %v498
  %v687 = vpack.c.b16 %v501, %v500
  %v688 = vpack.c.b16 %v503, %v502
  %v689 = vpack.c.b16 %v505, %v504
  %v690 = vpack.c.b16 %v507, %v506
  %v691 = vpack.c.b16 %v509, %v508
  %v692 = vpack.c.b16 %v511, %v510
  %v693 = vpack.c.b16 %v513, %v512
  %v694 = vpack.c.b16 %v515, %v514
  %v695 = vpack.c.b16 %v517, %v516
  %v696 = vpack.c.b16 %v519, %v518
  %v697 = vpack.c.b16 %v521, %v520
  %v698 = vpack.c.b16 %v523, %v522
  %v699 = vpack.c.b16 %v525, %v524
  %v700 = vpack.c.b16 %v527, %v526
  %v701 = vpack.c.b16 %v529, %v528
  %v702 = vpack.c.b16 %v531, %v530
  %v703 = vpack.c.b16 %v533, %v532
  %v704 = vpack.c.b16 %v535, %v534
  %v705 = vpack.c.b16 %v537, %v536
  %v706 = vpack.c.b16 %v539, %v538
  %v707 = vpack.c.b16 %v541, %v540
  %v708 = vpack.c.b16 %v543, %v542
  %v709 = vpack.c.b16 %v545, %v544
  %v710 = vpack.c.b16 %v547, %v546
  %v711 = vpack.c.b16 %v549, %v548
  %v712 = vpack.c.b16 %v551, %v550
  %v713 = vpack.c.b16 %v553, %v552
  %v714 = vpack.c.b16 %v555, %v554
  %v715 = vpack.c.b16 %v557, %v556
  %v716 = vpack.c.b16 %v559, %v558
  %v717 = vpack.c.b16 %v561, %v560
  %v718 = vpack.c.b16 %v563, %v562
  %v719 = vpack.c.b16 %v565, %v564
  %v720 = vpack.c.b16 %v567, %v566
  %v721 = vpack.c.b16 %v569, %v568
  %v722 = vpack.c.b16 %v571, %v570
  %v723 = vpack.c.b16 %v573, %v572
  %v724 = vpack.c.b16 %v575, %v574
  %v725 = vpack.c.b16 %v577, %v576
  %v726 = vpack.c.b16 %v579, %v578
  %v727 = vpack.c.b16 %v581, %v580
  %v728 = vpack.c.b16 %v583, %v582
  %v729 = vpack.c.b16 %v585, %v584
  %v730 = vpack.c.b16 %v587, %v586
  %v731 = vpack.c.b16 %v589, %v588
  %v732 = vpack.c.b16 %v591, %v590
  %v733 = vpack.c.b16 %v593, %v592
  %v734 = vpack.c.b16 %v595, %v594
  %v735 = vpack.c.b16 %v597, %v596
  %v736 = vpack.c.b16 %v599, %v598
  %v737 = vpack.c.b16 %v601, %v600
  %v738 = vpack.c.b16 %v603, %v602
  %v739 = vpack.c.b16 %v605, %v604
  %v740 = vpack.c.b16 %v607, %v606
  %v741 = vpack.c.b16 %v609, %v608
  %v742 = vpack.c.b16 %v611, %v610
  %v743 = vpack.c.b16 %v613, %v612
  %v744 = vpack.c.b16 %v615, %v614
  %v745 = vpack.c.b16 %v617, %v616
  %v746 = vpack.c.b16 %v619, %v618
  %v747 = vpack.c.b16 %v621, %v620
  %v748 = vpack.c.b16 %v623, %v622
  %v749 = vpack.c.b16 %v625, %v624
  %v750 = vpack.c.b16 %v627, %v626
  %v751 = vpack.c.b16 %v629, %v628
  %v752 = vpack.c.b16 %v631, %v630
  %v753 = vpack.c.b16 %v633, %v632
  %v754 = vpack.c.b16 %v635, %v634
  %v755 = vpack.c.b16 %v637, %v636
  %v756 = vpack.c.b16 %v639, %v638
  %v757 = vpack.c.b16 %v641, %v640
  %v758 = vpack.c.b16 %v643, %v642
  %v759 = vpack.c.b16 %v645, %v644
  %v760 = vpack.c.b16 %v647, %v646
  %v761 = vpack.c.b16 %v649, %v648
  %v762 = vpack.c.b16 %v651, %v650
  %v763 = vpack.c.b16 %v653, %v652
  %v764 = vpack.c.b16 %v655, %v654
  %v765 = vpack.c.b16 %v657, %v656
  %v766 = vpack.c.b16 %v659, %v658
  %v767 = vpack.c.b16 %v661, %v660
  %v768 = vpack.c.b16 %v663, %v662
  %v769 = vpack.c.b16 %v665, %v664
  %v770 = vpack.c.b16 %v667, %v666
  %v771 = vpack.c.b16 %v669, %v668
  %v772 = vpack.c.b16 %v671, %v670
  %v773 = vpack.c.b16 %v673, %v672
  %vm874 = vcmask 523264
  %v876 = vsel %vm874, %v261, 0
  %878 = vmatprep.subr.bf16.mxu0 0
  %879 = vmatpush1.bf16.msra.mxu0 %v674
  %880 = vmatprep.subr.bf16.mxu0 0
  %881 = vmatpush1.bf16.msra.mxu0 %v675
  %882 = vmatprep.subr.bf16.mxu0 0
  %883 = vmatpush1.bf16.msra.mxu0 %v676
  %884 = vmatprep.subr.bf16.mxu0 0
  %885 = vmatpush1.bf16.msra.mxu0 %v677
  %886 = vmatprep.subr.bf16.mxu0 0
  %887 = vmatpush1.bf16.msra.mxu0 %v678
  %888 = vmatprep.subr.bf16.mxu0 0
  %889 = vmatpush1.bf16.msra.mxu0 %v679
  %890 = vmatprep.subr.bf16.mxu0 0
  %891 = vmatpush1.bf16.msra.mxu0 %v680
  %892 = vmatprep.subr.bf16.mxu0 0
  %893 = vmatpush1.bf16.msra.mxu0 %v681
  %894 = vmatprep.subr.bf16.mxu0 0
  %895 = vmatpush1.bf16.msra.mxu0 %v682
  %896 = vmatprep.subr.bf16.mxu0 0
  %897 = vmatpush1.bf16.msra.mxu0 %v683
  %898 = vmatprep.subr.bf16.mxu0 0
  %899 = vmatpush1.bf16.msra.mxu0 %v684
  %900 = vmatprep.subr.bf16.mxu0 0
  %901 = vmatpush1.bf16.msra.mxu0 %v685
  %902 = vmatprep.subr.bf16.mxu0 0
  %903 = vmatpush1.bf16.msra.mxu0 %v686
  %904 = vmatprep.subr.bf16.mxu0 0
  %905 = vmatpush1.bf16.msra.mxu0 %v687
  %906 = vmatprep.subr.bf16.mxu0 0
  %907 = vmatpush1.bf16.msra.mxu0 %v688
  %908 = vmatprep.subr.bf16.mxu0 0
  %909 = vmatpush1.bf16.msra.mxu0 %v689
  %910 = vmatprep.mubr.bf16.mxu0 %v250
  %911 = vmatmul.mubr.bf16.gmra.mrb[0].mxu0 %v249
  %v912 = vpop.f32.mrb[0].mxu0
  %v913 = vadd.f32 %v227, %v912
  %v914 = vpop.f32.mrb[0].mxu0
  %v915 = vpop.f32.mrb[0].mxu0
  %v916 = vpop.f32.mrb[0].mxu0
  %917 = vdwg.mxu0
  %918 = vmatprep.subr.bf16.mxu0 0
  %919 = vmatpush1.bf16.msra.mxu0 %v690
  %920 = vmatprep.subr.bf16.mxu0 0
  %921 = vmatpush1.bf16.msra.mxu0 %v691
  %922 = vmatprep.subr.bf16.mxu0 0
  %923 = vmatpush1.bf16.msra.mxu0 %v692
  %924 = vmatprep.subr.bf16.mxu0 0
  %925 = vmatpush1.bf16.msra.mxu0 %v693
  %926 = vmatprep.subr.bf16.mxu0 0
  %927 = vmatpush1.bf16.msra.mxu0 %v694
  %928 = vmatprep.subr.bf16.mxu0 0
  %929 = vmatpush1.bf16.msra.mxu0 %v695
  %930 = vmatprep.subr.bf16.mxu0 0
  %931 = vmatpush1.bf16.msra.mxu0 %v696
  %932 = vmatprep.subr.bf16.mxu0 0
  %933 = vmatpush1.bf16.msra.mxu0 %v697
  %934 = vmatprep.subr.bf16.mxu0 0
  %935 = vmatpush1.bf16.msra.mxu0 %v698
  %936 = vmatprep.subr.bf16.mxu0 0
  %937 = vmatpush1.bf16.msra.mxu0 %v699
  %938 = vmatprep.subr.bf16.mxu0 0
  %939 = vmatpush1.bf16.msra.mxu0 %v700
  %940 = vmatprep.subr.bf16.mxu0 0
  %941 = vmatpush1.bf16.msra.mxu0 %v701
  %942 = vmatprep.subr.bf16.mxu0 0
  %943 = vmatpush1.bf16.msra.mxu0 %v702
  %944 = vmatprep.subr.bf16.mxu0 0
  %945 = vmatpush1.bf16.msra.mxu0 %v703
  %946 = vmatprep.subr.bf16.mxu0 0
  %947 = vmatpush1.bf16.msra.mxu0 %v704
  %948 = vmatprep.subr.bf16.mxu0 0
  %949 = vmatpush1.bf16.msra.mxu0 %v705
  %950 = vmatprep.mubr.bf16.mxu0 %v252
  %951 = vmatmul.mubr.bf16.gmra.mrb[0].mxu0 %v251
  %v952 = vpop.f32.mrb[0].mxu0
  %v953 = vadd.f32 %v913, %v952
  %v954 = vpop.f32.mrb[0].mxu0
  %v955 = vpop.f32.mrb[0].mxu0
  %v956 = vpop.f32.mrb[0].mxu0
  %957 = vdwg.mxu0
  %958 = vmatprep.subr.bf16.mxu0 0
  %959 = vmatpush1.bf16.msra.mxu0 %v706
  %960 = vmatprep.subr.bf16.mxu0 0
  %961 = vmatpush1.bf16.msra.mxu0 %v707
  %962 = vmatprep.subr.bf16.mxu0 0
  %963 = vmatpush1.bf16.msra.mxu0 %v708
  %964 = vmatprep.subr.bf16.mxu0 0
  %965 = vmatpush1.bf16.msra.mxu0 %v709
  %966 = vmatprep.subr.bf16.mxu0 0
  %967 = vmatpush1.bf16.msra.mxu0 %v710
  %968 = vmatprep.subr.bf16.mxu0 0
  %969 = vmatpush1.bf16.msra.mxu0 %v711
  %970 = vmatprep.subr.bf16.mxu0 0
  %971 = vmatpush1.bf16.msra.mxu0 %v712
  %972 = vmatprep.subr.bf16.mxu0 0
  %973 = vmatpush1.bf16.msra.mxu0 %v713
  %974 = vmatprep.subr.bf16.mxu0 0
  %975 = vmatpush1.bf16.msra.mxu0 %v714
  %976 = vmatprep.subr.bf16.mxu0 0
  %977 = vmatpush1.bf16.msra.mxu0 %v715
  %978 = vmatprep.subr.bf16.mxu0 0
  %979 = vmatpush1.bf16.msra.mxu0 %v716
  %980 = vmatprep.subr.bf16.mxu0 0
  %981 = vmatpush1.bf16.msra.mxu0 %v717
  %982 = vmatprep.subr.bf16.mxu0 0
  %983 = vmatpush1.bf16.msra.mxu0 %v718
  %984 = vmatprep.subr.bf16.mxu0 0
  %985 = vmatpush1.bf16.msra.mxu0 %v719
  %986 = vmatprep.subr.bf16.mxu0 0
  %987 = vmatpush1.bf16.msra.mxu0 %v720
  %988 = vmatprep.subr.bf16.mxu0 0
  %989 = vmatpush1.bf16.msra.mxu0 %v721
  %990 = vmatprep.mubr.bf16.mxu0 %v254
  %991 = vmatmul.mubr.bf16.gmra.mrb[0].mxu0 %v253
  %v992 = vpop.f32.mrb[0].mxu0
  %v993 = vadd.f32 %v953, %v992
  %v994 = vpop.f32.mrb[0].mxu0
  %v995 = vpop.f32.mrb[0].mxu0
  %v996 = vpop.f32.mrb[0].mxu0
  %997 = vdwg.mxu0
  %998 = vmatprep.subr.bf16.mxu0 0
  %999 = vmatpush1.bf16.msra.mxu0 %v722
  %1000 = vmatprep.subr.bf16.mxu0 0
  %1001 = vmatpush1.bf16.msra.mxu0 %v723
  %1002 = vmatprep.subr.bf16.mxu0 0
  %1003 = vmatpush1.bf16.msra.mxu0 %v724
  %1004 = vmatprep.subr.bf16.mxu0 0
  %1005 = vmatpush1.bf16.msra.mxu0 %v725
  %1006 = vmatprep.subr.bf16.mxu0 0
  %1007 = vmatpush1.bf16.msra.mxu0 %v726
  %1008 = vmatprep.subr.bf16.mxu0 0
  %1009 = vmatpush1.bf16.msra.mxu0 %v727
  %1010 = vmatprep.subr.bf16.mxu0 0
  %1011 = vmatpush1.bf16.msra.mxu0 %v728
  %1012 = vmatprep.subr.bf16.mxu0 0
  %1013 = vmatpush1.bf16.msra.mxu0 %v729
  %1014 = vmatprep.subr.bf16.mxu0 0
  %1015 = vmatpush1.bf16.msra.mxu0 %v730
  %1016 = vmatprep.subr.bf16.mxu0 0
  %1017 = vmatpush1.bf16.msra.mxu0 %v731
  %1018 = vmatprep.subr.bf16.mxu0 0
  %1019 = vmatpush1.bf16.msra.mxu0 %v732
  %1020 = vmatprep.subr.bf16.mxu0 0
  %1021 = vmatpush1.bf16.msra.mxu0 %v733
  %1022 = vmatprep.subr.bf16.mxu0 0
  %1023 = vmatpush1.bf16.msra.mxu0 %v734
  %1024 = vmatprep.subr.bf16.mxu0 0
  %1025 = vmatpush1.bf16.msra.mxu0 %v735
  %1026 = vmatprep.subr.bf16.mxu0 0
  %1027 = vmatpush1.bf16.msra.mxu0 %v736
  %1028 = vmatprep.subr.bf16.mxu0 0
  %1029 = vmatpush1.bf16.msra.mxu0 %v737
  %1030 = vmatprep.mubr.bf16.mxu0 %v256
  %1031 = vmatmul.mubr.bf16.gmra.mrb[0].mxu0 %v255
  %v1032 = vpop.f32.mrb[0].mxu0
  %v1033 = vadd.f32 %v993, %v1032
  %v1034 = vpop.f32.mrb[0].mxu0
  %v1035 = vpop.f32.mrb[0].mxu0
  %v1036 = vpop.f32.mrb[0].mxu0
  %1037 = vdwg.mxu0
  %1038 = vmatprep.subr.bf16.mxu0 0
  %1039 = vmatpush1.bf16.msra.mxu0 %v738
  %1040 = vmatprep.subr.bf16.mxu0 0
  %1041 = vmatpush1.bf16.msra.mxu0 %v739
  %1042 = vmatprep.subr.bf16.mxu0 0
  %1043 = vmatpush1.bf16.msra.mxu0 %v740
  %1044 = vmatprep.subr.bf16.mxu0 0
  %1045 = vmatpush1.bf16.msra.mxu0 %v741
  %1046 = vmatprep.subr.bf16.mxu0 0
  %1047 = vmatpush1.bf16.msra.mxu0 %v742
  %1048 = vmatprep.subr.bf16.mxu0 0
  %1049 = vmatpush1.bf16.msra.mxu0 %v743
  %1050 = vmatprep.subr.bf16.mxu0 0
  %1051 = vmatpush1.bf16.msra.mxu0 %v744
  %1052 = vmatprep.subr.bf16.mxu0 0
  %1053 = vmatpush1.bf16.msra.mxu0 %v745
  %1054 = vmatprep.subr.bf16.mxu0 0
  %1055 = vmatpush1.bf16.msra.mxu0 %v746
  %1056 = vmatprep.subr.bf16.mxu0 0
  %1057 = vmatpush1.bf16.msra.mxu0 %v747
  %1058 = vmatprep.subr.bf16.mxu0 0
  %1059 = vmatpush1.bf16.msra.mxu0 %v748
  %1060 = vmatprep.subr.bf16.mxu0 0
  %1061 = vmatpush1.bf16.msra.mxu0 %v749
  %1062 = vmatprep.subr.bf16.mxu0 0
  %1063 = vmatpush1.bf16.msra.mxu0 %v750
  %1064 = vmatprep.subr.bf16.mxu0 0
  %1065 = vmatpush1.bf16.msra.mxu0 %v751
  %1066 = vmatprep.subr.bf16.mxu0 0
  %1067 = vmatpush1.bf16.msra.mxu0 %v752
  %1068 = vmatprep.subr.bf16.mxu0 0
  %1069 = vmatpush1.bf16.msra.mxu0 %v753
  %1070 = vmatprep.mubr.bf16.mxu0 %v258
  %1071 = vmatmul.mubr.bf16.gmra.mrb[0].mxu0 %v257
  %v1072 = vpop.f32.mrb[0].mxu0
  %v1073 = vadd.f32 %v1033, %v1072
  %v1074 = vpop.f32.mrb[0].mxu0
  %v1075 = vpop.f32.mrb[0].mxu0
  %v1076 = vpop.f32.mrb[0].mxu0
  %1077 = vdwg.mxu0
  %1078 = vmatprep.subr.bf16.mxu0 0
  %1079 = vmatpush1.bf16.msra.mxu0 %v754
  %1080 = vmatprep.subr.bf16.mxu0 0
  %1081 = vmatpush1.bf16.msra.mxu0 %v755
  %1082 = vmatprep.subr.bf16.mxu0 0
  %1083 = vmatpush1.bf16.msra.mxu0 %v756
  %1084 = vmatprep.subr.bf16.mxu0 0
  %1085 = vmatpush1.bf16.msra.mxu0 %v757
  %1086 = vmatprep.subr.bf16.mxu0 0
  %1087 = vmatpush1.bf16.msra.mxu0 %v758
  %1088 = vmatprep.subr.bf16.mxu0 0
  %1089 = vmatpush1.bf16.msra.mxu0 %v759
  %1090 = vmatprep.subr.bf16.mxu0 0
  %1091 = vmatpush1.bf16.msra.mxu0 %v760
  %1092 = vmatprep.subr.bf16.mxu0 0
  %1093 = vmatpush1.bf16.msra.mxu0 %v761
  %1094 = vmatprep.subr.bf16.mxu0 0
  %1095 = vmatpush1.bf16.msra.mxu0 %v762
  %1096 = vmatprep.subr.bf16.mxu0 0
  %1097 = vmatpush1.bf16.msra.mxu0 %v763
  %1098 = vmatprep.subr.bf16.mxu0 0
  %1099 = vmatpush1.bf16.msra.mxu0 %v764
  %1100 = vmatprep.subr.bf16.mxu0 0
  %1101 = vmatpush1.bf16.msra.mxu0 %v765
  %1102 = vmatprep.subr.bf16.mxu0 0
  %1103 = vmatpush1.bf16.msra.mxu0 %v766
  %1104 = vmatprep.subr.bf16.mxu0 0
  %1105 = vmatpush1.bf16.msra.mxu0 %v767
  %1106 = vmatprep.subr.bf16.mxu0 0
  %1107 = vmatpush1.bf16.msra.mxu0 %v768
  %1108 = vmatprep.subr.bf16.mxu0 0
  %1109 = vmatpush1.bf16.msra.mxu0 %v769
  %1110 = vmatprep.mubr.bf16.mxu0 %v260
  %1111 = vmatmul.mubr.bf16.gmra.mrb[0].mxu0 %v259
  %v1112 = vpop.f32.mrb[0].mxu0
  %v1113 = vadd.f32 %v1073, %v1112
  %v1114 = vpop.f32.mrb[0].mxu0
  %v1115 = vpop.f32.mrb[0].mxu0
  %v1116 = vpop.f32.mrb[0].mxu0
  %1117 = vdwg.mxu0
  %1118 = vmatprep.subr.bf16.mxu0 0
  %1119 = vmatpush1.bf16.msra.mxu0 %v770
  %1120 = vmatprep.subr.bf16.mxu0 0
  %1121 = vmatpush1.bf16.msra.mxu0 %v771
  %1122 = vmatprep.subr.bf16.mxu0 0
  %1123 = vmatpush1.bf16.msra.mxu0 %v772
  %1124 = vmatprep.subr.bf16.mxu0 0
  %1125 = vmatpush1.bf16.msra.mxu0 %v773
  %1126 = vmatprep.subr.bf16.mxu0 0
  %1127 = vmatpush1.bf16.msra.mxu0 0
  %1128 = vmatprep.subr.bf16.mxu0 0
  %1129 = vmatpush1.bf16.msra.mxu0 0
  %1130 = vmatprep.subr.bf16.mxu0 0
  %1131 = vmatpush1.bf16.msra.mxu0 0
  %1132 = vmatprep.subr.bf16.mxu0 0
  %1133 = vmatpush1.bf16.msra.mxu0 0
  %1134 = vmatprep.subr.bf16.mxu0 0
  %1135 = vmatpush1.bf16.msra.mxu0 0
  %1136 = vmatprep.subr.bf16.mxu0 0
  %1137 = vmatpush1.bf16.msra.mxu0 0
  %1138 = vmatprep.subr.bf16.mxu0 0
  %1139 = vmatpush1.bf16.msra.mxu0 0
  %1140 = vmatprep.subr.bf16.mxu0 0
  %1141 = vmatpush1.bf16.msra.mxu0 0
  %1142 = vmatprep.subr.bf16.mxu0 0
  %1143 = vmatpush1.bf16.msra.mxu0 0
  %1144 = vmatprep.subr.bf16.mxu0 0
  %1145 = vmatpush1.bf16.msra.mxu0 0
  %1146 = vmatprep.subr.bf16.mxu0 0
  %1147 = vmatpush1.bf16.msra.mxu0 0
  %1148 = vmatprep.subr.bf16.mxu0 0
  %1149 = vmatpush1.bf16.msra.mxu0 0
  %1150 = vmatprep.mubr.bf16.mxu0 0
  %1151 = vmatmul.mubr.bf16.gmra.mrb[0].mxu0 %v876
  %v1152 = vpop.f32.mrb[0].mxu0
  %v1153 = vadd.f32 %v1113, %v1152
  %v1154 = vpop.f32.mrb[0].mxu0
  %v1155 = vpop.f32.mrb[0].mxu0
  %v1156 = vpop.f32.mrb[0].mxu0
  %1157 = vdwg.mxu0
  %vm1158 = vcmp.gt.f32.partialorder %v1153, 0.0
  %v1159 = vmul.f32 %v1153, 1.442695
  %v1160 = vpow.pop %v1159
  %v1161 = vsub.f32 %v1160, 1.0
  %v1162 = vsel %vm1158, %v1153, %v1161
  %v1163 = vpack.c.bf16 %v1162, %v1162
  %1164 = vst [vmem:[%s3] sm:$0xf] %v1163
  // Predicated region
  $region14: #{discriminator_forward.7} parent=0 // pred_check
    _
  $region15: #{discriminator_forward.7} parent=0 // pred_check_branch
    %1166 = sbr.rel (0) target = $region17
  $region16: #{discriminator_forward.7} parent=0 // pred_region
    _
  $region17: #{discriminator_forward.7} parent=0 // pred_fallthru
    _
  // Predicated region
  $region18: #{discriminator_forward.7} parent=0 // pred_check
    _
  $region19: #{discriminator_forward.7} parent=0 // pred_check_branch
    %1168 = sbr.rel (0) target = $region21
  $region20: #{discriminator_forward.7} parent=0 // pred_region
    _
  $region21: #{discriminator_forward.7} parent=0 // pred_fallthru
    _

// kernel: discriminator_forward.9
$region0: #{discriminator_forward.9}
  #allocation0 [shape = 'u32[]', space=smem, size = 0x4, offset = 0x4, fixed_abs, tag = 'smem constant byte address 0x4 - core index']
  #allocation1 [shape = 'u32[144,128]{1,0:T(1,128)}', space=vmem, size = 0x12000, scoped, tag = 'internal scratch']
  %s0 = inlined_call_operand.vmem [shape: bf16[8,128], index: 0, kind: input, shape index: {}]
  %s1 = inlined_call_operand.vmem [shape: bf16[128,128], index: 1, kind: input, shape index: {}]
  %s2 = inlined_call_operand.vmem [shape: f32[1,128], index: 2, kind: input, shape index: {}]
  %s3 = inlined_call_operand.vmem [shape: f32[8,128], index: 3, kind: output, shape index: {}]
  %s4 = sld [smem:[#allocation0]]
  $region22: #{discriminator_forward.9} parent=0
    _
  %s6 = ssub.s32 1, %s4
  %s7 = scalar_select 0, %s6, %s4
  // Predicated region
  $region2: #{discriminator_forward.9} parent=0 // pred_check
    _
  $region3: #{discriminator_forward.9} parent=0 // pred_check_branch
    %9 = sbr.rel (0) target = $region5
  $region4: #{discriminator_forward.9} parent=0 // pred_region
    _
  $region5: #{discriminator_forward.9} parent=0 // pred_fallthru
    _
  // Predicated region
  $region6: #{discriminator_forward.9} parent=0 // pred_check
    _
  $region7: #{discriminator_forward.9} parent=0 // pred_check_branch
    %11 = sbr.rel (0) target = $region9
  $region8: #{discriminator_forward.9} parent=0 // pred_region
    _
  $region9: #{discriminator_forward.9} parent=0 // pred_fallthru
    _
  // Predicated region
  $region10: #{discriminator_forward.9} parent=0 // pred_check
    _
  $region11: #{discriminator_forward.9} parent=0 // pred_check_branch
    %13 = sbr.rel (0) target = $region13
  $region12: #{discriminator_forward.9} parent=0 // pred_region
    _
  $region13: #{discriminator_forward.9} parent=0 // pred_fallthru
    _
  %v15 = vld [vmem:[%s0] sm:$0xf]
  %v16 = vld [vmem:[%s1] sm:$0xf]
  %v17 = vld [vmem:[%s1 + $0x4] sm:$0xf]
  %v18 = vld [vmem:[%s1 + $0x8] sm:$0xf]
  %v19 = vld [vmem:[%s1 + $0xc] sm:$0xf]
  %v20 = vld [vmem:[%s1 + $0x10] sm:$0xf]
  %v21 = vld [vmem:[%s1 + $0x14] sm:$0xf]
  %v22 = vld [vmem:[%s1 + $0x18] sm:$0xf]
  %v23 = vld [vmem:[%s1 + $0x1c] sm:$0xf]
  %v24 = vld [vmem:[%s1 + $0x20] sm:$0xf]
  %v25 = vld [vmem:[%s1 + $0x24] sm:$0xf]
  %v26 = vld [vmem:[%s1 + $0x28] sm:$0xf]
  %v27 = vld [vmem:[%s1 + $0x2c] sm:$0xf]
  %v28 = vld [vmem:[%s1 + $0x30] sm:$0xf]
  %v29 = vld [vmem:[%s1 + $0x34] sm:$0xf]
  %v30 = vld [vmem:[%s1 + $0x38] sm:$0xf]
  %v31 = vld [vmem:[%s1 + $0x3c] sm:$0xf]
  %v32 = vld [vmem:[%s2] sm:$0x1]
  %v34 = vlaneseq
  %v35 = vshrl.u32 %v34, 7
  %v36 = vsub.s32 0, %v35
  %v37 = vrot.slane %v32, %v36
  %v55 = vunpack.c.l.b16 %v16
  %v56 = vunpack.c.l.b16 %v17
  %v57 = vunpack.c.l.b16 %v18
  %v58 = vunpack.c.l.b16 %v19
  %v59 = vunpack.c.l.b16 %v20
  %v60 = vunpack.c.l.b16 %v21
  %v61 = vunpack.c.l.b16 %v22
  %v62 = vunpack.c.l.b16 %v23
  %v63 = vunpack.c.l.b16 %v24
  %v64 = vunpack.c.l.b16 %v25
  %v65 = vunpack.c.l.b16 %v26
  %v66 = vunpack.c.l.b16 %v27
  %v67 = vunpack.c.l.b16 %v28
  %v68 = vunpack.c.l.b16 %v29
  %v69 = vunpack.c.l.b16 %v30
  %v70 = vunpack.c.l.b16 %v31
  %v71 = vpack.c.b16 %v56, %v55
  %v72 = vpack.c.b16 %v58, %v57
  %v73 = vpack.c.b16 %v60, %v59
  %v74 = vpack.c.b16 %v62, %v61
  %v75 = vpack.c.b16 %v64, %v63
  %v76 = vpack.c.b16 %v66, %v65
  %v77 = vpack.c.b16 %v68, %v67
  %v78 = vpack.c.b16 %v70, %v69
  %87 = vmatprep.subr.bf16.mxu0 0
  %88 = vmatpush1.bf16.msra.mxu0 %v71
  %89 = vmatprep.subr.bf16.mxu0 0
  %90 = vmatpush1.bf16.msra.mxu0 %v72
  %91 = vmatprep.subr.bf16.mxu0 0
  %92 = vmatpush1.bf16.msra.mxu0 %v73
  %93 = vmatprep.subr.bf16.mxu0 0
  %94 = vmatpush1.bf16.msra.mxu0 %v74
  %95 = vmatprep.subr.bf16.mxu0 0
  %96 = vmatpush1.bf16.msra.mxu0 %v75
  %97 = vmatprep.subr.bf16.mxu0 0
  %98 = vmatpush1.bf16.msra.mxu0 %v76
  %99 = vmatprep.subr.bf16.mxu0 0
  %100 = vmatpush1.bf16.msra.mxu0 %v77
  %101 = vmatprep.subr.bf16.mxu0 0
  %102 = vmatpush1.bf16.msra.mxu0 %v78
  %103 = vmatprep.subr.bf16.mxu0 0
  %104 = vmatpush1.bf16.msra.mxu0 0
  %105 = vmatprep.subr.bf16.mxu0 0
  %106 = vmatpush1.bf16.msra.mxu0 0
  %107 = vmatprep.subr.bf16.mxu0 0
  %108 = vmatpush1.bf16.msra.mxu0 0
  %109 = vmatprep.subr.bf16.mxu0 0
  %110 = vmatpush1.bf16.msra.mxu0 0
  %111 = vmatprep.subr.bf16.mxu0 0
  %112 = vmatpush1.bf16.msra.mxu0 0
  %113 = vmatprep.subr.bf16.mxu0 0
  %114 = vmatpush1.bf16.msra.mxu0 0
  %115 = vmatprep.subr.bf16.mxu0 0
  %116 = vmatpush1.bf16.msra.mxu0 0
  %117 = vmatprep.subr.bf16.mxu0 0
  %118 = vmatpush1.bf16.msra.mxu0 0
  %119 = vmatprep.mubr.bf16.mxu0 0
  %120 = vmatmul.mubr.bf16.gmra.mrb[0].mxu0 %v15
  %v121 = vpop.f32.mrb[0].mxu0
  %v122 = vadd.f32 %v37, %v121
  %v123 = vpop.f32.mrb[0].mxu0
  %v124 = vpop.f32.mrb[0].mxu0
  %v125 = vpop.f32.mrb[0].mxu0
  %126 = vdwg.mxu0
  %127 = vst [vmem:[%s3] sm:$0xff] %v122
  // Predicated region
  $region14: #{discriminator_forward.9} parent=0 // pred_check
    _
  $region15: #{discriminator_forward.9} parent=0 // pred_check_branch
    %129 = sbr.rel (0) target = $region17
  $region16: #{discriminator_forward.9} parent=0 // pred_region
    _
  $region17: #{discriminator_forward.9} parent=0 // pred_fallthru
    _
  // Predicated region
  $region18: #{discriminator_forward.9} parent=0 // pred_check
    _
  $region19: #{discriminator_forward.9} parent=0 // pred_check_branch
    %131 = sbr.rel (0) target = $region21
  $region20: #{discriminator_forward.9} parent=0 // pred_region
    _
  $region21: #{discriminator_forward.9} parent=0 // pred_fallthru
    _

// kernel: discriminator_forward.8
$region0: #{discriminator_forward.8}
  #allocation0 [shape = 'u32[]', space=smem, size = 0x4, offset = 0x4, fixed_abs, tag = 'smem constant byte address 0x4 - core index']
  #allocation1 [shape = 'u32[144,128]{1,0:T(1,128)}', space=vmem, size = 0x12000, scoped, tag = 'internal scratch']
  %s0 = inlined_call_operand.vmem [shape: bf16[8,3200], index: 0, kind: input, shape index: {}]
  %s1 = inlined_call_operand.vmem [shape: bf16[3200,128], index: 1, kind: input, shape index: {}]
  %s2 = inlined_call_operand.vmem [shape: f32[1,128], index: 2, kind: input, shape index: {}]
  %s3 = inlined_call_operand.vmem [shape: bf16[8,128], index: 3, kind: output, shape index: {}]
  %s4 = sld [smem:[#allocation0]]
  $region22: #{discriminator_forward.8} parent=0
    _
  %s6 = ssub.s32 1, %s4
  %s7 = scalar_select 0, %s6, %s4
  // Predicated region
  $region2: #{discriminator_forward.8} parent=0 // pred_check
    _
  $region3: #{discriminator_forward.8} parent=0 // pred_check_branch
    %9 = sbr.rel (0) target = $region5
  $region4: #{discriminator_forward.8} parent=0 // pred_region
    _
  $region5: #{discriminator_forward.8} parent=0 // pred_fallthru
    _
  // Predicated region
  $region6: #{discriminator_forward.8} parent=0 // pred_check
    _
  $region7: #{discriminator_forward.8} parent=0 // pred_check_branch
    %11 = sbr.rel (0) target = $region9
  $region8: #{discriminator_forward.8} parent=0 // pred_region
    _
  $region9: #{discriminator_forward.8} parent=0 // pred_fallthru
    _
  // Predicated region
  $region10: #{discriminator_forward.8} parent=0 // pred_check
    _
  $region11: #{discriminator_forward.8} parent=0 // pred_check_branch
    %13 = sbr.rel (0) target = $region13
  $region12: #{discriminator_forward.8} parent=0 // pred_region
    _
  $region13: #{discriminator_forward.8} parent=0 // pred_fallthru
    _
  %v15 = vld [vmem:[%s0] sm:$0xff]
  %v16 = vld [vmem:[%s0 + $0x8] sm:$0xff]
  %v17 = vld [vmem:[%s0 + $0x10] sm:$0xff]
  %v18 = vld [vmem:[%s0 + $0x18] sm:$0xff]
  %v19 = vld [vmem:[%s0 + $0x20] sm:$0xff]
  %v20 = vld [vmem:[%s0 + $0x28] sm:$0xff]
  %v21 = vld [vmem:[%s0 + $0x30] sm:$0xff]
  %v22 = vld [vmem:[%s0 + $0x38] sm:$0xff]
  %v23 = vld [vmem:[%s0 + $0x40] sm:$0xff]
  %v24 = vld [vmem:[%s0 + $0x48] sm:$0xff]
  %v25 = vld [vmem:[%s0 + $0x50] sm:$0xff]
  %v26 = vld [vmem:[%s0 + $0x58] sm:$0xff]
  %v27 = vld [vmem:[%s0 + $0x60] sm:$0xf]
  %v28 = vld [vmem:[%s1] sm:$0xf]
  %v29 = vld [vmem:[%s1 + $0x4] sm:$0xf]
  %v30 = vld [vmem:[%s1 + $0x8] sm:$0xf]
  %v31 = vld [vmem:[%s1 + $0xc] sm:$0xf]
  %v32 = vld [vmem:[%s1 + $0x10] sm:$0xf]
  %v33 = vld [vmem:[%s1 + $0x14] sm:$0xf]
  %v34 = vld [vmem:[%s1 + $0x18] sm:$0xf]
  %v35 = vld [vmem:[%s1 + $0x1c] sm:$0xf]
  %v36 = vld [vmem:[%s1 + $0x20] sm:$0xf]
  %v37 = vld [vmem:[%s1 + $0x24] sm:$0xf]
  %v38 = vld [vmem:[%s1 + $0x28] sm:$0xf]
  %v39 = vld [vmem:[%s1 + $0x2c] sm:$0xf]
  %v40 = vld [vmem:[%s1 + $0x30] sm:$0xf]
  %v41 = vld [vmem:[%s1 + $0x34] sm:$0xf]
  %v42 = vld [vmem:[%s1 + $0x38] sm:$0xf]
  %v43 = vld [vmem:[%s1 + $0x3c] sm:$0xf]
  %v44 = vld [vmem:[%s1 + $0x40] sm:$0xf]
  %v45 = vld [vmem:[%s1 + $0x44] sm:$0xf]
  %v46 = vld [vmem:[%s1 + $0x48] sm:$0xf]
  %v47 = vld [vmem:[%s1 + $0x4c] sm:$0xf]
  %v48 = vld [vmem:[%s1 + $0x50] sm:$0xf]
  %v49 = vld [vmem:[%s1 + $0x54] sm:$0xf]
  %v50 = vld [vmem:[%s1 + $0x58] sm:$0xf]
  %v51 = vld [vmem:[%s1 + $0x5c] sm:$0xf]
  %v52 = vld [vmem:[%s1 + $0x60] sm:$0xf]
  %v53 = vld [vmem:[%s1 + $0x64] sm:$0xf]
  %v54 = vld [vmem:[%s1 + $0x68] sm:$0xf]
  %v55 = vld [vmem:[%s1 + $0x6c] sm:$0xf]
  %v56 = vld [vmem:[%s1 + $0x70] sm:$0xf]
  %v57 = vld [vmem:[%s1 + $0x74] sm:$0xf]
  %v58 = vld [vmem:[%s1 + $0x78] sm:$0xf]
  %v59 = vld [vmem:[%s1 + $0x7c] sm:$0xf]
  %v60 = vld [vmem:[%s1 + $0x80] sm:$0xf]
  %v61 = vld [vmem:[%s1 + $0x84] sm:$0xf]
  %v62 = vld [vmem:[%s1 + $0x88] sm:$0xf]
  %v63 = vld [vmem:[%s1 + $0x8c] sm:$0xf]
  %v64 = vld [vmem:[%s1 + $0x90] sm:$0xf]
  %v65 = vld [vmem:[%s1 + $0x94] sm:$0xf]
  %v66 = vld [vmem:[%s1 + $0x98] sm:$0xf]
  %v67 = vld [vmem:[%s1 + $0x9c] sm:$0xf]
  %v68 = vld [vmem:[%s1 + $0xa0] sm:$0xf]
  %v69 = vld [vmem:[%s1 + $0xa4] sm:$0xf]
  %v70 = vld [vmem:[%s1 + $0xa8] sm:$0xf]
  %v71 = vld [vmem:[%s1 + $0xac] sm:$0xf]
  %v72 = vld [vmem:[%s1 + $0xb0] sm:$0xf]
  %v73 = vld [vmem:[%s1 + $0xb4] sm:$0xf]
  %v74 = vld [vmem:[%s1 + $0xb8] sm:$0xf]
  %v75 = vld [vmem:[%s1 + $0xbc] sm:$0xf]
  %v76 = vld [vmem:[%s1 + $0xc0] sm:$0xf]
  %v77 = vld [vmem:[%s1 + $0xc4] sm:$0xf]
  %v78 = vld [vmem:[%s1 + $0xc8] sm:$0xf]
  %v79 = vld [vmem:[%s1 + $0xcc] sm:$0xf]
  %v80 = vld [vmem:[%s1 + $0xd0] sm:$0xf]
  %v81 = vld [vmem:[%s1 + $0xd4] sm:$0xf]
  %v82 = vld [vmem:[%s1 + $0xd8] sm:$0xf]
  %v83 = vld [vmem:[%s1 + $0xdc] sm:$0xf]
  %v84 = vld [vmem:[%s1 + $0xe0] sm:$0xf]
  %v85 = vld [vmem:[%s1 + $0xe4] sm:$0xf]
  %v86 = vld [vmem:[%s1 + $0xe8] sm:$0xf]
  %v87 = vld [vmem:[%s1 + $0xec] sm:$0xf]
  %v88 = vld [vmem:[%s1 + $0xf0] sm:$0xf]
  %v89 = vld [vmem:[%s1 + $0xf4] sm:$0xf]
  %v90 = vld [vmem:[%s1 + $0xf8] sm:$0xf]
  %v91 = vld [vmem:[%s1 + $0xfc] sm:$0xf]
  %v92 = vld [vmem:[%s1 + $0x100] sm:$0xf]
  %v93 = vld [vmem:[%s1 + $0x104] sm:$0xf]
  %v94 = vld [vmem:[%s1 + $0x108] sm:$0xf]
  %v95 = vld [vmem:[%s1 + $0x10c] sm:$0xf]
  %v96 = vld [vmem:[%s1 + $0x110] sm:$0xf]
  %v97 = vld [vmem:[%s1 + $0x114] sm:$0xf]
  %v98 = vld [vmem:[%s1 + $0x118] sm:$0xf]
  %v99 = vld [vmem:[%s1 + $0x11c] sm:$0xf]
  %v100 = vld [vmem:[%s1 + $0x120] sm:$0xf]
  %v101 = vld [vmem:[%s1 + $0x124] sm:$0xf]
  %v102 = vld [vmem:[%s1 + $0x128] sm:$0xf]
  %v103 = vld [vmem:[%s1 + $0x12c] sm:$0xf]
  %v104 = vld [vmem:[%s1 + $0x130] sm:$0xf]
  %v105 = vld [vmem:[%s1 + $0x134] sm:$0xf]
  %v106 = vld [vmem:[%s1 + $0x138] sm:$0xf]
  %v107 = vld [vmem:[%s1 + $0x13c] sm:$0xf]
  %v108 = vld [vmem:[%s1 + $0x140] sm:$0xf]
  %v109 = vld [vmem:[%s1 + $0x144] sm:$0xf]
  %v110 = vld [vmem:[%s1 + $0x148] sm:$0xf]
  %v111 = vld [vmem:[%s1 + $0x14c] sm:$0xf]
  %v112 = vld [vmem:[%s1 + $0x150] sm:$0xf]
  %v113 = vld [vmem:[%s1 + $0x154] sm:$0xf]
  %v114 = vld [vmem:[%s1 + $0x158] sm:$0xf]
  %v115 = vld [vmem:[%s1 + $0x15c] sm:$0xf]
  %v116 = vld [vmem:[%s1 + $0x160] sm:$0xf]
  %v117 = vld [vmem:[%s1 + $0x164] sm:$0xf]
  %v118 = vld [vmem:[%s1 + $0x168] sm:$0xf]
  %v119 = vld [vmem:[%s1 + $0x16c] sm:$0xf]
  %v120 = vld [vmem:[%s1 + $0x170] sm:$0xf]
  %v121 = vld [vmem:[%s1 + $0x174] sm:$0xf]
  %v122 = vld [vmem:[%s1 + $0x178] sm:$0xf]
  %v123 = vld [vmem:[%s1 + $0x17c] sm:$0xf]
  %v124 = vld [vmem:[%s1 + $0x180] sm:$0xf]
  %v125 = vld [vmem:[%s1 + $0x184] sm:$0xf]
  %v126 = vld [vmem:[%s1 + $0x188] sm:$0xf]
  %v127 = vld [vmem:[%s1 + $0x18c] sm:$0xf]
  %v128 = vld [vmem:[%s1 + $0x190] sm:$0xf]
  %v129 = vld [vmem:[%s1 + $0x194] sm:$0xf]
  %v130 = vld [vmem:[%s1 + $0x198] sm:$0xf]
  %v131 = vld [vmem:[%s1 + $0x19c] sm:$0xf]
  %v132 = vld [vmem:[%s1 + $0x1a0] sm:$0xf]
  %v133 = vld [vmem:[%s1 + $0x1a4] sm:$0xf]
  %v134 = vld [vmem:[%s1 + $0x1a8] sm:$0xf]
  %v135 = vld [vmem:[%s1 + $0x1ac] sm:$0xf]
  %v136 = vld [vmem:[%s1 + $0x1b0] sm:$0xf]
  %v137 = vld [vmem:[%s1 + $0x1b4] sm:$0xf]
  %v138 = vld [vmem:[%s1 + $0x1b8] sm:$0xf]
  %v139 = vld [vmem:[%s1 + $0x1bc] sm:$0xf]
  %v140 = vld [vmem:[%s1 + $0x1c0] sm:$0xf]
  %v141 = vld [vmem:[%s1 + $0x1c4] sm:$0xf]
  %v142 = vld [vmem:[%s1 + $0x1c8] sm:$0xf]
  %v143 = vld [vmem:[%s1 + $0x1cc] sm:$0xf]
  %v144 = vld [vmem:[%s1 + $0x1d0] sm:$0xf]
  %v145 = vld [vmem:[%s1 + $0x1d4] sm:$0xf]
  %v146 = vld [vmem:[%s1 + $0x1d8] sm:$0xf]
  %v147 = vld [vmem:[%s1 + $0x1dc] sm:$0xf]
  %v148 = vld [vmem:[%s1 + $0x1e0] sm:$0xf]
  %v149 = vld [vmem:[%s1 + $0x1e4] sm:$0xf]
  %v150 = vld [vmem:[%s1 + $0x1e8] sm:$0xf]
  %v151 = vld [vmem:[%s1 + $0x1ec] sm:$0xf]
  %v152 = vld [vmem:[%s1 + $0x1f0] sm:$0xf]
  %v153 = vld [vmem:[%s1 + $0x1f4] sm:$0xf]
  %v154 = vld [vmem:[%s1 + $0x1f8] sm:$0xf]
  %v155 = vld [vmem:[%s1 + $0x1fc] sm:$0xf]
  %v156 = vld [vmem:[%s1 + $0x200] sm:$0xf]
  %v157 = vld [vmem:[%s1 + $0x204] sm:$0xf]
  %v158 = vld [vmem:[%s1 + $0x208] sm:$0xf]
  %v159 = vld [vmem:[%s1 + $0x20c] sm:$0xf]
  %v160 = vld [vmem:[%s1 + $0x210] sm:$0xf]
  %v161 = vld [vmem:[%s1 + $0x214] sm:$0xf]
  %v162 = vld [vmem:[%s1 + $0x218] sm:$0xf]
  %v163 = vld [vmem:[%s1 + $0x21c] sm:$0xf]
  %v164 = vld [vmem:[%s1 + $0x220] sm:$0xf]
  %v165 = vld [vmem:[%s1 + $0x224] sm:$0xf]
  %v166 = vld [vmem:[%s1 + $0x228] sm:$0xf]
  %v167 = vld [vmem:[%s1 + $0x22c] sm:$0xf]
  %v168 = vld [vmem:[%s1 + $0x230] sm:$0xf]
  %v169 = vld [vmem:[%s1 + $0x234] sm:$0xf]
  %v170 = vld [vmem:[%s1 + $0x238] sm:$0xf]
  %v171 = vld [vmem:[%s1 + $0x23c] sm:$0xf]
  %v172 = vld [vmem:[%s1 + $0x240] sm:$0xf]
  %v173 = vld [vmem:[%s1 + $0x244] sm:$0xf]
  %v174 = vld [vmem:[%s1 + $0x248] sm:$0xf]
  %v175 = vld [vmem:[%s1 + $0x24c] sm:$0xf]
  %v176 = vld [vmem:[%s1 + $0x250] sm:$0xf]
  %v177 = vld [vmem:[%s1 + $0x254] sm:$0xf]
  %v178 = vld [vmem:[%s1 + $0x258] sm:$0xf]
  %v179 = vld [vmem:[%s1 + $0x25c] sm:$0xf]
  %v180 = vld [vmem:[%s1 + $0x260] sm:$0xf]
  %v181 = vld [vmem:[%s1 + $0x264] sm:$0xf]
  %v182 = vld [vmem:[%s1 + $0x268] sm:$0xf]
  %v183 = vld [vmem:[%s1 + $0x26c] sm:$0xf]
  %v184 = vld [vmem:[%s1 + $0x270] sm:$0xf]
  %v185 = vld [vmem:[%s1 + $0x274] sm:$0xf]
  %v186 = vld [vmem:[%s1 + $0x278] sm:$0xf]
  %v187 = vld [vmem:[%s1 + $0x27c] sm:$0xf]
  %v188 = vld [vmem:[%s1 + $0x280] sm:$0xf]
  %v189 = vld [vmem:[%s1 + $0x284] sm:$0xf]
  %v190 = vld [vmem:[%s1 + $0x288] sm:$0xf]
  %v191 = vld [vmem:[%s1 + $0x28c] sm:$0xf]
  %v192 = vld [vmem:[%s1 + $0x290] sm:$0xf]
  %v193 = vld [vmem:[%s1 + $0x294] sm:$0xf]
  %v194 = vld [vmem:[%s1 + $0x298] sm:$0xf]
  %v195 = vld [vmem:[%s1 + $0x29c] sm:$0xf]
  %v196 = vld [vmem:[%s1 + $0x2a0] sm:$0xf]
  %v197 = vld [vmem:[%s1 + $0x2a4] sm:$0xf]
  %v198 = vld [vmem:[%s1 + $0x2a8] sm:$0xf]
  %v199 = vld [vmem:[%s1 + $0x2ac] sm:$0xf]
  %v200 = vld [vmem:[%s1 + $0x2b0] sm:$0xf]
  %v201 = vld [vmem:[%s1 + $0x2b4] sm:$0xf]
  %v202 = vld [vmem:[%s1 + $0x2b8] sm:$0xf]
  %v203 = vld [vmem:[%s1 + $0x2bc] sm:$0xf]
  %v204 = vld [vmem:[%s1 + $0x2c0] sm:$0xf]
  %v205 = vld [vmem:[%s1 + $0x2c4] sm:$0xf]
  %v206 = vld [vmem:[%s1 + $0x2c8] sm:$0xf]
  %v207 = vld [vmem:[%s1 + $0x2cc] sm:$0xf]
  %v208 = vld [vmem:[%s1 + $0x2d0] sm:$0xf]
  %v209 = vld [vmem:[%s1 + $0x2d4] sm:$0xf]
  %v210 = vld [vmem:[%s1 + $0x2d8] sm:$0xf]
  %v211 = vld [vmem:[%s1 + $0x2dc] sm:$0xf]
  %v212 = vld [vmem:[%s1 + $0x2e0] sm:$0xf]
  %v213 = vld [vmem:[%s1 + $0x2e4] sm:$0xf]
  %v214 = vld [vmem:[%s1 + $0x2e8] sm:$0xf]
  %v215 = vld [vmem:[%s1 + $0x2ec] sm:$0xf]
  %v216 = vld [vmem:[%s1 + $0x2f0] sm:$0xf]
  %v217 = vld [vmem:[%s1 + $0x2f4] sm:$0xf]
  %v218 = vld [vmem:[%s1 + $0x2f8] sm:$0xf]
  %v219 = vld [vmem:[%s1 + $0x2fc] sm:$0xf]
  %v220 = vld [vmem:[%s1 + $0x300] sm:$0xf]
  %v221 = vld [vmem:[%s1 + $0x304] sm:$0xf]
  %v222 = vld [vmem:[%s1 + $0x308] sm:$0xf]
  %v223 = vld [vmem:[%s1 + $0x30c] sm:$0xf]
  %v224 = vld [vmem:[%s1 + $0x310] sm:$0xf]
  %v225 = vld [vmem:[%s1 + $0x314] sm:$0xf]
  %v226 = vld [vmem:[%s1 + $0x318] sm:$0xf]
  %v227 = vld [vmem:[%s1 + $0x31c] sm:$0xf]
  %v228 = vld [vmem:[%s1 + $0x320] sm:$0xf]
  %v229 = vld [vmem:[%s1 + $0x324] sm:$0xf]
  %v230 = vld [vmem:[%s1 + $0x328] sm:$0xf]
  %v231 = vld [vmem:[%s1 + $0x32c] sm:$0xf]
  %v232 = vld [vmem:[%s1 + $0x330] sm:$0xf]
  %v233 = vld [vmem:[%s1 + $0x334] sm:$0xf]
  %v234 = vld [vmem:[%s1 + $0x338] sm:$0xf]
  %v235 = vld [vmem:[%s1 + $0x33c] sm:$0xf]
  %v236 = vld [vmem:[%s1 + $0x340] sm:$0xf]
  %v237 = vld [vmem:[%s1 + $0x344] sm:$0xf]
  %v238 = vld [vmem:[%s1 + $0x348] sm:$0xf]
  %v239 = vld [vmem:[%s1 + $0x34c] sm:$0xf]
  %v240 = vld [vmem:[%s1 + $0x350] sm:$0xf]
  %v241 = vld [vmem:[%s1 + $0x354] sm:$0xf]
  %v242 = vld [vmem:[%s1 + $0x358] sm:$0xf]
  %v243 = vld [vmem:[%s1 + $0x35c] sm:$0xf]
  %v244 = vld [vmem:[%s1 + $0x360] sm:$0xf]
  %v245 = vld [vmem:[%s1 + $0x364] sm:$0xf]
  %v246 = vld [vmem:[%s1 + $0x368] sm:$0xf]
  %v247 = vld [vmem:[%s1 + $0x36c] sm:$0xf]
  %v248 = vld [vmem:[%s1 + $0x370] sm:$0xf]
  %v249 = vld [vmem:[%s1 + $0x374] sm:$0xf]
  %v250 = vld [vmem:[%s1 + $0x378] sm:$0xf]
  %v251 = vld [vmem:[%s1 + $0x37c] sm:$0xf]
  %v252 = vld [vmem:[%s1 + $0x380] sm:$0xf]
  %v253 = vld [vmem:[%s1 + $0x384] sm:$0xf]
  %v254 = vld [vmem:[%s1 + $0x388] sm:$0xf]
  %v255 = vld [vmem:[%s1 + $0x38c] sm:$0xf]
  %v256 = vld [vmem:[%s1 + $0x390] sm:$0xf]
  %v257 = vld [vmem:[%s1 + $0x394] sm:$0xf]
  %v258 = vld [vmem:[%s1 + $0x398] sm:$0xf]
  %v259 = vld [vmem:[%s1 + $0x39c] sm:$0xf]
  %v260 = vld [vmem:[%s1 + $0x3a0] sm:$0xf]
  %v261 = vld [vmem:[%s1 + $0x3a4] sm:$0xf]
  %v262 = vld [vmem:[%s1 + $0x3a8] sm:$0xf]
  %v263 = vld [vmem:[%s1 + $0x3ac] sm:$0xf]
  %v264 = vld [vmem:[%s1 + $0x3b0] sm:$0xf]
  %v265 = vld [vmem:[%s1 + $0x3b4] sm:$0xf]
  %v266 = vld [vmem:[%s1 + $0x3b8] sm:$0xf]
  %v267 = vld [vmem:[%s1 + $0x3bc] sm:$0xf]
  %v268 = vld [vmem:[%s1 + $0x3c0] sm:$0xf]
  %v269 = vld [vmem:[%s1 + $0x3c4] sm:$0xf]
  %v270 = vld [vmem:[%s1 + $0x3c8] sm:$0xf]
  %v271 = vld [vmem:[%s1 + $0x3cc] sm:$0xf]
  %v272 = vld [vmem:[%s1 + $0x3d0] sm:$0xf]
  %v273 = vld [vmem:[%s1 + $0x3d4] sm:$0xf]
  %v274 = vld [vmem:[%s1 + $0x3d8] sm:$0xf]
  %v275 = vld [vmem:[%s1 + $0x3dc] sm:$0xf]
  %v276 = vld [vmem:[%s1 + $0x3e0] sm:$0xf]
  %v277 = vld [vmem:[%s1 + $0x3e4] sm:$0xf]
  %v278 = vld [vmem:[%s1 + $0x3e8] sm:$0xf]
  %v279 = vld [vmem:[%s1 + $0x3ec] sm:$0xf]
  %v280 = vld [vmem:[%s1 + $0x3f0] sm:$0xf]
  %v281 = vld [vmem:[%s1 + $0x3f4] sm:$0xf]
  %v282 = vld [vmem:[%s1 + $0x3f8] sm:$0xf]
  %v283 = vld [vmem:[%s1 + $0x3fc] sm:$0xf]
  %v284 = vld [vmem:[%s1 + $0x400] sm:$0xf]
  %v285 = vld [vmem:[%s1 + $0x404] sm:$0xf]
  %v286 = vld [vmem:[%s1 + $0x408] sm:$0xf]
  %v287 = vld [vmem:[%s1 + $0x40c] sm:$0xf]
  %v288 = vld [vmem:[%s1 + $0x410] sm:$0xf]
  %v289 = vld [vmem:[%s1 + $0x414] sm:$0xf]
  %v290 = vld [vmem:[%s1 + $0x418] sm:$0xf]
  %v291 = vld [vmem:[%s1 + $0x41c] sm:$0xf]
  %v292 = vld [vmem:[%s1 + $0x420] sm:$0xf]
  %v293 = vld [vmem:[%s1 + $0x424] sm:$0xf]
  %v294 = vld [vmem:[%s1 + $0x428] sm:$0xf]
  %v295 = vld [vmem:[%s1 + $0x42c] sm:$0xf]
  %v296 = vld [vmem:[%s1 + $0x430] sm:$0xf]
  %v297 = vld [vmem:[%s1 + $0x434] sm:$0xf]
  %v298 = vld [vmem:[%s1 + $0x438] sm:$0xf]
  %v299 = vld [vmem:[%s1 + $0x43c] sm:$0xf]
  %v300 = vld [vmem:[%s1 + $0x440] sm:$0xf]
  %v301 = vld [vmem:[%s1 + $0x444] sm:$0xf]
  %v302 = vld [vmem:[%s1 + $0x448] sm:$0xf]
  %v303 = vld [vmem:[%s1 + $0x44c] sm:$0xf]
  %v304 = vld [vmem:[%s1 + $0x450] sm:$0xf]
  %v305 = vld [vmem:[%s1 + $0x454] sm:$0xf]
  %v306 = vld [vmem:[%s1 + $0x458] sm:$0xf]
  %v307 = vld [vmem:[%s1 + $0x45c] sm:$0xf]
  %v308 = vld [vmem:[%s1 + $0x460] sm:$0xf]
  %v309 = vld [vmem:[%s1 + $0x464] sm:$0xf]
  %v310 = vld [vmem:[%s1 + $0x468] sm:$0xf]
  %v311 = vld [vmem:[%s1 + $0x46c] sm:$0xf]
  %v312 = vld [vmem:[%s1 + $0x470] sm:$0xf]
  %v313 = vld [vmem:[%s1 + $0x474] sm:$0xf]
  %v314 = vld [vmem:[%s1 + $0x478] sm:$0xf]
  %v315 = vld [vmem:[%s1 + $0x47c] sm:$0xf]
  %v316 = vld [vmem:[%s1 + $0x480] sm:$0xf]
  %v317 = vld [vmem:[%s1 + $0x484] sm:$0xf]
  %v318 = vld [vmem:[%s1 + $0x488] sm:$0xf]
  %v319 = vld [vmem:[%s1 + $0x48c] sm:$0xf]
  %v320 = vld [vmem:[%s1 + $0x490] sm:$0xf]
  %v321 = vld [vmem:[%s1 + $0x494] sm:$0xf]
  %v322 = vld [vmem:[%s1 + $0x498] sm:$0xf]
  %v323 = vld [vmem:[%s1 + $0x49c] sm:$0xf]
  %v324 = vld [vmem:[%s1 + $0x4a0] sm:$0xf]
  %v325 = vld [vmem:[%s1 + $0x4a4] sm:$0xf]
  %v326 = vld [vmem:[%s1 + $0x4a8] sm:$0xf]
  %v327 = vld [vmem:[%s1 + $0x4ac] sm:$0xf]
  %v328 = vld [vmem:[%s1 + $0x4b0] sm:$0xf]
  %v329 = vld [vmem:[%s1 + $0x4b4] sm:$0xf]
  %v330 = vld [vmem:[%s1 + $0x4b8] sm:$0xf]
  %v331 = vld [vmem:[%s1 + $0x4bc] sm:$0xf]
  %v332 = vld [vmem:[%s1 + $0x4c0] sm:$0xf]
  %v333 = vld [vmem:[%s1 + $0x4c4] sm:$0xf]
  %v334 = vld [vmem:[%s1 + $0x4c8] sm:$0xf]
  %v335 = vld [vmem:[%s1 + $0x4cc] sm:$0xf]
  %v336 = vld [vmem:[%s1 + $0x4d0] sm:$0xf]
  %v337 = vld [vmem:[%s1 + $0x4d4] sm:$0xf]
  %v338 = vld [vmem:[%s1 + $0x4d8] sm:$0xf]
  %v339 = vld [vmem:[%s1 + $0x4dc] sm:$0xf]
  %v340 = vld [vmem:[%s1 + $0x4e0] sm:$0xf]
  %v341 = vld [vmem:[%s1 + $0x4e4] sm:$0xf]
  %v342 = vld [vmem:[%s1 + $0x4e8] sm:$0xf]
  %v343 = vld [vmem:[%s1 + $0x4ec] sm:$0xf]
  %v344 = vld [vmem:[%s1 + $0x4f0] sm:$0xf]
  %v345 = vld [vmem:[%s1 + $0x4f4] sm:$0xf]
  %v346 = vld [vmem:[%s1 + $0x4f8] sm:$0xf]
  %v347 = vld [vmem:[%s1 + $0x4fc] sm:$0xf]
  %v348 = vld [vmem:[%s1 + $0x500] sm:$0xf]
  %v349 = vld [vmem:[%s1 + $0x504] sm:$0xf]
  %v350 = vld [vmem:[%s1 + $0x508] sm:$0xf]
  %v351 = vld [vmem:[%s1 + $0x50c] sm:$0xf]
  %v352 = vld [vmem:[%s1 + $0x510] sm:$0xf]
  %v353 = vld [vmem:[%s1 + $0x514] sm:$0xf]
  %v354 = vld [vmem:[%s1 + $0x518] sm:$0xf]
  %v355 = vld [vmem:[%s1 + $0x51c] sm:$0xf]
  %v356 = vld [vmem:[%s1 + $0x520] sm:$0xf]
  %v357 = vld [vmem:[%s1 + $0x524] sm:$0xf]
  %v358 = vld [vmem:[%s1 + $0x528] sm:$0xf]
  %v359 = vld [vmem:[%s1 + $0x52c] sm:$0xf]
  %v360 = vld [vmem:[%s1 + $0x530] sm:$0xf]
  %v361 = vld [vmem:[%s1 + $0x534] sm:$0xf]
  %v362 = vld [vmem:[%s1 + $0x538] sm:$0xf]
  %v363 = vld [vmem:[%s1 + $0x53c] sm:$0xf]
  %v364 = vld [vmem:[%s1 + $0x540] sm:$0xf]
  %v365 = vld [vmem:[%s1 + $0x544] sm:$0xf]
  %v366 = vld [vmem:[%s1 + $0x548] sm:$0xf]
  %v367 = vld [vmem:[%s1 + $0x54c] sm:$0xf]
  %v368 = vld [vmem:[%s1 + $0x550] sm:$0xf]
  %v369 = vld [vmem:[%s1 + $0x554] sm:$0xf]
  %v370 = vld [vmem:[%s1 + $0x558] sm:$0xf]
  %v371 = vld [vmem:[%s1 + $0x55c] sm:$0xf]
  %v372 = vld [vmem:[%s1 + $0x560] sm:$0xf]
  %v373 = vld [vmem:[%s1 + $0x564] sm:$0xf]
  %v374 = vld [vmem:[%s1 + $0x568] sm:$0xf]
  %v375 = vld [vmem:[%s1 + $0x56c] sm:$0xf]
  %v376 = vld [vmem:[%s1 + $0x570] sm:$0xf]
  %v377 = vld [vmem:[%s1 + $0x574] sm:$0xf]
  %v378 = vld [vmem:[%s1 + $0x578] sm:$0xf]
  %v379 = vld [vmem:[%s1 + $0x57c] sm:$0xf]
  %v380 = vld [vmem:[%s1 + $0x580] sm:$0xf]
  %v381 = vld [vmem:[%s1 + $0x584] sm:$0xf]
  %v382 = vld [vmem:[%s1 + $0x588] sm:$0xf]
  %v383 = vld [vmem:[%s1 + $0x58c] sm:$0xf]
  %v384 = vld [vmem:[%s1 + $0x590] sm:$0xf]
  %v385 = vld [vmem:[%s1 + $0x594] sm:$0xf]
  %v386 = vld [vmem:[%s1 + $0x598] sm:$0xf]
  %v387 = vld [vmem:[%s1 + $0x59c] sm:$0xf]
  %v388 = vld [vmem:[%s1 + $0x5a0] sm:$0xf]
  %v389 = vld [vmem:[%s1 + $0x5a4] sm:$0xf]
  %v390 = vld [vmem:[%s1 + $0x5a8] sm:$0xf]
  %v391 = vld [vmem:[%s1 + $0x5ac] sm:$0xf]
  %v392 = vld [vmem:[%s1 + $0x5b0] sm:$0xf]
  %v393 = vld [vmem:[%s1 + $0x5b4] sm:$0xf]
  %v394 = vld [vmem:[%s1 + $0x5b8] sm:$0xf]
  %v395 = vld [vmem:[%s1 + $0x5bc] sm:$0xf]
  %v396 = vld [vmem:[%s1 + $0x5c0] sm:$0xf]
  %v397 = vld [vmem:[%s1 + $0x5c4] sm:$0xf]
  %v398 = vld [vmem:[%s1 + $0x5c8] sm:$0xf]
  %v399 = vld [vmem:[%s1 + $0x5cc] sm:$0xf]
  %v400 = vld [vmem:[%s1 + $0x5d0] sm:$0xf]
  %v401 = vld [vmem:[%s1 + $0x5d4] sm:$0xf]
  %v402 = vld [vmem:[%s1 + $0x5d8] sm:$0xf]
  %v403 = vld [vmem:[%s1 + $0x5dc] sm:$0xf]
  %v404 = vld [vmem:[%s1 + $0x5e0] sm:$0xf]
  %v405 = vld [vmem:[%s1 + $0x5e4] sm:$0xf]
  %v406 = vld [vmem:[%s1 + $0x5e8] sm:$0xf]
  %v407 = vld [vmem:[%s1 + $0x5ec] sm:$0xf]
  %v408 = vld [vmem:[%s1 + $0x5f0] sm:$0xf]
  %v409 = vld [vmem:[%s1 + $0x5f4] sm:$0xf]
  %v410 = vld [vmem:[%s1 + $0x5f8] sm:$0xf]
  %v411 = vld [vmem:[%s1 + $0x5fc] sm:$0xf]
  %v412 = vld [vmem:[%s1 + $0x600] sm:$0xf]
  %v413 = vld [vmem:[%s1 + $0x604] sm:$0xf]
  %v414 = vld [vmem:[%s1 + $0x608] sm:$0xf]
  %v415 = vld [vmem:[%s1 + $0x60c] sm:$0xf]
  %v416 = vld [vmem:[%s1 + $0x610] sm:$0xf]
  %v417 = vld [vmem:[%s1 + $0x614] sm:$0xf]
  %v418 = vld [vmem:[%s1 + $0x618] sm:$0xf]
  %v419 = vld [vmem:[%s1 + $0x61c] sm:$0xf]
  %v420 = vld [vmem:[%s1 + $0x620] sm:$0xf]
  %v421 = vld [vmem:[%s1 + $0x624] sm:$0xf]
  %v422 = vld [vmem:[%s1 + $0x628] sm:$0xf]
  %v423 = vld [vmem:[%s1 + $0x62c] sm:$0xf]
  %v424 = vld [vmem:[%s1 + $0x630] sm:$0xf]
  %v425 = vld [vmem:[%s1 + $0x634] sm:$0xf]
  %v426 = vld [vmem:[%s1 + $0x638] sm:$0xf]
  %v427 = vld [vmem:[%s1 + $0x63c] sm:$0xf]
  %v428 = vld [vmem:[%s2] sm:$0x1]
  %v430 = vlaneseq
  %v431 = vshrl.u32 %v430, 7
  %v432 = vsub.s32 0, %v431
  %v433 = vrot.slane %v428, %v432
  %v448 = vunpack.c.l.b16 %v15
  %v449 = vunpack.c.h.b16 %v15
  %v450 = vunpack.c.l.b16 %v16
  %v451 = vunpack.c.h.b16 %v16
  %v452 = vunpack.c.l.b16 %v17
  %v453 = vunpack.c.h.b16 %v17
  %v454 = vunpack.c.l.b16 %v18
  %v455 = vunpack.c.h.b16 %v18
  %v456 = vunpack.c.l.b16 %v19
  %v457 = vunpack.c.h.b16 %v19
  %v458 = vunpack.c.l.b16 %v20
  %v459 = vunpack.c.h.b16 %v20
  %v460 = vunpack.c.l.b16 %v21
  %v461 = vunpack.c.h.b16 %v21
  %v462 = vunpack.c.l.b16 %v22
  %v463 = vunpack.c.h.b16 %v22
  %v464 = vunpack.c.l.b16 %v23
  %v465 = vunpack.c.h.b16 %v23
  %v466 = vunpack.c.l.b16 %v24
  %v467 = vunpack.c.h.b16 %v24
  %v468 = vunpack.c.l.b16 %v25
  %v469 = vunpack.c.h.b16 %v25
  %v470 = vunpack.c.l.b16 %v26
  %v471 = vunpack.c.h.b16 %v26
  %v472 = vunpack.c.l.b16 %v27
  %v473 = vpack.c.b16 %v448, %v448
  %v474 = vpack.c.b16 %v449, %v449
  %v475 = vpack.c.b16 %v450, %v450
  %v476 = vpack.c.b16 %v451, %v451
  %v477 = vpack.c.b16 %v452, %v452
  %v478 = vpack.c.b16 %v453, %v453
  %v479 = vpack.c.b16 %v454, %v454
  %v480 = vpack.c.b16 %v455, %v455
  %v481 = vpack.c.b16 %v456, %v456
  %v482 = vpack.c.b16 %v457, %v457
  %v483 = vpack.c.b16 %v458, %v458
  %v484 = vpack.c.b16 %v459, %v459
  %v485 = vpack.c.b16 %v460, %v460
  %v486 = vpack.c.b16 %v461, %v461
  %v487 = vpack.c.b16 %v462, %v462
  %v488 = vpack.c.b16 %v463, %v463
  %v489 = vpack.c.b16 %v464, %v464
  %v490 = vpack.c.b16 %v465, %v465
  %v491 = vpack.c.b16 %v466, %v466
  %v492 = vpack.c.b16 %v467, %v467
  %v493 = vpack.c.b16 %v468, %v468
  %v494 = vpack.c.b16 %v469, %v469
  %v495 = vpack.c.b16 %v470, %v470
  %v496 = vpack.c.b16 %v471, %v471
  %v497 = vpack.c.b16 %v472, %v472
  %v923 = vunpack.c.l.b16 %v28
  %v924 = vunpack.c.l.b16 %v29
  %v925 = vunpack.c.l.b16 %v30
  %v926 = vunpack.c.l.b16 %v31
  %v927 = vunpack.c.l.b16 %v32
  %v928 = vunpack.c.l.b16 %v33
  %v929 = vunpack.c.l.b16 %v34
  %v930 = vunpack.c.l.b16 %v35
  %v931 = vunpack.c.l.b16 %v36
  %v932 = vunpack.c.l.b16 %v37
  %v933 = vunpack.c.l.b16 %v38
  %v934 = vunpack.c.l.b16 %v39
  %v935 = vunpack.c.l.b16 %v40
  %v936 = vunpack.c.l.b16 %v41
  %v937 = vunpack.c.l.b16 %v42
  %v938 = vunpack.c.l.b16 %v43
  %v939 = vunpack.c.l.b16 %v44
  %v940 = vunpack.c.l.b16 %v45
  %v941 = vunpack.c.l.b16 %v46
  %v942 = vunpack.c.l.b16 %v47
  %v943 = vunpack.c.l.b16 %v48
  %v944 = vunpack.c.l.b16 %v49
  %v945 = vunpack.c.l.b16 %v50
  %v946 = vunpack.c.l.b16 %v51
  %v947 = vunpack.c.l.b16 %v52
  %v948 = vunpack.c.l.b16 %v53
  %v949 = vunpack.c.l.b16 %v54
  %v950 = vunpack.c.l.b16 %v55
  %v951 = vunpack.c.l.b16 %v56
  %v952 = vunpack.c.l.b16 %v57
  %v953 = vunpack.c.l.b16 %v58
  %v954 = vunpack.c.l.b16 %v59
  %v955 = vunpack.c.l.b16 %v60
  %v956 = vunpack.c.l.b16 %v61
  %v957 = vunpack.c.l.b16 %v62
  %v958 = vunpack.c.l.b16 %v63
  %v959 = vunpack.c.l.b16 %v64
  %v960 = vunpack.c.l.b16 %v65
  %v961 = vunpack.c.l.b16 %v66
  %v962 = vunpack.c.l.b16 %v67
  %v963 = vunpack.c.l.b16 %v68
  %v964 = vunpack.c.l.b16 %v69
  %v965 = vunpack.c.l.b16 %v70
  %v966 = vunpack.c.l.b16 %v71
  %v967 = vunpack.c.l.b16 %v72
  %v968 = vunpack.c.l.b16 %v73
  %v969 = vunpack.c.l.b16 %v74
  %v970 = vunpack.c.l.b16 %v75
  %v971 = vunpack.c.l.b16 %v76
  %v972 = vunpack.c.l.b16 %v77
  %v973 = vunpack.c.l.b16 %v78
  %v974 = vunpack.c.l.b16 %v79
  %v975 = vunpack.c.l.b16 %v80
  %v976 = vunpack.c.l.b16 %v81
  %v977 = vunpack.c.l.b16 %v82
  %v978 = vunpack.c.l.b16 %v83
  %v979 = vunpack.c.l.b16 %v84
  %v980 = vunpack.c.l.b16 %v85
  %v981 = vunpack.c.l.b16 %v86
  %v982 = vunpack.c.l.b16 %v87
  %v983 = vunpack.c.l.b16 %v88
  %v984 = vunpack.c.l.b16 %v89
  %v985 = vunpack.c.l.b16 %v90
  %v986 = vunpack.c.l.b16 %v91
  %v987 = vunpack.c.l.b16 %v92
  %v988 = vunpack.c.l.b16 %v93
  %v989 = vunpack.c.l.b16 %v94
  %v990 = vunpack.c.l.b16 %v95
  %v991 = vunpack.c.l.b16 %v96
  %v992 = vunpack.c.l.b16 %v97
  %v993 = vunpack.c.l.b16 %v98
  %v994 = vunpack.c.l.b16 %v99
  %v995 = vunpack.c.l.b16 %v100
  %v996 = vunpack.c.l.b16 %v101
  %v997 = vunpack.c.l.b16 %v102
  %v998 = vunpack.c.l.b16 %v103
  %v999 = vunpack.c.l.b16 %v104
  %v1000 = vunpack.c.l.b16 %v105
  %v1001 = vunpack.c.l.b16 %v106
  %v1002 = vunpack.c.l.b16 %v107
  %v1003 = vunpack.c.l.b16 %v108
  %v1004 = vunpack.c.l.b16 %v109
  %v1005 = vunpack.c.l.b16 %v110
  %v1006 = vunpack.c.l.b16 %v111
  %v1007 = vunpack.c.l.b16 %v112
  %v1008 = vunpack.c.l.b16 %v113
  %v1009 = vunpack.c.l.b16 %v114
  %v1010 = vunpack.c.l.b16 %v115
  %v1011 = vunpack.c.l.b16 %v116
  %v1012 = vunpack.c.l.b16 %v117
  %v1013 = vunpack.c.l.b16 %v118
  %v1014 = vunpack.c.l.b16 %v119
  %v1015 = vunpack.c.l.b16 %v120
  %v1016 = vunpack.c.l.b16 %v121
  %v1017 = vunpack.c.l.b16 %v122
  %v1018 = vunpack.c.l.b16 %v123
  %v1019 = vunpack.c.l.b16 %v124
  %v1020 = vunpack.c.l.b16 %v125
  %v1021 = vunpack.c.l.b16 %v126
  %v1022 = vunpack.c.l.b16 %v127
  %v1023 = vunpack.c.l.b16 %v128
  %v1024 = vunpack.c.l.b16 %v129
  %v1025 = vunpack.c.l.b16 %v130
  %v1026 = vunpack.c.l.b16 %v131
  %v1027 = vunpack.c.l.b16 %v132
  %v1028 = vunpack.c.l.b16 %v133
  %v1029 = vunpack.c.l.b16 %v134
  %v1030 = vunpack.c.l.b16 %v135
  %v1031 = vunpack.c.l.b16 %v136
  %v1032 = vunpack.c.l.b16 %v137
  %v1033 = vunpack.c.l.b16 %v138
  %v1034 = vunpack.c.l.b16 %v139
  %v1035 = vunpack.c.l.b16 %v140
  %v1036 = vunpack.c.l.b16 %v141
  %v1037 = vunpack.c.l.b16 %v142
  %v1038 = vunpack.c.l.b16 %v143
  %v1039 = vunpack.c.l.b16 %v144
  %v1040 = vunpack.c.l.b16 %v145
  %v1041 = vunpack.c.l.b16 %v146
  %v1042 = vunpack.c.l.b16 %v147
  %v1043 = vunpack.c.l.b16 %v148
  %v1044 = vunpack.c.l.b16 %v149
  %v1045 = vunpack.c.l.b16 %v150
  %v1046 = vunpack.c.l.b16 %v151
  %v1047 = vunpack.c.l.b16 %v152
  %v1048 = vunpack.c.l.b16 %v153
  %v1049 = vunpack.c.l.b16 %v154
  %v1050 = vunpack.c.l.b16 %v155
  %v1051 = vunpack.c.l.b16 %v156
  %v1052 = vunpack.c.l.b16 %v157
  %v1053 = vunpack.c.l.b16 %v158
  %v1054 = vunpack.c.l.b16 %v159
  %v1055 = vunpack.c.l.b16 %v160
  %v1056 = vunpack.c.l.b16 %v161
  %v1057 = vunpack.c.l.b16 %v162
  %v1058 = vunpack.c.l.b16 %v163
  %v1059 = vunpack.c.l.b16 %v164
  %v1060 = vunpack.c.l.b16 %v165
  %v1061 = vunpack.c.l.b16 %v166
  %v1062 = vunpack.c.l.b16 %v167
  %v1063 = vunpack.c.l.b16 %v168
  %v1064 = vunpack.c.l.b16 %v169
  %v1065 = vunpack.c.l.b16 %v170
  %v1066 = vunpack.c.l.b16 %v171
  %v1067 = vunpack.c.l.b16 %v172
  %v1068 = vunpack.c.l.b16 %v173
  %v1069 = vunpack.c.l.b16 %v174
  %v1070 = vunpack.c.l.b16 %v175
  %v1071 = vunpack.c.l.b16 %v176
  %v1072 = vunpack.c.l.b16 %v177
  %v1073 = vunpack.c.l.b16 %v178
  %v1074 = vunpack.c.l.b16 %v179
  %v1075 = vunpack.c.l.b16 %v180
  %v1076 = vunpack.c.l.b16 %v181
  %v1077 = vunpack.c.l.b16 %v182
  %v1078 = vunpack.c.l.b16 %v183
  %v1079 = vunpack.c.l.b16 %v184
  %v1080 = vunpack.c.l.b16 %v185
  %v1081 = vunpack.c.l.b16 %v186
  %v1082 = vunpack.c.l.b16 %v187
  %v1083 = vunpack.c.l.b16 %v188
  %v1084 = vunpack.c.l.b16 %v189
  %v1085 = vunpack.c.l.b16 %v190
  %v1086 = vunpack.c.l.b16 %v191
  %v1087 = vunpack.c.l.b16 %v192
  %v1088 = vunpack.c.l.b16 %v193
  %v1089 = vunpack.c.l.b16 %v194
  %v1090 = vunpack.c.l.b16 %v195
  %v1091 = vunpack.c.l.b16 %v196
  %v1092 = vunpack.c.l.b16 %v197
  %v1093 = vunpack.c.l.b16 %v198
  %v1094 = vunpack.c.l.b16 %v199
  %v1095 = vunpack.c.l.b16 %v200
  %v1096 = vunpack.c.l.b16 %v201
  %v1097 = vunpack.c.l.b16 %v202
  %v1098 = vunpack.c.l.b16 %v203
  %v1099 = vunpack.c.l.b16 %v204
  %v1100 = vunpack.c.l.b16 %v205
  %v1101 = vunpack.c.l.b16 %v206
  %v1102 = vunpack.c.l.b16 %v207
  %v1103 = vunpack.c.l.b16 %v208
  %v1104 = vunpack.c.l.b16 %v209
  %v1105 = vunpack.c.l.b16 %v210
  %v1106 = vunpack.c.l.b16 %v211
  %v1107 = vunpack.c.l.b16 %v212
  %v1108 = vunpack.c.l.b16 %v213
  %v1109 = vunpack.c.l.b16 %v214
  %v1110 = vunpack.c.l.b16 %v215
  %v1111 = vunpack.c.l.b16 %v216
  %v1112 = vunpack.c.l.b16 %v217
  %v1113 = vunpack.c.l.b16 %v218
  %v1114 = vunpack.c.l.b16 %v219
  %v1115 = vunpack.c.l.b16 %v220
  %v1116 = vunpack.c.l.b16 %v221
  %v1117 = vunpack.c.l.b16 %v222
  %v1118 = vunpack.c.l.b16 %v223
  %v1119 = vunpack.c.l.b16 %v224
  %v1120 = vunpack.c.l.b16 %v225
  %v1121 = vunpack.c.l.b16 %v226
  %v1122 = vunpack.c.l.b16 %v227
  %v1123 = vunpack.c.l.b16 %v228
  %v1124 = vunpack.c.l.b16 %v229
  %v1125 = vunpack.c.l.b16 %v230
  %v1126 = vunpack.c.l.b16 %v231
  %v1127 = vunpack.c.l.b16 %v232
  %v1128 = vunpack.c.l.b16 %v233
  %v1129 = vunpack.c.l.b16 %v234
  %v1130 = vunpack.c.l.b16 %v235
  %v1131 = vunpack.c.l.b16 %v236
  %v1132 = vunpack.c.l.b16 %v237
  %v1133 = vunpack.c.l.b16 %v238
  %v1134 = vunpack.c.l.b16 %v239
  %v1135 = vunpack.c.l.b16 %v240
  %v1136 = vunpack.c.l.b16 %v241
  %v1137 = vunpack.c.l.b16 %v242
  %v1138 = vunpack.c.l.b16 %v243
  %v1139 = vunpack.c.l.b16 %v244
  %v1140 = vunpack.c.l.b16 %v245
  %v1141 = vunpack.c.l.b16 %v246
  %v1142 = vunpack.c.l.b16 %v247
  %v1143 = vunpack.c.l.b16 %v248
  %v1144 = vunpack.c.l.b16 %v249
  %v1145 = vunpack.c.l.b16 %v250
  %v1146 = vunpack.c.l.b16 %v251
  %v1147 = vunpack.c.l.b16 %v252
  %v1148 = vunpack.c.l.b16 %v253
  %v1149 = vunpack.c.l.b16 %v254
  %v1150 = vunpack.c.l.b16 %v255
  %v1151 = vunpack.c.l.b16 %v256
  %v1152 = vunpack.c.l.b16 %v257
  %v1153 = vunpack.c.l.b16 %v258
  %v1154 = vunpack.c.l.b16 %v259
  %v1155 = vunpack.c.l.b16 %v260
  %v1156 = vunpack.c.l.b16 %v261
  %v1157 = vunpack.c.l.b16 %v262
  %v1158 = vunpack.c.l.b16 %v263
  %v1159 = vunpack.c.l.b16 %v264
  %v1160 = vunpack.c.l.b16 %v265
  %v1161 = vunpack.c.l.b16 %v266
  %v1162 = vunpack.c.l.b16 %v267
  %v1163 = vunpack.c.l.b16 %v268
  %v1164 = vunpack.c.l.b16 %v269
  %v1165 = vunpack.c.l.b16 %v270
  %v1166 = vunpack.c.l.b16 %v271
  %v1167 = vunpack.c.l.b16 %v272
  %v1168 = vunpack.c.l.b16 %v273
  %v1169 = vunpack.c.l.b16 %v274
  %v1170 = vunpack.c.l.b16 %v275
  %v1171 = vunpack.c.l.b16 %v276
  %v1172 = vunpack.c.l.b16 %v277
  %v1173 = vunpack.c.l.b16 %v278
  %v1174 = vunpack.c.l.b16 %v279
  %v1175 = vunpack.c.l.b16 %v280
  %v1176 = vunpack.c.l.b16 %v281
  %v1177 = vunpack.c.l.b16 %v282
  %v1178 = vunpack.c.l.b16 %v283
  %v1179 = vunpack.c.l.b16 %v284
  %v1180 = vunpack.c.l.b16 %v285
  %v1181 = vunpack.c.l.b16 %v286
  %v1182 = vunpack.c.l.b16 %v287
  %v1183 = vunpack.c.l.b16 %v288
  %v1184 = vunpack.c.l.b16 %v289
  %v1185 = vunpack.c.l.b16 %v290
  %v1186 = vunpack.c.l.b16 %v291
  %v1187 = vunpack.c.l.b16 %v292
  %v1188 = vunpack.c.l.b16 %v293
  %v1189 = vunpack.c.l.b16 %v294
  %v1190 = vunpack.c.l.b16 %v295
  %v1191 = vunpack.c.l.b16 %v296
  %v1192 = vunpack.c.l.b16 %v297
  %v1193 = vunpack.c.l.b16 %v298
  %v1194 = vunpack.c.l.b16 %v299
  %v1195 = vunpack.c.l.b16 %v300
  %v1196 = vunpack.c.l.b16 %v301
  %v1197 = vunpack.c.l.b16 %v302
  %v1198 = vunpack.c.l.b16 %v303
  %v1199 = vunpack.c.l.b16 %v304
  %v1200 = vunpack.c.l.b16 %v305
  %v1201 = vunpack.c.l.b16 %v306
  %v1202 = vunpack.c.l.b16 %v307
  %v1203 = vunpack.c.l.b16 %v308
  %v1204 = vunpack.c.l.b16 %v309
  %v1205 = vunpack.c.l.b16 %v310
  %v1206 = vunpack.c.l.b16 %v311
  %v1207 = vunpack.c.l.b16 %v312
  %v1208 = vunpack.c.l.b16 %v313
  %v1209 = vunpack.c.l.b16 %v314
  %v1210 = vunpack.c.l.b16 %v315
  %v1211 = vunpack.c.l.b16 %v316
  %v1212 = vunpack.c.l.b16 %v317
  %v1213 = vunpack.c.l.b16 %v318
  %v1214 = vunpack.c.l.b16 %v319
  %v1215 = vunpack.c.l.b16 %v320
  %v1216 = vunpack.c.l.b16 %v321
  %v1217 = vunpack.c.l.b16 %v322
  %v1218 = vunpack.c.l.b16 %v323
  %v1219 = vunpack.c.l.b16 %v324
  %v1220 = vunpack.c.l.b16 %v325
  %v1221 = vunpack.c.l.b16 %v326
  %v1222 = vunpack.c.l.b16 %v327
  %v1223 = vunpack.c.l.b16 %v328
  %v1224 = vunpack.c.l.b16 %v329
  %v1225 = vunpack.c.l.b16 %v330
  %v1226 = vunpack.c.l.b16 %v331
  %v1227 = vunpack.c.l.b16 %v332
  %v1228 = vunpack.c.l.b16 %v333
  %v1229 = vunpack.c.l.b16 %v334
  %v1230 = vunpack.c.l.b16 %v335
  %v1231 = vunpack.c.l.b16 %v336
  %v1232 = vunpack.c.l.b16 %v337
  %v1233 = vunpack.c.l.b16 %v338
  %v1234 = vunpack.c.l.b16 %v339
  %v1235 = vunpack.c.l.b16 %v340
  %v1236 = vunpack.c.l.b16 %v341
  %v1237 = vunpack.c.l.b16 %v342
  %v1238 = vunpack.c.l.b16 %v343
  %v1239 = vunpack.c.l.b16 %v344
  %v1240 = vunpack.c.l.b16 %v345
  %v1241 = vunpack.c.l.b16 %v346
  %v1242 = vunpack.c.l.b16 %v347
  %v1243 = vunpack.c.l.b16 %v348
  %v1244 = vunpack.c.l.b16 %v349
  %v1245 = vunpack.c.l.b16 %v350
  %v1246 = vunpack.c.l.b16 %v351
  %v1247 = vunpack.c.l.b16 %v352
  %v1248 = vunpack.c.l.b16 %v353
  %v1249 = vunpack.c.l.b16 %v354
  %v1250 = vunpack.c.l.b16 %v355
  %v1251 = vunpack.c.l.b16 %v356
  %v1252 = vunpack.c.l.b16 %v357
  %v1253 = vunpack.c.l.b16 %v358
  %v1254 = vunpack.c.l.b16 %v359
  %v1255 = vunpack.c.l.b16 %v360
  %v1256 = vunpack.c.l.b16 %v361
  %v1257 = vunpack.c.l.b16 %v362
  %v1258 = vunpack.c.l.b16 %v363
  %v1259 = vunpack.c.l.b16 %v364
  %v1260 = vunpack.c.l.b16 %v365
  %v1261 = vunpack.c.l.b16 %v366
  %v1262 = vunpack.c.l.b16 %v367
  %v1263 = vunpack.c.l.b16 %v368
  %v1264 = vunpack.c.l.b16 %v369
  %v1265 = vunpack.c.l.b16 %v370
  %v1266 = vunpack.c.l.b16 %v371
  %v1267 = vunpack.c.l.b16 %v372
  %v1268 = vunpack.c.l.b16 %v373
  %v1269 = vunpack.c.l.b16 %v374
  %v1270 = vunpack.c.l.b16 %v375
  %v1271 = vunpack.c.l.b16 %v376
  %v1272 = vunpack.c.l.b16 %v377
  %v1273 = vunpack.c.l.b16 %v378
  %v1274 = vunpack.c.l.b16 %v379
  %v1275 = vunpack.c.l.b16 %v380
  %v1276 = vunpack.c.l.b16 %v381
  %v1277 = vunpack.c.l.b16 %v382
  %v1278 = vunpack.c.l.b16 %v383
  %v1279 = vunpack.c.l.b16 %v384
  %v1280 = vunpack.c.l.b16 %v385
  %v1281 = vunpack.c.l.b16 %v386
  %v1282 = vunpack.c.l.b16 %v387
  %v1283 = vunpack.c.l.b16 %v388
  %v1284 = vunpack.c.l.b16 %v389
  %v1285 = vunpack.c.l.b16 %v390
  %v1286 = vunpack.c.l.b16 %v391
  %v1287 = vunpack.c.l.b16 %v392
  %v1288 = vunpack.c.l.b16 %v393
  %v1289 = vunpack.c.l.b16 %v394
  %v1290 = vunpack.c.l.b16 %v395
  %v1291 = vunpack.c.l.b16 %v396
  %v1292 = vunpack.c.l.b16 %v397
  %v1293 = vunpack.c.l.b16 %v398
  %v1294 = vunpack.c.l.b16 %v399
  %v1295 = vunpack.c.l.b16 %v400
  %v1296 = vunpack.c.l.b16 %v401
  %v1297 = vunpack.c.l.b16 %v402
  %v1298 = vunpack.c.l.b16 %v403
  %v1299 = vunpack.c.l.b16 %v404
  %v1300 = vunpack.c.l.b16 %v405
  %v1301 = vunpack.c.l.b16 %v406
  %v1302 = vunpack.c.l.b16 %v407
  %v1303 = vunpack.c.l.b16 %v408
  %v1304 = vunpack.c.l.b16 %v409
  %v1305 = vunpack.c.l.b16 %v410
  %v1306 = vunpack.c.l.b16 %v411
  %v1307 = vunpack.c.l.b16 %v412
  %v1308 = vunpack.c.l.b16 %v413
  %v1309 = vunpack.c.l.b16 %v414
  %v1310 = vunpack.c.l.b16 %v415
  %v1311 = vunpack.c.l.b16 %v416
  %v1312 = vunpack.c.l.b16 %v417
  %v1313 = vunpack.c.l.b16 %v418
  %v1314 = vunpack.c.l.b16 %v419
  %v1315 = vunpack.c.l.b16 %v420
  %v1316 = vunpack.c.l.b16 %v421
  %v1317 = vunpack.c.l.b16 %v422
  %v1318 = vunpack.c.l.b16 %v423
  %v1319 = vunpack.c.l.b16 %v424
  %v1320 = vunpack.c.l.b16 %v425
  %v1321 = vunpack.c.l.b16 %v426
  %v1322 = vunpack.c.l.b16 %v427
  %v1323 = vpack.c.b16 %v924, %v923
  %v1324 = vpack.c.b16 %v926, %v925
  %v1325 = vpack.c.b16 %v928, %v927
  %v1326 = vpack.c.b16 %v930, %v929
  %v1327 = vpack.c.b16 %v932, %v931
  %v1328 = vpack.c.b16 %v934, %v933
  %v1329 = vpack.c.b16 %v936, %v935
  %v1330 = vpack.c.b16 %v938, %v937
  %v1331 = vpack.c.b16 %v940, %v939
  %v1332 = vpack.c.b16 %v942, %v941
  %v1333 = vpack.c.b16 %v944, %v943
  %v1334 = vpack.c.b16 %v946, %v945
  %v1335 = vpack.c.b16 %v948, %v947
  %v1336 = vpack.c.b16 %v950, %v949
  %v1337 = vpack.c.b16 %v952, %v951
  %v1338 = vpack.c.b16 %v954, %v953
  %v1339 = vpack.c.b16 %v956, %v955
  %v1340 = vpack.c.b16 %v958, %v957
  %v1341 = vpack.c.b16 %v960, %v959
  %v1342 = vpack.c.b16 %v962, %v961
  %v1343 = vpack.c.b16 %v964, %v963
  %v1344 = vpack.c.b16 %v966, %v965
  %v1345 = vpack.c.b16 %v968, %v967
  %v1346 = vpack.c.b16 %v970, %v969
  %v1347 = vpack.c.b16 %v972, %v971
  %v1348 = vpack.c.b16 %v974, %v973
  %v1349 = vpack.c.b16 %v976, %v975
  %v1350 = vpack.c.b16 %v978, %v977
  %v1351 = vpack.c.b16 %v980, %v979
  %v1352 = vpack.c.b16 %v982, %v981
  %v1353 = vpack.c.b16 %v984, %v983
  %v1354 = vpack.c.b16 %v986, %v985
  %v1355 = vpack.c.b16 %v988, %v987
  %v1356 = vpack.c.b16 %v990, %v989
  %v1357 = vpack.c.b16 %v992, %v991
  %v1358 = vpack.c.b16 %v994, %v993
  %v1359 = vpack.c.b16 %v996, %v995
  %v1360 = vpack.c.b16 %v998, %v997
  %v1361 = vpack.c.b16 %v1000, %v999
  %v1362 = vpack.c.b16 %v1002, %v1001
  %v1363 = vpack.c.b16 %v1004, %v1003
  %v1364 = vpack.c.b16 %v1006, %v1005
  %v1365 = vpack.c.b16 %v1008, %v1007
  %v1366 = vpack.c.b16 %v1010, %v1009
  %v1367 = vpack.c.b16 %v1012, %v1011
  %v1368 = vpack.c.b16 %v1014, %v1013
  %v1369 = vpack.c.b16 %v1016, %v1015
  %v1370 = vpack.c.b16 %v1018, %v1017
  %v1371 = vpack.c.b16 %v1020, %v1019
  %v1372 = vpack.c.b16 %v1022, %v1021
  %v1373 = vpack.c.b16 %v1024, %v1023
  %v1374 = vpack.c.b16 %v1026, %v1025
  %v1375 = vpack.c.b16 %v1028, %v1027
  %v1376 = vpack.c.b16 %v1030, %v1029
  %v1377 = vpack.c.b16 %v1032, %v1031
  %v1378 = vpack.c.b16 %v1034, %v1033
  %v1379 = vpack.c.b16 %v1036, %v1035
  %v1380 = vpack.c.b16 %v1038, %v1037
  %v1381 = vpack.c.b16 %v1040, %v1039
  %v1382 = vpack.c.b16 %v1042, %v1041
  %v1383 = vpack.c.b16 %v1044, %v1043
  %v1384 = vpack.c.b16 %v1046, %v1045
  %v1385 = vpack.c.b16 %v1048, %v1047
  %v1386 = vpack.c.b16 %v1050, %v1049
  %v1387 = vpack.c.b16 %v1052, %v1051
  %v1388 = vpack.c.b16 %v1054, %v1053
  %v1389 = vpack.c.b16 %v1056, %v1055
  %v1390 = vpack.c.b16 %v1058, %v1057
  %v1391 = vpack.c.b16 %v1060, %v1059
  %v1392 = vpack.c.b16 %v1062, %v1061
  %v1393 = vpack.c.b16 %v1064, %v1063
  %v1394 = vpack.c.b16 %v1066, %v1065
  %v1395 = vpack.c.b16 %v1068, %v1067
  %v1396 = vpack.c.b16 %v1070, %v1069
  %v1397 = vpack.c.b16 %v1072, %v1071
  %v1398 = vpack.c.b16 %v1074, %v1073
  %v1399 = vpack.c.b16 %v1076, %v1075
  %v1400 = vpack.c.b16 %v1078, %v1077
  %v1401 = vpack.c.b16 %v1080, %v1079
  %v1402 = vpack.c.b16 %v1082, %v1081
  %v1403 = vpack.c.b16 %v1084, %v1083
  %v1404 = vpack.c.b16 %v1086, %v1085
  %v1405 = vpack.c.b16 %v1088, %v1087
  %v1406 = vpack.c.b16 %v1090, %v1089
  %v1407 = vpack.c.b16 %v1092, %v1091
  %v1408 = vpack.c.b16 %v1094, %v1093
  %v1409 = vpack.c.b16 %v1096, %v1095
  %v1410 = vpack.c.b16 %v1098, %v1097
  %v1411 = vpack.c.b16 %v1100, %v1099
  %v1412 = vpack.c.b16 %v1102, %v1101
  %v1413 = vpack.c.b16 %v1104, %v1103
  %v1414 = vpack.c.b16 %v1106, %v1105
  %v1415 = vpack.c.b16 %v1108, %v1107
  %v1416 = vpack.c.b16 %v1110, %v1109
  %v1417 = vpack.c.b16 %v1112, %v1111
  %v1418 = vpack.c.b16 %v1114, %v1113
  %v1419 = vpack.c.b16 %v1116, %v1115
  %v1420 = vpack.c.b16 %v1118, %v1117
  %v1421 = vpack.c.b16 %v1120, %v1119
  %v1422 = vpack.c.b16 %v1122, %v1121
  %v1423 = vpack.c.b16 %v1124, %v1123
  %v1424 = vpack.c.b16 %v1126, %v1125
  %v1425 = vpack.c.b16 %v1128, %v1127
  %v1426 = vpack.c.b16 %v1130, %v1129
  %v1427 = vpack.c.b16 %v1132, %v1131
  %v1428 = vpack.c.b16 %v1134, %v1133
  %v1429 = vpack.c.b16 %v1136, %v1135
  %v1430 = vpack.c.b16 %v1138, %v1137
  %v1431 = vpack.c.b16 %v1140, %v1139
  %v1432 = vpack.c.b16 %v1142, %v1141
  %v1433 = vpack.c.b16 %v1144, %v1143
  %v1434 = vpack.c.b16 %v1146, %v1145
  %v1435 = vpack.c.b16 %v1148, %v1147
  %v1436 = vpack.c.b16 %v1150, %v1149
  %v1437 = vpack.c.b16 %v1152, %v1151
  %v1438 = vpack.c.b16 %v1154, %v1153
  %v1439 = vpack.c.b16 %v1156, %v1155
  %v1440 = vpack.c.b16 %v1158, %v1157
  %v1441 = vpack.c.b16 %v1160, %v1159
  %v1442 = vpack.c.b16 %v1162, %v1161
  %v1443 = vpack.c.b16 %v1164, %v1163
  %v1444 = vpack.c.b16 %v1166, %v1165
  %v1445 = vpack.c.b16 %v1168, %v1167
  %v1446 = vpack.c.b16 %v1170, %v1169
  %v1447 = vpack.c.b16 %v1172, %v1171
  %v1448 = vpack.c.b16 %v1174, %v1173
  %v1449 = vpack.c.b16 %v1176, %v1175
  %v1450 = vpack.c.b16 %v1178, %v1177
  %v1451 = vpack.c.b16 %v1180, %v1179
  %v1452 = vpack.c.b16 %v1182, %v1181
  %v1453 = vpack.c.b16 %v1184, %v1183
  %v1454 = vpack.c.b16 %v1186, %v1185
  %v1455 = vpack.c.b16 %v1188, %v1187
  %v1456 = vpack.c.b16 %v1190, %v1189
  %v1457 = vpack.c.b16 %v1192, %v1191
  %v1458 = vpack.c.b16 %v1194, %v1193
  %v1459 = vpack.c.b16 %v1196, %v1195
  %v1460 = vpack.c.b16 %v1198, %v1197
  %v1461 = vpack.c.b16 %v1200, %v1199
  %v1462 = vpack.c.b16 %v1202, %v1201
  %v1463 = vpack.c.b16 %v1204, %v1203
  %v1464 = vpack.c.b16 %v1206, %v1205
  %v1465 = vpack.c.b16 %v1208, %v1207
  %v1466 = vpack.c.b16 %v1210, %v1209
  %v1467 = vpack.c.b16 %v1212, %v1211
  %v1468 = vpack.c.b16 %v1214, %v1213
  %v1469 = vpack.c.b16 %v1216, %v1215
  %v1470 = vpack.c.b16 %v1218, %v1217
  %v1471 = vpack.c.b16 %v1220, %v1219
  %v1472 = vpack.c.b16 %v1222, %v1221
  %v1473 = vpack.c.b16 %v1224, %v1223
  %v1474 = vpack.c.b16 %v1226, %v1225
  %v1475 = vpack.c.b16 %v1228, %v1227
  %v1476 = vpack.c.b16 %v1230, %v1229
  %v1477 = vpack.c.b16 %v1232, %v1231
  %v1478 = vpack.c.b16 %v1234, %v1233
  %v1479 = vpack.c.b16 %v1236, %v1235
  %v1480 = vpack.c.b16 %v1238, %v1237
  %v1481 = vpack.c.b16 %v1240, %v1239
  %v1482 = vpack.c.b16 %v1242, %v1241
  %v1483 = vpack.c.b16 %v1244, %v1243
  %v1484 = vpack.c.b16 %v1246, %v1245
  %v1485 = vpack.c.b16 %v1248, %v1247
  %v1486 = vpack.c.b16 %v1250, %v1249
  %v1487 = vpack.c.b16 %v1252, %v1251
  %v1488 = vpack.c.b16 %v1254, %v1253
  %v1489 = vpack.c.b16 %v1256, %v1255
  %v1490 = vpack.c.b16 %v1258, %v1257
  %v1491 = vpack.c.b16 %v1260, %v1259
  %v1492 = vpack.c.b16 %v1262, %v1261
  %v1493 = vpack.c.b16 %v1264, %v1263
  %v1494 = vpack.c.b16 %v1266, %v1265
  %v1495 = vpack.c.b16 %v1268, %v1267
  %v1496 = vpack.c.b16 %v1270, %v1269
  %v1497 = vpack.c.b16 %v1272, %v1271
  %v1498 = vpack.c.b16 %v1274, %v1273
  %v1499 = vpack.c.b16 %v1276, %v1275
  %v1500 = vpack.c.b16 %v1278, %v1277
  %v1501 = vpack.c.b16 %v1280, %v1279
  %v1502 = vpack.c.b16 %v1282, %v1281
  %v1503 = vpack.c.b16 %v1284, %v1283
  %v1504 = vpack.c.b16 %v1286, %v1285
  %v1505 = vpack.c.b16 %v1288, %v1287
  %v1506 = vpack.c.b16 %v1290, %v1289
  %v1507 = vpack.c.b16 %v1292, %v1291
  %v1508 = vpack.c.b16 %v1294, %v1293
  %v1509 = vpack.c.b16 %v1296, %v1295
  %v1510 = vpack.c.b16 %v1298, %v1297
  %v1511 = vpack.c.b16 %v1300, %v1299
  %v1512 = vpack.c.b16 %v1302, %v1301
  %v1513 = vpack.c.b16 %v1304, %v1303
  %v1514 = vpack.c.b16 %v1306, %v1305
  %v1515 = vpack.c.b16 %v1308, %v1307
  %v1516 = vpack.c.b16 %v1310, %v1309
  %v1517 = vpack.c.b16 %v1312, %v1311
  %v1518 = vpack.c.b16 %v1314, %v1313
  %v1519 = vpack.c.b16 %v1316, %v1315
  %v1520 = vpack.c.b16 %v1318, %v1317
  %v1521 = vpack.c.b16 %v1320, %v1319
  %v1522 = vpack.c.b16 %v1322, %v1321
  %1723 = vmatprep.subr.bf16.mxu0 0
  %1724 = vmatpush1.bf16.msra.mxu0 %v1323
  %1725 = vmatprep.subr.bf16.mxu0 0
  %1726 = vmatpush1.bf16.msra.mxu0 %v1324
  %1727 = vmatprep.subr.bf16.mxu0 0
  %1728 = vmatpush1.bf16.msra.mxu0 %v1325
  %1729 = vmatprep.subr.bf16.mxu0 0
  %1730 = vmatpush1.bf16.msra.mxu0 %v1326
  %1731 = vmatprep.subr.bf16.mxu0 0
  %1732 = vmatpush1.bf16.msra.mxu0 %v1327
  %1733 = vmatprep.subr.bf16.mxu0 0
  %1734 = vmatpush1.bf16.msra.mxu0 %v1328
  %1735 = vmatprep.subr.bf16.mxu0 0
  %1736 = vmatpush1.bf16.msra.mxu0 %v1329
  %1737 = vmatprep.subr.bf16.mxu0 0
  %1738 = vmatpush1.bf16.msra.mxu0 %v1330
  %1739 = vmatprep.subr.bf16.mxu0 0
  %1740 = vmatpush1.bf16.msra.mxu0 %v1331
  %1741 = vmatprep.subr.bf16.mxu0 0
  %1742 = vmatpush1.bf16.msra.mxu0 %v1332
  %1743 = vmatprep.subr.bf16.mxu0 0
  %1744 = vmatpush1.bf16.msra.mxu0 %v1333
  %1745 = vmatprep.subr.bf16.mxu0 0
  %1746 = vmatpush1.bf16.msra.mxu0 %v1334
  %1747 = vmatprep.subr.bf16.mxu0 0
  %1748 = vmatpush1.bf16.msra.mxu0 %v1335
  %1749 = vmatprep.subr.bf16.mxu0 0
  %1750 = vmatpush1.bf16.msra.mxu0 %v1336
  %1751 = vmatprep.subr.bf16.mxu0 0
  %1752 = vmatpush1.bf16.msra.mxu0 %v1337
  %1753 = vmatprep.subr.bf16.mxu0 0
  %1754 = vmatpush1.bf16.msra.mxu0 %v1338
  %1755 = vmatprep.mubr.bf16.mxu0 %v474
  %1756 = vmatmul.mubr.bf16.gmra.mrb[0].mxu0 %v473
  %v1757 = vpop.f32.mrb[0].mxu0
  %v1758 = vadd.f32 %v433, %v1757
  %v1759 = vpop.f32.mrb[0].mxu0
  %v1760 = vpop.f32.mrb[0].mxu0
  %v1761 = vpop.f32.mrb[0].mxu0
  %1762 = vdwg.mxu0
  %1763 = vmatprep.subr.bf16.mxu0 0
  %1764 = vmatpush1.bf16.msra.mxu0 %v1339
  %1765 = vmatprep.subr.bf16.mxu0 0
  %1766 = vmatpush1.bf16.msra.mxu0 %v1340
  %1767 = vmatprep.subr.bf16.mxu0 0
  %1768 = vmatpush1.bf16.msra.mxu0 %v1341
  %1769 = vmatprep.subr.bf16.mxu0 0
  %1770 = vmatpush1.bf16.msra.mxu0 %v1342
  %1771 = vmatprep.subr.bf16.mxu0 0
  %1772 = vmatpush1.bf16.msra.mxu0 %v1343
  %1773 = vmatprep.subr.bf16.mxu0 0
  %1774 = vmatpush1.bf16.msra.mxu0 %v1344
  %1775 = vmatprep.subr.bf16.mxu0 0
  %1776 = vmatpush1.bf16.msra.mxu0 %v1345
  %1777 = vmatprep.subr.bf16.mxu0 0
  %1778 = vmatpush1.bf16.msra.mxu0 %v1346
  %1779 = vmatprep.subr.bf16.mxu0 0
  %1780 = vmatpush1.bf16.msra.mxu0 %v1347
  %1781 = vmatprep.subr.bf16.mxu0 0
  %1782 = vmatpush1.bf16.msra.mxu0 %v1348
  %1783 = vmatprep.subr.bf16.mxu0 0
  %1784 = vmatpush1.bf16.msra.mxu0 %v1349
  %1785 = vmatprep.subr.bf16.mxu0 0
  %1786 = vmatpush1.bf16.msra.mxu0 %v1350
  %1787 = vmatprep.subr.bf16.mxu0 0
  %1788 = vmatpush1.bf16.msra.mxu0 %v1351
  %1789 = vmatprep.subr.bf16.mxu0 0
  %1790 = vmatpush1.bf16.msra.mxu0 %v1352
  %1791 = vmatprep.subr.bf16.mxu0 0
  %1792 = vmatpush1.bf16.msra.mxu0 %v1353
  %1793 = vmatprep.subr.bf16.mxu0 0
  %1794 = vmatpush1.bf16.msra.mxu0 %v1354
  %1795 = vmatprep.mubr.bf16.mxu0 %v476
  %1796 = vmatmul.mubr.bf16.gmra.mrb[0].mxu0 %v475
  %v1797 = vpop.f32.mrb[0].mxu0
  %v1798 = vadd.f32 %v1758, %v1797
  %v1799 = vpop.f32.mrb[0].mxu0
  %v1800 = vpop.f32.mrb[0].mxu0
  %v1801 = vpop.f32.mrb[0].mxu0
  %1802 = vdwg.mxu0
  %1803 = vmatprep.subr.bf16.mxu0 0
  %1804 = vmatpush1.bf16.msra.mxu0 %v1355
  %1805 = vmatprep.subr.bf16.mxu0 0
  %1806 = vmatpush1.bf16.msra.mxu0 %v1356
  %1807 = vmatprep.subr.bf16.mxu0 0
  %1808 = vmatpush1.bf16.msra.mxu0 %v1357
  %1809 = vmatprep.subr.bf16.mxu0 0
  %1810 = vmatpush1.bf16.msra.mxu0 %v1358
  %1811 = vmatprep.subr.bf16.mxu0 0
  %1812 = vmatpush1.bf16.msra.mxu0 %v1359
  %1813 = vmatprep.subr.bf16.mxu0 0
  %1814 = vmatpush1.bf16.msra.mxu0 %v1360
  %1815 = vmatprep.subr.bf16.mxu0 0
  %1816 = vmatpush1.bf16.msra.mxu0 %v1361
  %1817 = vmatprep.subr.bf16.mxu0 0
  %1818 = vmatpush1.bf16.msra.mxu0 %v1362
  %1819 = vmatprep.subr.bf16.mxu0 0
  %1820 = vmatpush1.bf16.msra.mxu0 %v1363
  %1821 = vmatprep.subr.bf16.mxu0 0
  %1822 = vmatpush1.bf16.msra.mxu0 %v1364
  %1823 = vmatprep.subr.bf16.mxu0 0
  %1824 = vmatpush1.bf16.msra.mxu0 %v1365
  %1825 = vmatprep.subr.bf16.mxu0 0
  %1826 = vmatpush1.bf16.msra.mxu0 %v1366
  %1827 = vmatprep.subr.bf16.mxu0 0
  %1828 = vmatpush1.bf16.msra.mxu0 %v1367
  %1829 = vmatprep.subr.bf16.mxu0 0
  %1830 = vmatpush1.bf16.msra.mxu0 %v1368
  %1831 = vmatprep.subr.bf16.mxu0 0
  %1832 = vmatpush1.bf16.msra.mxu0 %v1369
  %1833 = vmatprep.subr.bf16.mxu0 0
  %1834 = vmatpush1.bf16.msra.mxu0 %v1370
  %1835 = vmatprep.mubr.bf16.mxu0 %v478
  %1836 = vmatmul.mubr.bf16.gmra.mrb[0].mxu0 %v477
  %v1837 = vpop.f32.mrb[0].mxu0
  %v1838 = vadd.f32 %v1798, %v1837
  %v1839 = vpop.f32.mrb[0].mxu0
  %v1840 = vpop.f32.mrb[0].mxu0
  %v1841 = vpop.f32.mrb[0].mxu0
  %1842 = vdwg.mxu0
  %1843 = vmatprep.subr.bf16.mxu0 0
  %1844 = vmatpush1.bf16.msra.mxu0 %v1371
  %1845 = vmatprep.subr.bf16.mxu0 0
  %1846 = vmatpush1.bf16.msra.mxu0 %v1372
  %1847 = vmatprep.subr.bf16.mxu0 0
  %1848 = vmatpush1.bf16.msra.mxu0 %v1373
  %1849 = vmatprep.subr.bf16.mxu0 0
  %1850 = vmatpush1.bf16.msra.mxu0 %v1374
  %1851 = vmatprep.subr.bf16.mxu0 0
  %1852 = vmatpush1.bf16.msra.mxu0 %v1375
  %1853 = vmatprep.subr.bf16.mxu0 0
  %1854 = vmatpush1.bf16.msra.mxu0 %v1376
  %1855 = vmatprep.subr.bf16.mxu0 0
  %1856 = vmatpush1.bf16.msra.mxu0 %v1377
  %1857 = vmatprep.subr.bf16.mxu0 0
  %1858 = vmatpush1.bf16.msra.mxu0 %v1378
  %1859 = vmatprep.subr.bf16.mxu0 0
  %1860 = vmatpush1.bf16.msra.mxu0 %v1379
  %1861 = vmatprep.subr.bf16.mxu0 0
  %1862 = vmatpush1.bf16.msra.mxu0 %v1380
  %1863 = vmatprep.subr.bf16.mxu0 0
  %1864 = vmatpush1.bf16.msra.mxu0 %v1381
  %1865 = vmatprep.subr.bf16.mxu0 0
  %1866 = vmatpush1.bf16.msra.mxu0 %v1382
  %1867 = vmatprep.subr.bf16.mxu0 0
  %1868 = vmatpush1.bf16.msra.mxu0 %v1383
  %1869 = vmatprep.subr.bf16.mxu0 0
  %1870 = vmatpush1.bf16.msra.mxu0 %v1384
  %1871 = vmatprep.subr.bf16.mxu0 0
  %1872 = vmatpush1.bf16.msra.mxu0 %v1385
  %1873 = vmatprep.subr.bf16.mxu0 0
  %1874 = vmatpush1.bf16.msra.mxu0 %v1386
  %1875 = vmatprep.mubr.bf16.mxu0 %v480
  %1876 = vmatmul.mubr.bf16.gmra.mrb[0].mxu0 %v479
  %v1877 = vpop.f32.mrb[0].mxu0
  %v1878 = vadd.f32 %v1838, %v1877
  %v1879 = vpop.f32.mrb[0].mxu0
  %v1880 = vpop.f32.mrb[0].mxu0
  %v1881 = vpop.f32.mrb[0].mxu0
  %1882 = vdwg.mxu0
  %1883 = vmatprep.subr.bf16.mxu0 0
  %1884 = vmatpush1.bf16.msra.mxu0 %v1387
  %1885 = vmatprep.subr.bf16.mxu0 0
  %1886 = vmatpush1.bf16.msra.mxu0 %v1388
  %1887 = vmatprep.subr.bf16.mxu0 0
  %1888 = vmatpush1.bf16.msra.mxu0 %v1389
  %1889 = vmatprep.subr.bf16.mxu0 0
  %1890 = vmatpush1.bf16.msra.mxu0 %v1390
  %1891 = vmatprep.subr.bf16.mxu0 0
  %1892 = vmatpush1.bf16.msra.mxu0 %v1391
  %1893 = vmatprep.subr.bf16.mxu0 0
  %1894 = vmatpush1.bf16.msra.mxu0 %v1392
  %1895 = vmatprep.subr.bf16.mxu0 0
  %1896 = vmatpush1.bf16.msra.mxu0 %v1393
  %1897 = vmatprep.subr.bf16.mxu0 0
  %1898 = vmatpush1.bf16.msra.mxu0 %v1394
  %1899 = vmatprep.subr.bf16.mxu0 0
  %1900 = vmatpush1.bf16.msra.mxu0 %v1395
  %1901 = vmatprep.subr.bf16.mxu0 0
  %1902 = vmatpush1.bf16.msra.mxu0 %v1396
  %1903 = vmatprep.subr.bf16.mxu0 0
  %1904 = vmatpush1.bf16.msra.mxu0 %v1397
  %1905 = vmatprep.subr.bf16.mxu0 0
  %1906 = vmatpush1.bf16.msra.mxu0 %v1398
  %1907 = vmatprep.subr.bf16.mxu0 0
  %1908 = vmatpush1.bf16.msra.mxu0 %v1399
  %1909 = vmatprep.subr.bf16.mxu0 0
  %1910 = vmatpush1.bf16.msra.mxu0 %v1400
  %1911 = vmatprep.subr.bf16.mxu0 0
  %1912 = vmatpush1.bf16.msra.mxu0 %v1401
  %1913 = vmatprep.subr.bf16.mxu0 0
  %1914 = vmatpush1.bf16.msra.mxu0 %v1402
  %1915 = vmatprep.mubr.bf16.mxu0 %v482
  %1916 = vmatmul.mubr.bf16.gmra.mrb[0].mxu0 %v481
  %v1917 = vpop.f32.mrb[0].mxu0
  %v1918 = vadd.f32 %v1878, %v1917
  %v1919 = vpop.f32.mrb[0].mxu0
  %v1920 = vpop.f32.mrb[0].mxu0
  %v1921 = vpop.f32.mrb[0].mxu0
  %1922 = vdwg.mxu0
  %1923 = vmatprep.subr.bf16.mxu0 0
  %1924 = vmatpush1.bf16.msra.mxu0 %v1403
  %1925 = vmatprep.subr.bf16.mxu0 0
  %1926 = vmatpush1.bf16.msra.mxu0 %v1404
  %1927 = vmatprep.subr.bf16.mxu0 0
  %1928 = vmatpush1.bf16.msra.mxu0 %v1405
  %1929 = vmatprep.subr.bf16.mxu0 0
  %1930 = vmatpush1.bf16.msra.mxu0 %v1406
  %1931 = vmatprep.subr.bf16.mxu0 0
  %1932 = vmatpush1.bf16.msra.mxu0 %v1407
  %1933 = vmatprep.subr.bf16.mxu0 0
  %1934 = vmatpush1.bf16.msra.mxu0 %v1408
  %1935 = vmatprep.subr.bf16.mxu0 0
  %1936 = vmatpush1.bf16.msra.mxu0 %v1409
  %1937 = vmatprep.subr.bf16.mxu0 0
  %1938 = vmatpush1.bf16.msra.mxu0 %v1410
  %1939 = vmatprep.subr.bf16.mxu0 0
  %1940 = vmatpush1.bf16.msra.mxu0 %v1411
  %1941 = vmatprep.subr.bf16.mxu0 0
  %1942 = vmatpush1.bf16.msra.mxu0 %v1412
  %1943 = vmatprep.subr.bf16.mxu0 0
  %1944 = vmatpush1.bf16.msra.mxu0 %v1413
  %1945 = vmatprep.subr.bf16.mxu0 0
  %1946 = vmatpush1.bf16.msra.mxu0 %v1414
  %1947 = vmatprep.subr.bf16.mxu0 0
  %1948 = vmatpush1.bf16.msra.mxu0 %v1415
  %1949 = vmatprep.subr.bf16.mxu0 0
  %1950 = vmatpush1.bf16.msra.mxu0 %v1416
  %1951 = vmatprep.subr.bf16.mxu0 0
  %1952 = vmatpush1.bf16.msra.mxu0 %v1417
  %1953 = vmatprep.subr.bf16.mxu0 0
  %1954 = vmatpush1.bf16.msra.mxu0 %v1418
  %1955 = vmatprep.mubr.bf16.mxu0 %v484
  %1956 = vmatmul.mubr.bf16.gmra.mrb[0].mxu0 %v483
  %v1957 = vpop.f32.mrb[0].mxu0
  %v1958 = vadd.f32 %v1918, %v1957
  %v1959 = vpop.f32.mrb[0].mxu0
  %v1960 = vpop.f32.mrb[0].mxu0
  %v1961 = vpop.f32.mrb[0].mxu0
  %1962 = vdwg.mxu0
  %1963 = vmatprep.subr.bf16.mxu0 0
  %1964 = vmatpush1.bf16.msra.mxu0 %v1419
  %1965 = vmatprep.subr.bf16.mxu0 0
  %1966 = vmatpush1.bf16.msra.mxu0 %v1420
  %1967 = vmatprep.subr.bf16.mxu0 0
  %1968 = vmatpush1.bf16.msra.mxu0 %v1421
  %1969 = vmatprep.subr.bf16.mxu0 0
  %1970 = vmatpush1.bf16.msra.mxu0 %v1422
  %1971 = vmatprep.subr.bf16.mxu0 0
  %1972 = vmatpush1.bf16.msra.mxu0 %v1423
  %1973 = vmatprep.subr.bf16.mxu0 0
  %1974 = vmatpush1.bf16.msra.mxu0 %v1424
  %1975 = vmatprep.subr.bf16.mxu0 0
  %1976 = vmatpush1.bf16.msra.mxu0 %v1425
  %1977 = vmatprep.subr.bf16.mxu0 0
  %1978 = vmatpush1.bf16.msra.mxu0 %v1426
  %1979 = vmatprep.subr.bf16.mxu0 0
  %1980 = vmatpush1.bf16.msra.mxu0 %v1427
  %1981 = vmatprep.subr.bf16.mxu0 0
  %1982 = vmatpush1.bf16.msra.mxu0 %v1428
  %1983 = vmatprep.subr.bf16.mxu0 0
  %1984 = vmatpush1.bf16.msra.mxu0 %v1429
  %1985 = vmatprep.subr.bf16.mxu0 0
  %1986 = vmatpush1.bf16.msra.mxu0 %v1430
  %1987 = vmatprep.subr.bf16.mxu0 0
  %1988 = vmatpush1.bf16.msra.mxu0 %v1431
  %1989 = vmatprep.subr.bf16.mxu0 0
  %1990 = vmatpush1.bf16.msra.mxu0 %v1432
  %1991 = vmatprep.subr.bf16.mxu0 0
  %1992 = vmatpush1.bf16.msra.mxu0 %v1433
  %1993 = vmatprep.subr.bf16.mxu0 0
  %1994 = vmatpush1.bf16.msra.mxu0 %v1434
  %1995 = vmatprep.mubr.bf16.mxu0 %v486
  %1996 = vmatmul.mubr.bf16.gmra.mrb[0].mxu0 %v485
  %v1997 = vpop.f32.mrb[0].mxu0
  %v1998 = vadd.f32 %v1958, %v1997
  %v1999 = vpop.f32.mrb[0].mxu0
  %v2000 = vpop.f32.mrb[0].mxu0
  %v2001 = vpop.f32.mrb[0].mxu0
  %2002 = vdwg.mxu0
  %2003 = vmatprep.subr.bf16.mxu0 0
  %2004 = vmatpush1.bf16.msra.mxu0 %v1435
  %2005 = vmatprep.subr.bf16.mxu0 0
  %2006 = vmatpush1.bf16.msra.mxu0 %v1436
  %2007 = vmatprep.subr.bf16.mxu0 0
  %2008 = vmatpush1.bf16.msra.mxu0 %v1437
  %2009 = vmatprep.subr.bf16.mxu0 0
  %2010 = vmatpush1.bf16.msra.mxu0 %v1438
  %2011 = vmatprep.subr.bf16.mxu0 0
  %2012 = vmatpush1.bf16.msra.mxu0 %v1439
  %2013 = vmatprep.subr.bf16.mxu0 0
  %2014 = vmatpush1.bf16.msra.mxu0 %v1440
  %2015 = vmatprep.subr.bf16.mxu0 0
  %2016 = vmatpush1.bf16.msra.mxu0 %v1441
  %2017 = vmatprep.subr.bf16.mxu0 0
  %2018 = vmatpush1.bf16.msra.mxu0 %v1442
  %2019 = vmatprep.subr.bf16.mxu0 0
  %2020 = vmatpush1.bf16.msra.mxu0 %v1443
  %2021 = vmatprep.subr.bf16.mxu0 0
  %2022 = vmatpush1.bf16.msra.mxu0 %v1444
  %2023 = vmatprep.subr.bf16.mxu0 0
  %2024 = vmatpush1.bf16.msra.mxu0 %v1445
  %2025 = vmatprep.subr.bf16.mxu0 0
  %2026 = vmatpush1.bf16.msra.mxu0 %v1446
  %2027 = vmatprep.subr.bf16.mxu0 0
  %2028 = vmatpush1.bf16.msra.mxu0 %v1447
  %2029 = vmatprep.subr.bf16.mxu0 0
  %2030 = vmatpush1.bf16.msra.mxu0 %v1448
  %2031 = vmatprep.subr.bf16.mxu0 0
  %2032 = vmatpush1.bf16.msra.mxu0 %v1449
  %2033 = vmatprep.subr.bf16.mxu0 0
  %2034 = vmatpush1.bf16.msra.mxu0 %v1450
  %2035 = vmatprep.mubr.bf16.mxu0 %v488
  %2036 = vmatmul.mubr.bf16.gmra.mrb[0].mxu0 %v487
  %v2037 = vpop.f32.mrb[0].mxu0
  %v2038 = vadd.f32 %v1998, %v2037
  %v2039 = vpop.f32.mrb[0].mxu0
  %v2040 = vpop.f32.mrb[0].mxu0
  %v2041 = vpop.f32.mrb[0].mxu0
  %2042 = vdwg.mxu0
  %2043 = vmatprep.subr.bf16.mxu0 0
  %2044 = vmatpush1.bf16.msra.mxu0 %v1451
  %2045 = vmatprep.subr.bf16.mxu0 0
  %2046 = vmatpush1.bf16.msra.mxu0 %v1452
  %2047 = vmatprep.subr.bf16.mxu0 0
  %2048 = vmatpush1.bf16.msra.mxu0 %v1453
  %2049 = vmatprep.subr.bf16.mxu0 0
  %2050 = vmatpush1.bf16.msra.mxu0 %v1454
  %2051 = vmatprep.subr.bf16.mxu0 0
  %2052 = vmatpush1.bf16.msra.mxu0 %v1455
  %2053 = vmatprep.subr.bf16.mxu0 0
  %2054 = vmatpush1.bf16.msra.mxu0 %v1456
  %2055 = vmatprep.subr.bf16.mxu0 0
  %2056 = vmatpush1.bf16.msra.mxu0 %v1457
  %2057 = vmatprep.subr.bf16.mxu0 0
  %2058 = vmatpush1.bf16.msra.mxu0 %v1458
  %2059 = vmatprep.subr.bf16.mxu0 0
  %2060 = vmatpush1.bf16.msra.mxu0 %v1459
  %2061 = vmatprep.subr.bf16.mxu0 0
  %2062 = vmatpush1.bf16.msra.mxu0 %v1460
  %2063 = vmatprep.subr.bf16.mxu0 0
  %2064 = vmatpush1.bf16.msra.mxu0 %v1461
  %2065 = vmatprep.subr.bf16.mxu0 0
  %2066 = vmatpush1.bf16.msra.mxu0 %v1462
  %2067 = vmatprep.subr.bf16.mxu0 0
  %2068 = vmatpush1.bf16.msra.mxu0 %v1463
  %2069 = vmatprep.subr.bf16.mxu0 0
  %2070 = vmatpush1.bf16.msra.mxu0 %v1464
  %2071 = vmatprep.subr.bf16.mxu0 0
  %2072 = vmatpush1.bf16.msra.mxu0 %v1465
  %2073 = vmatprep.subr.bf16.mxu0 0
  %2074 = vmatpush1.bf16.msra.mxu0 %v1466
  %2075 = vmatprep.mubr.bf16.mxu0 %v490
  %2076 = vmatmul.mubr.bf16.gmra.mrb[0].mxu0 %v489
  %v2077 = vpop.f32.mrb[0].mxu0
  %v2078 = vadd.f32 %v2038, %v2077
  %v2079 = vpop.f32.mrb[0].mxu0
  %v2080 = vpop.f32.mrb[0].mxu0
  %v2081 = vpop.f32.mrb[0].mxu0
  %2082 = vdwg.mxu0
  %2083 = vmatprep.subr.bf16.mxu0 0
  %2084 = vmatpush1.bf16.msra.mxu0 %v1467
  %2085 = vmatprep.subr.bf16.mxu0 0
  %2086 = vmatpush1.bf16.msra.mxu0 %v1468
  %2087 = vmatprep.subr.bf16.mxu0 0
  %2088 = vmatpush1.bf16.msra.mxu0 %v1469
  %2089 = vmatprep.subr.bf16.mxu0 0
  %2090 = vmatpush1.bf16.msra.mxu0 %v1470
  %2091 = vmatprep.subr.bf16.mxu0 0
  %2092 = vmatpush1.bf16.msra.mxu0 %v1471
  %2093 = vmatprep.subr.bf16.mxu0 0
  %2094 = vmatpush1.bf16.msra.mxu0 %v1472
  %2095 = vmatprep.subr.bf16.mxu0 0
  %2096 = vmatpush1.bf16.msra.mxu0 %v1473
  %2097 = vmatprep.subr.bf16.mxu0 0
  %2098 = vmatpush1.bf16.msra.mxu0 %v1474
  %2099 = vmatprep.subr.bf16.mxu0 0
  %2100 = vmatpush1.bf16.msra.mxu0 %v1475
  %2101 = vmatprep.subr.bf16.mxu0 0
  %2102 = vmatpush1.bf16.msra.mxu0 %v1476
  %2103 = vmatprep.subr.bf16.mxu0 0
  %2104 = vmatpush1.bf16.msra.mxu0 %v1477
  %2105 = vmatprep.subr.bf16.mxu0 0
  %2106 = vmatpush1.bf16.msra.mxu0 %v1478
  %2107 = vmatprep.subr.bf16.mxu0 0
  %2108 = vmatpush1.bf16.msra.mxu0 %v1479
  %2109 = vmatprep.subr.bf16.mxu0 0
  %2110 = vmatpush1.bf16.msra.mxu0 %v1480
  %2111 = vmatprep.subr.bf16.mxu0 0
  %2112 = vmatpush1.bf16.msra.mxu0 %v1481
  %2113 = vmatprep.subr.bf16.mxu0 0
  %2114 = vmatpush1.bf16.msra.mxu0 %v1482
  %2115 = vmatprep.mubr.bf16.mxu0 %v492
  %2116 = vmatmul.mubr.bf16.gmra.mrb[0].mxu0 %v491
  %v2117 = vpop.f32.mrb[0].mxu0
  %v2118 = vadd.f32 %v2078, %v2117
  %v2119 = vpop.f32.mrb[0].mxu0
  %v2120 = vpop.f32.mrb[0].mxu0
  %v2121 = vpop.f32.mrb[0].mxu0
  %2122 = vdwg.mxu0
  %2123 = vmatprep.subr.bf16.mxu0 0
  %2124 = vmatpush1.bf16.msra.mxu0 %v1483
  %2125 = vmatprep.subr.bf16.mxu0 0
  %2126 = vmatpush1.bf16.msra.mxu0 %v1484
  %2127 = vmatprep.subr.bf16.mxu0 0
  %2128 = vmatpush1.bf16.msra.mxu0 %v1485
  %2129 = vmatprep.subr.bf16.mxu0 0
  %2130 = vmatpush1.bf16.msra.mxu0 %v1486
  %2131 = vmatprep.subr.bf16.mxu0 0
  %2132 = vmatpush1.bf16.msra.mxu0 %v1487
  %2133 = vmatprep.subr.bf16.mxu0 0
  %2134 = vmatpush1.bf16.msra.mxu0 %v1488
  %2135 = vmatprep.subr.bf16.mxu0 0
  %2136 = vmatpush1.bf16.msra.mxu0 %v1489
  %2137 = vmatprep.subr.bf16.mxu0 0
  %2138 = vmatpush1.bf16.msra.mxu0 %v1490
  %2139 = vmatprep.subr.bf16.mxu0 0
  %2140 = vmatpush1.bf16.msra.mxu0 %v1491
  %2141 = vmatprep.subr.bf16.mxu0 0
  %2142 = vmatpush1.bf16.msra.mxu0 %v1492
  %2143 = vmatprep.subr.bf16.mxu0 0
  %2144 = vmatpush1.bf16.msra.mxu0 %v1493
  %2145 = vmatprep.subr.bf16.mxu0 0
  %2146 = vmatpush1.bf16.msra.mxu0 %v1494
  %2147 = vmatprep.subr.bf16.mxu0 0
  %2148 = vmatpush1.bf16.msra.mxu0 %v1495
  %2149 = vmatprep.subr.bf16.mxu0 0
  %2150 = vmatpush1.bf16.msra.mxu0 %v1496
  %2151 = vmatprep.subr.bf16.mxu0 0
  %2152 = vmatpush1.bf16.msra.mxu0 %v1497
  %2153 = vmatprep.subr.bf16.mxu0 0
  %2154 = vmatpush1.bf16.msra.mxu0 %v1498
  %2155 = vmatprep.mubr.bf16.mxu0 %v494
  %2156 = vmatmul.mubr.bf16.gmra.mrb[0].mxu0 %v493
  %v2157 = vpop.f32.mrb[0].mxu0
  %v2158 = vadd.f32 %v2118, %v2157
  %v2159 = vpop.f32.mrb[0].mxu0
  %v2160 = vpop.f32.mrb[0].mxu0
  %v2161 = vpop.f32.mrb[0].mxu0
  %2162 = vdwg.mxu0
  %2163 = vmatprep.subr.bf16.mxu0 0
  %2164 = vmatpush1.bf16.msra.mxu0 %v1499
  %2165 = vmatprep.subr.bf16.mxu0 0
  %2166 = vmatpush1.bf16.msra.mxu0 %v1500
  %2167 = vmatprep.subr.bf16.mxu0 0
  %2168 = vmatpush1.bf16.msra.mxu0 %v1501
  %2169 = vmatprep.subr.bf16.mxu0 0
  %2170 = vmatpush1.bf16.msra.mxu0 %v1502
  %2171 = vmatprep.subr.bf16.mxu0 0
  %2172 = vmatpush1.bf16.msra.mxu0 %v1503
  %2173 = vmatprep.subr.bf16.mxu0 0
  %2174 = vmatpush1.bf16.msra.mxu0 %v1504
  %2175 = vmatprep.subr.bf16.mxu0 0
  %2176 = vmatpush1.bf16.msra.mxu0 %v1505
  %2177 = vmatprep.subr.bf16.mxu0 0
  %2178 = vmatpush1.bf16.msra.mxu0 %v1506
  %2179 = vmatprep.subr.bf16.mxu0 0
  %2180 = vmatpush1.bf16.msra.mxu0 %v1507
  %2181 = vmatprep.subr.bf16.mxu0 0
  %2182 = vmatpush1.bf16.msra.mxu0 %v1508
  %2183 = vmatprep.subr.bf16.mxu0 0
  %2184 = vmatpush1.bf16.msra.mxu0 %v1509
  %2185 = vmatprep.subr.bf16.mxu0 0
  %2186 = vmatpush1.bf16.msra.mxu0 %v1510
  %2187 = vmatprep.subr.bf16.mxu0 0
  %2188 = vmatpush1.bf16.msra.mxu0 %v1511
  %2189 = vmatprep.subr.bf16.mxu0 0
  %2190 = vmatpush1.bf16.msra.mxu0 %v1512
  %2191 = vmatprep.subr.bf16.mxu0 0
  %2192 = vmatpush1.bf16.msra.mxu0 %v1513
  %2193 = vmatprep.subr.bf16.mxu0 0
  %2194 = vmatpush1.bf16.msra.mxu0 %v1514
  %2195 = vmatprep.mubr.bf16.mxu0 %v496
  %2196 = vmatmul.mubr.bf16.gmra.mrb[0].mxu0 %v495
  %v2197 = vpop.f32.mrb[0].mxu0
  %v2198 = vadd.f32 %v2158, %v2197
  %v2199 = vpop.f32.mrb[0].mxu0
  %v2200 = vpop.f32.mrb[0].mxu0
  %v2201 = vpop.f32.mrb[0].mxu0
  %2202 = vdwg.mxu0
  %2203 = vmatprep.subr.bf16.mxu0 0
  %2204 = vmatpush1.bf16.msra.mxu0 %v1515
  %2205 = vmatprep.subr.bf16.mxu0 0
  %2206 = vmatpush1.bf16.msra.mxu0 %v1516
  %2207 = vmatprep.subr.bf16.mxu0 0
  %2208 = vmatpush1.bf16.msra.mxu0 %v1517
  %2209 = vmatprep.subr.bf16.mxu0 0
  %2210 = vmatpush1.bf16.msra.mxu0 %v1518
  %2211 = vmatprep.subr.bf16.mxu0 0
  %2212 = vmatpush1.bf16.msra.mxu0 %v1519
  %2213 = vmatprep.subr.bf16.mxu0 0
  %2214 = vmatpush1.bf16.msra.mxu0 %v1520
  %2215 = vmatprep.subr.bf16.mxu0 0
  %2216 = vmatpush1.bf16.msra.mxu0 %v1521
  %2217 = vmatprep.subr.bf16.mxu0 0
  %2218 = vmatpush1.bf16.msra.mxu0 %v1522
  %2219 = vmatprep.subr.bf16.mxu0 0
  %2220 = vmatpush1.bf16.msra.mxu0 0
  %2221 = vmatprep.subr.bf16.mxu0 0
  %2222 = vmatpush1.bf16.msra.mxu0 0
  %2223 = vmatprep.subr.bf16.mxu0 0
  %2224 = vmatpush1.bf16.msra.mxu0 0
  %2225 = vmatprep.subr.bf16.mxu0 0
  %2226 = vmatpush1.bf16.msra.mxu0 0
  %2227 = vmatprep.subr.bf16.mxu0 0
  %2228 = vmatpush1.bf16.msra.mxu0 0
  %2229 = vmatprep.subr.bf16.mxu0 0
  %2230 = vmatpush1.bf16.msra.mxu0 0
  %2231 = vmatprep.subr.bf16.mxu0 0
  %2232 = vmatpush1.bf16.msra.mxu0 0
  %2233 = vmatprep.subr.bf16.mxu0 0
  %2234 = vmatpush1.bf16.msra.mxu0 0
  %2235 = vmatprep.mubr.bf16.mxu0 0
  %2236 = vmatmul.mubr.bf16.gmra.mrb[0].mxu0 %v497
  %v2237 = vpop.f32.mrb[0].mxu0
  %v2238 = vadd.f32 %v2198, %v2237
  %v2239 = vpop.f32.mrb[0].mxu0
  %v2240 = vpop.f32.mrb[0].mxu0
  %v2241 = vpop.f32.mrb[0].mxu0
  %2242 = vdwg.mxu0
  %vm2243 = vcmp.gt.f32.partialorder %v2238, 0.0
  %v2244 = vmul.f32 %v2238, 1.442695
  %v2245 = vpow.pop %v2244
  %v2246 = vsub.f32 %v2245, 1.0
  %v2247 = vsel %vm2243, %v2238, %v2246
  %v2248 = vpack.c.bf16 %v2247, %v2247
  %2249 = vst [vmem:[%s3] sm:$0xf] %v2248
  // Predicated region
  $region14: #{discriminator_forward.8} parent=0 // pred_check
    _
  $region15: #{discriminator_forward.8} parent=0 // pred_check_branch
    %2251 = sbr.rel (0) target = $region17
  $region16: #{discriminator_forward.8} parent=0 // pred_region
    _
  $region17: #{discriminator_forward.8} parent=0 // pred_fallthru
    _
  // Predicated region
  $region18: #{discriminator_forward.8} parent=0 // pred_check
    _
  $region19: #{discriminator_forward.8} parent=0 // pred_check_branch
    %2253 = sbr.rel (0) target = $region21
  $region20: #{discriminator_forward.8} parent=0 // pred_region
    _
  $region21: #{discriminator_forward.8} parent=0 // pred_fallthru
    _

</llo_original>
